<compile_context>
chip_gen: v7x
topology: tpu7x:2x2x1
jax: 0.10.0
libtpu: 0.0.40
codegen_flags: <defaults>
</compile_context>

<pallas_src>
import functools

import jax
import jax.numpy as jnp
from jax.experimental import pallas as pl
from jax.experimental.pallas import tpu as pltpu

CH = 4            # one-hot DNA channels
OUT_LANES = 128   # packed output width = one full vreg lane extent


# ----------------------------------------------------------------------------
# Fused kernel: stage-1 conv stand-in (chunked over P) + stage-2 MLP head
# ----------------------------------------------------------------------------
def _fused_kernel(idx_ref, g_ref, conv_w_ref, w1_ref, w3c_ref, w23_ref, w4_ref,
                  bias_ref, out_ref, cmax_ref, *, p_total, pad_tail):
    # idx_ref:   [1, TB, CW]  int32 base indices for this P-chunk (CW = PC + K - 1)
    # g_ref:     [TB, U]      cell-type encoding tile
    # conv_w_ref:[4*K, C]     bf16 conv weights (tap-major, channel-minor rows)
    # w1_ref:    [U, H1]      fc1 (bn1 folded)
    # w3c_ref:   [C, H3]      fc3 rows hitting conv_out (bn3 folded)
    # w23_ref:   [H1, H3]     fc2 folded through fc3's g-column (bn3 folded)
    # w4_ref:    [H3, 2]      fc4
    # bias_ref:  [4, 128]     packed biases: row0 conv_b, row1 b1', row2 b3', row3 b4
    # out_ref:   [TB, 128]    packed lane-dense output: [fc3_g | fc4_g | log_probs | 0-pad]
    # cmax_ref:  [TB, C]      running max-pool accumulator across P-chunks
    j = pl.program_id(1)
    nj = pl.num_programs(1)
    _, TB, CW = idx_ref.shape
    KC, C = conv_w_ref.shape
    K = KC // CH
    PC = CW - K + 1
    H1 = w1_ref.shape[1]
    H3 = w3c_ref.shape[1]

    @pl.when(j == 0)
    def _():
        cmax_ref[...] = jnp.full_like(cmax_ref, -jnp.inf)

    idx = idx_ref[0]                                              # [TB, CW] int32

    # ---- lane-dense one-hot patch build: patches[b, p, k*4+c] = (idx[b, p+k] == c) ----
    # K static shifted slices of the int32 index row; each tap k lights up exactly one
    # lane in its own 4-lane group (target lane = k*4 + base), so the groups are disjoint.
    lane = jax.lax.broadcasted_iota(jnp.int32, (TB, PC, KC), 2)
    patches = jnp.zeros((TB, PC, KC), jnp.float32)
    for k in range(K):
        tgt = (idx[:, k:k + PC] + k * CH)[:, :, None]             # [TB, PC, 1]
        patches = patches + (lane == tgt).astype(jnp.float32)
    patches = patches.astype(jnp.bfloat16).reshape(TB * PC, KC)   # lane-dense MXU operand

    # ---- conv chunk: bf16 MXU matmul + bias + ReLU + running max-pool ----
    acts = jnp.dot(patches, conv_w_ref[...], preferred_element_type=jnp.float32)
    acts = jnp.maximum(acts + bias_ref[0:1, :C], 0.0).reshape(TB, PC, C)
    if pad_tail:  # static: only the last chunk can contain padded positions
        pos = j * PC + jax.lax.broadcasted_iota(jnp.int32, (1, PC, 1), 1)
        acts = jnp.where(pos < p_total, acts, -jnp.inf)
    cmax_ref[...] = jnp.maximum(cmax_ref[...], jnp.max(acts, axis=1))

    # ---- MLP head, once per batch tile (after the last P-chunk) ----
    @pl.when(j == nj - 1)
    def _():
        conv_out = cmax_ref[...]                                  # [TB, C]

        # fc1 (+ folded bn1) -> ReLU   (dropout1 = identity in eval)
        h1 = jnp.dot(g_ref[...], w1_ref[...],
                     preferred_element_type=jnp.float32) + bias_ref[1:2, :H1]
        h1 = jnp.maximum(h1, 0.0)

        # fc2 + concat([conv_out, g2]) + fc3 (+ folded bn3), all folded:
        #   h3 = conv_out @ w3c' + h1 @ W23' + b3'
        h3 = jnp.dot(conv_out, w3c_ref[...], preferred_element_type=jnp.float32)
        h3 = h3 + jnp.dot(h1, w23_ref[...], preferred_element_type=jnp.float32)
        h3 = jnp.maximum(h3 + bias_ref[2:3, :H3], 0.0)            # ReLU3 (dropout3 = id)

        # fc4 + log_softmax (EUP)
        h4 = jnp.dot(h3, w4_ref[...],
                     preferred_element_type=jnp.float32) + bias_ref[3:4, :2]
        m = jnp.max(h4, axis=-1, keepdims=True)
        lp = h4 - (m + jnp.log(jnp.sum(jnp.exp(h4 - m), axis=-1, keepdims=True)))

        pad = jnp.zeros((TB, OUT_LANES - H3 - 4), jnp.float32)
        out_ref[...] = jnp.concatenate([h3, h4, lp, pad], axis=-1)   # one dense store


# ----------------------------------------------------------------------------
# Wrapper
# ----------------------------------------------------------------------------
def _round_up(x, m):
    return (x + m - 1) // m * m


def _choose_tiling(B, P):
    # >= 2 batch-grid steps whenever B >= 16 so v7x's two TensorCores both get work.
    if B >= 16:
        tile_b = min(256, _round_up(pl.cdiv(B, 2), 8))
    else:
        tile_b = B
    # Chunk conv positions so per-step intermediates (patches/acts) stay a few MiB:
    # TILE_B * PC <= 8192 rows  ->  acts <= 2 MiB f32 at C=64 (safe under v7x 32 MiB scoped).
    max_rows = 8192
    pc = max(8, min(_round_up(P, 8), (max_rows // max(tile_b, 1)) // 8 * 8))
    return tile_b, pc


def net_stage2_forward(s, g, params):
    """s: [B, 4, L] one-hot sequence (NCL), g: [B, num_units]. Returns (fc3_g, fc4_g, log_probs)."""
    B, _, L = s.shape
    U = g.shape[1]
    conv_w = params["conv_w"]                       # bf16 [4*K, C]
    KC, C = conv_w.shape
    K = KC // CH
    P = L - K + 1
    H3 = params["w3cf"].shape[1]
    assert H3 + 4 <= OUT_LANES and C <= 128

    tile_b, pc = _choose_tiling(B, P)
    nchunk = pl.cdiv(P, pc)
    cw = pc + K - 1

    # Ship the sequence as int32 base indices, pre-windowed into per-chunk rows with a
    # K-1 halo so all in-kernel slices are static. (Assumes s is strictly one-hot.)
    idx = jnp.argmax(s, axis=1).astype(jnp.int32)                       # [B, L]
    l_need = nchunk * pc + K - 1
    idx = jnp.pad(idx, ((0, 0), (0, l_need - L)))
    win = jnp.arange(nchunk)[:, None] * pc + jnp.arange(cw)[None, :]    # [nchunk, cw]
    idx_chunks = jnp.transpose(idx[:, win], (1, 0, 2))                  # [nchunk, B, cw]

    g = g.astype(jnp.float32)

    kernel = functools.partial(_fused_kernel, p_total=P, pad_tail=(nchunk * pc != P))

    packed = pl.pallas_call(
        kernel,
        out_shape=jax.ShapeDtypeStruct((B, OUT_LANES), jnp.float32),
        grid_spec=pltpu.PrefetchScalarGridSpec(
            num_scalar_prefetch=0,
            grid=(pl.cdiv(B, tile_b), nchunk),                 # (batch tiles, P chunks)
            in_specs=[
                pl.BlockSpec((1, tile_b, cw), lambda i, j: (j, i, 0)),    # idx chunks
                pl.BlockSpec((tile_b, U), lambda i, j: (i, 0)),           # g
                pl.BlockSpec(conv_w.shape, lambda i, j: (0, 0)),          # conv weights (bf16)
                pl.BlockSpec(params["w1f"].shape, lambda i, j: (0, 0)),   # fc1 (bn1 folded)
                pl.BlockSpec(params["w3cf"].shape, lambda i, j: (0, 0)),  # fc3 conv part
                pl.BlockSpec(params["w23f"].shape, lambda i, j: (0, 0)),  # fc2 -> fc3 fold
                pl.BlockSpec(params["w4"].shape, lambda i, j: (0, 0)),    # fc4
                pl.BlockSpec(params["bias_pack"].shape, lambda i, j: (0, 0)),
            ],
            out_specs=pl.BlockSpec((tile_b, OUT_LANES), lambda i, j: (i, 0)),
            scratch_shapes=[pltpu.VMEM((tile_b, C), jnp.float32)]),        # running max
        compiler_params=pltpu.CompilerParams(
            dimension_semantics=("parallel", "arbitrary"),
            vmem_limit_bytes=32 * 1024 * 1024),
    )(idx_chunks, g, conv_w, params["w1f"], params["w3cf"], params["w23f"],
      params["w4"], params["bias_pack"])

    fc3_g = packed[:, :H3]
    fc4_g = packed[:, H3:H3 + 2]
    log_probs = packed[:, H3 + 2:H3 + 4]
    return fc3_g, fc4_g, log_probs


# ----------------------------------------------------------------------------
# Parameter construction (mirrors _initialize_weights) + eval-mode folding
# ----------------------------------------------------------------------------
def make_params(key, *, num_units, pre_concat, size_conv_out, neurons_per_layer,
                conv_k, conv_std=0.1, linear_std=0.05, bn_eps=1e-5):
    assert max(size_conv_out, pre_concat) <= 128 and neurons_per_layer + 4 <= OUT_LANES
    ks = jax.random.split(key, 5)

    # stage-1 stand-in: Conv1d(4 -> size_conv_out, kernel=conv_k), bias 0.
    # Rows are tap-major / channel-minor to match the in-kernel patch lane layout.
    # Conv weights are rounded to bf16 (one-hot patches are exact in bf16); the f32
    # reference uses the same rounded values so both paths see identical parameters.
    conv_w_f32 = conv_std * jax.random.normal(ks[0], (CH * conv_k, size_conv_out), jnp.float32)
    conv_w_bf16 = conv_w_f32.astype(jnp.bfloat16)
    conv_w_ref = conv_w_bf16.astype(jnp.float32)
    conv_b = jnp.zeros((size_conv_out,), jnp.float32)

    # Linear weights ~ N(0, linear_std), biases 0 (stored [in, out]).
    w1 = linear_std * jax.random.normal(ks[1], (num_units, pre_concat), jnp.float32)
    b1 = jnp.zeros((pre_concat,), jnp.float32)
    w2 = linear_std * jax.random.normal(ks[2], (pre_concat, 1), jnp.float32)
    b2 = jnp.zeros((1,), jnp.float32)
    w3 = linear_std * jax.random.normal(ks[3], (size_conv_out + 1, neurons_per_layer), jnp.float32)
    b3 = jnp.zeros((neurons_per_layer,), jnp.float32)
    w4 = linear_std * jax.random.normal(ks[4], (neurons_per_layer, 2), jnp.float32)
    b4 = jnp.zeros((2,), jnp.float32)

    # BatchNorm1d eval defaults: gamma=1, beta=0, running_mean=0, running_var=1.
    def bn_fold(n):
        scale = jnp.ones((n,), jnp.float32) / jnp.sqrt(jnp.ones((n,), jnp.float32) + bn_eps)
        shift = jnp.zeros((n,), jnp.float32)
        return scale, shift
    s1, t1 = bn_fold(pre_concat)
    s3, t3 = bn_fold(neurons_per_layer)

    # Fold bn1 into fc1; fold fc2 through fc3's g-column and bn3 into fc3.
    w1f = w1 * s1[None, :]
    b1f = b1 * s1 + t1
    w3c = w3[:size_conv_out, :]
    w3g = w3[size_conv_out:, :]
    w3cf = w3c * s3[None, :]
    w23f = (w2 @ w3g) * s3[None, :]
    b3f = (b2[0] * w3g[0] + b3) * s3 + t3

    def pad_row(v, width=OUT_LANES):
        return jnp.pad(v, (0, width - v.shape[0]))
    bias_pack = jnp.stack([pad_row(conv_b), pad_row(b1f), pad_row(b3f), pad_row(b4)], axis=0)

    folded = dict(conv_w=conv_w_bf16, w1f=w1f, w3cf=w3cf, w23f=w23f, w4=w4, bias_pack=bias_pack)
    raw = dict(conv_w=conv_w_ref, conv_b=conv_b, w1=w1, b1=b1, w2=w2, b2=b2,
               w3=w3, b3=b3, w4=w4, b4=b4, bn_eps=bn_eps)
    return folded, raw


# ----------------------------------------------------------------------------
# Pure-JAX reference (unfolded, PyTorch-order math) for correctness checking
# ----------------------------------------------------------------------------
def reference_forward(s, g, raw, conv_k):
    s_t = jnp.transpose(s, (0, 2, 1)).astype(jnp.float32)       # [B, L, 4]
    B, L, _ = s_t.shape
    P = L - conv_k + 1
    patches = jnp.concatenate([s_t[:, k:k + P, :] for k in range(conv_k)], axis=-1)
    acts = jnp.maximum(jnp.einsum("bpk,kc->bpc", patches, raw["conv_w"]) + raw["conv_b"], 0.0)
    conv_out = jnp.max(acts, axis=1)

    def bn_eval(x):
        return x / jnp.sqrt(1.0 + raw["bn_eps"])                # gamma=1, beta=0, mean=0, var=1

    h1 = jnp.maximum(bn_eval(g @ raw["w1"] + raw["b1"]), 0.0)
    g2 = h1 @ raw["w2"] + raw["b2"]
    x = jnp.concatenate([conv_out, g2], axis=-1)
    h3 = jnp.maximum(bn_eval(x @ raw["w3"] + raw["b3"]), 0.0)
    h4 = h3 @ raw["w4"] + raw["b4"]
    return h3, h4, jax.nn.log_softmax(h4, axis=1)


# ----------------------------------------------------------------------------
if __name__ == "__main__":
    B = 8                     # batch
    L = 39                    # sequence length -> P = 32 conv positions
    CONV_K = 8                # stage-1 stand-in conv kernel width
    NUM_UNITS = 8             # args.num_units (cell-type encoding width)
    PRE_CONCAT = 32           # args.neurons_per_layer_pre_concat
    SIZE_CONV_OUT = 64        # size_conv_out from stage-1
    NEURONS = 32              # args.neurons_per_layer

    key = jax.random.PRNGKey(0)
    k_s, k_g, k_p = jax.random.split(key, 3)

    # one-hot DNA sequence in PyTorch Conv1d layout [B, 4, L]
    bases = jax.random.randint(k_s, (B, L), 0, 4)
    s = jnp.transpose(jax.nn.one_hot(bases, 4, dtype=jnp.float32), (0, 2, 1))

    # direct cell-type encoding [B, NUM_UNITS] (one-hot rows or all-zero = unknown)
    cell = jax.random.randint(k_g, (B,), 0, NUM_UNITS + 1)
    g = jax.nn.one_hot(cell, NUM_UNITS + 1, dtype=jnp.float32)[:, :NUM_UNITS]

    params, raw = make_params(k_p, num_units=NUM_UNITS, pre_concat=PRE_CONCAT,
                              size_conv_out=SIZE_CONV_OUT, neurons_per_layer=NEURONS,
                              conv_k=CONV_K)

    fwd = jax.jit(lambda s, g: net_stage2_forward(s, g, params))
    fc3_g, fc4_g, log_probs = fwd(s, g)
    jax.block_until_ready((fc3_g, fc4_g, log_probs))

    assert fc3_g.shape == (B, NEURONS)
    assert fc4_g.shape == (B, 2)
    assert log_probs.shape == (B, 2)
    # log_softmax rows must (log-)normalise to ~1
    assert bool(jnp.allclose(jnp.sum(jnp.exp(log_probs), axis=1), 1.0, atol=1e-5))

    # check against the pure-JAX unfolded reference
    r3, r4, rlp = reference_forward(s, g, raw, CONV_K)
    assert bool(jnp.allclose(fc3_g, r3, atol=1e-4, rtol=1e-4))
    assert bool(jnp.allclose(fc4_g, r4, atol=1e-4, rtol=1e-4))
    assert bool(jnp.allclose(log_probs, rlp, atol=1e-4, rtol=1e-4))

    print("KERNEL_OK")
</pallas_src>

<mosaic_0001>
module attributes {stable_mosaic.version = 11 : i64} {
  func.func @_fused_kernel(%arg0: i32, %arg1: i32, %arg2: memref<1x8x39xi32, #tpu.memory_space<vmem>>, %arg3: memref<8x8xf32, #tpu.memory_space<vmem>>, %arg4: memref<32x64xbf16, #tpu.memory_space<vmem>>, %arg5: memref<8x32xf32, #tpu.memory_space<vmem>>, %arg6: memref<64x32xf32, #tpu.memory_space<vmem>>, %arg7: memref<32x32xf32, #tpu.memory_space<vmem>>, %arg8: memref<32x2xf32, #tpu.memory_space<vmem>>, %arg9: memref<4x128xf32, #tpu.memory_space<vmem>>, %arg10: memref<8x128xf32, #tpu.memory_space<vmem>>, %arg11: memref<8x64xf32, #tpu.memory_space<vmem>>) attributes {dimension_semantics = [#tpu.dimension_semantics<parallel>, #tpu.dimension_semantics<arbitrary>], iteration_bounds = array<i64: 1, 1>, scalar_prefetch = 0 : i64, scratch_operands = 1 : i64, tpu.core_type = #tpu.core_type<tc>, window_params = [{transform_indices = @transform_0, window_bounds = array<i64: 1, 8, 39>}, {transform_indices = @transform_1, window_bounds = array<i64: 8, 8>}, {pipeline_mode = #tpu.pipeline_mode<synchronous>, transform_indices = @transform_2, window_bounds = array<i64: 32, 64>}, {pipeline_mode = #tpu.pipeline_mode<synchronous>, transform_indices = @transform_3, window_bounds = array<i64: 8, 32>}, {pipeline_mode = #tpu.pipeline_mode<synchronous>, transform_indices = @transform_4, window_bounds = array<i64: 64, 32>}, {pipeline_mode = #tpu.pipeline_mode<synchronous>, transform_indices = @transform_5, window_bounds = array<i64: 32, 32>}, {pipeline_mode = #tpu.pipeline_mode<synchronous>, transform_indices = @transform_6, window_bounds = array<i64: 32, 2>}, {pipeline_mode = #tpu.pipeline_mode<synchronous>, transform_indices = @transform_7, window_bounds = array<i64: 4, 128>}, {transform_indices = @transform_8, window_bounds = array<i64: 8, 128>}]} {
    %c0_i32 = arith.constant 0 : i32
    %0 = arith.cmpi eq, %arg1, %c0_i32 : i32
    %1 = arith.extui %0 : i1 to i32
    %c0_i32_0 = arith.constant 0 : i32
    %2 = arith.cmpi ne, %1, %c0_i32_0 : i32
    scf.if %2 {
      %cst_17 = arith.constant 0xFF800000 : f32
      %96 = vector.broadcast %cst_17 : f32 to vector<8x64xf32>
      %c0_18 = arith.constant 0 : index
      %c0_19 = arith.constant 0 : index
      %97 = vector.load %arg11[%c0_18, %c0_19] : memref<8x64xf32, #tpu.memory_space<vmem>>, vector<8x64xf32>
      tpu.vector_store %arg11[%c0_18, %c0_19], %96 {strides = array<i32>} : memref<8x64xf32, #tpu.memory_space<vmem>>, vector<8x64xf32>,
    } else {
    }
    %c0 = arith.constant 0 : index
    %c0_1 = arith.constant 0 : index
    %c0_2 = arith.constant 0 : index
    %3 = vector.load %arg2[%c0, %c0_1, %c0_2] : memref<1x8x39xi32, #tpu.memory_space<vmem>>, vector<1x8x39xi32>
    %4 = vector.shape_cast %3 : vector<1x8x39xi32> to vector<8x39xi32>
    %5 = tpu.iota {dimensions = array<i32: 2>} : vector<8x32x32xi32>
    %cst = arith.constant 0.000000e+00 : f32
    %6 = vector.broadcast %cst : f32 to vector<8x32x32xf32>
    %7 = vector.extract_strided_slice %4 {offsets = [0, 0], sizes = [8, 32], strides = [1, 1]} : vector<8x39xi32> to vector<8x32xi32>
    %c0_i32_3 = arith.constant 0 : i32
    %8 = vector.broadcast %c0_i32_3 : i32 to vector<8x32xi32>
    %9 = arith.addi %7, %8 : vector<8x32xi32>
    %10 = vector.shape_cast %9 : vector<8x32xi32> to vector<8x32x1xi32>
    %11 = vector.broadcast %10 : vector<8x32x1xi32> to vector<8x32x32xi32>
    %12 = arith.cmpi eq, %5, %11 : vector<8x32x32xi32>
    %13 = arith.extui %12 : vector<8x32x32xi1> to vector<8x32x32xi32>
    %14 = arith.sitofp %13 : vector<8x32x32xi32> to vector<8x32x32xf32>
    %15 = arith.addf %6, %14 : vector<8x32x32xf32>
    %16 = vector.extract_strided_slice %4 {offsets = [0, 1], sizes = [8, 32], strides = [1, 1]} : vector<8x39xi32> to vector<8x32xi32>
    %c4_i32 = arith.constant 4 : i32
    %17 = vector.broadcast %c4_i32 : i32 to vector<8x32xi32>
    %18 = arith.addi %16, %17 : vector<8x32xi32>
    %19 = vector.shape_cast %18 : vector<8x32xi32> to vector<8x32x1xi32>
    %20 = vector.broadcast %19 : vector<8x32x1xi32> to vector<8x32x32xi32>
    %21 = arith.cmpi eq, %5, %20 : vector<8x32x32xi32>
    %22 = arith.extui %21 : vector<8x32x32xi1> to vector<8x32x32xi32>
    %23 = arith.sitofp %22 : vector<8x32x32xi32> to vector<8x32x32xf32>
    %24 = arith.addf %15, %23 : vector<8x32x32xf32>
    %25 = vector.extract_strided_slice %4 {offsets = [0, 2], sizes = [8, 32], strides = [1, 1]} : vector<8x39xi32> to vector<8x32xi32>
    %c8_i32 = arith.constant 8 : i32
    %26 = vector.broadcast %c8_i32 : i32 to vector<8x32xi32>
    %27 = arith.addi %25, %26 : vector<8x32xi32>
    %28 = vector.shape_cast %27 : vector<8x32xi32> to vector<8x32x1xi32>
    %29 = vector.broadcast %28 : vector<8x32x1xi32> to vector<8x32x32xi32>
    %30 = arith.cmpi eq, %5, %29 : vector<8x32x32xi32>
    %31 = arith.extui %30 : vector<8x32x32xi1> to vector<8x32x32xi32>
    %32 = arith.sitofp %31 : vector<8x32x32xi32> to vector<8x32x32xf32>
    %33 = arith.addf %24, %32 : vector<8x32x32xf32>
    %34 = vector.extract_strided_slice %4 {offsets = [0, 3], sizes = [8, 32], strides = [1, 1]} : vector<8x39xi32> to vector<8x32xi32>
    %c12_i32 = arith.constant 12 : i32
    %35 = vector.broadcast %c12_i32 : i32 to vector<8x32xi32>
    %36 = arith.addi %34, %35 : vector<8x32xi32>
    %37 = vector.shape_cast %36 : vector<8x32xi32> to vector<8x32x1xi32>
    %38 = vector.broadcast %37 : vector<8x32x1xi32> to vector<8x32x32xi32>
    %39 = arith.cmpi eq, %5, %38 : vector<8x32x32xi32>
    %40 = arith.extui %39 : vector<8x32x32xi1> to vector<8x32x32xi32>
    %41 = arith.sitofp %40 : vector<8x32x32xi32> to vector<8x32x32xf32>
    %42 = arith.addf %33, %41 : vector<8x32x32xf32>
    %43 = vector.extract_strided_slice %4 {offsets = [0, 4], sizes = [8, 32], strides = [1, 1]} : vector<8x39xi32> to vector<8x32xi32>
    %c16_i32 = arith.constant 16 : i32
    %44 = vector.broadcast %c16_i32 : i32 to vector<8x32xi32>
    %45 = arith.addi %43, %44 : vector<8x32xi32>
    %46 = vector.shape_cast %45 : vector<8x32xi32> to vector<8x32x1xi32>
    %47 = vector.broadcast %46 : vector<8x32x1xi32> to vector<8x32x32xi32>
    %48 = arith.cmpi eq, %5, %47 : vector<8x32x32xi32>
    %49 = arith.extui %48 : vector<8x32x32xi1> to vector<8x32x32xi32>
    %50 = arith.sitofp %49 : vector<8x32x32xi32> to vector<8x32x32xf32>
    %51 = arith.addf %42, %50 : vector<8x32x32xf32>
    %52 = vector.extract_strided_slice %4 {offsets = [0, 5], sizes = [8, 32], strides = [1, 1]} : vector<8x39xi32> to vector<8x32xi32>
    %c20_i32 = arith.constant 20 : i32
    %53 = vector.broadcast %c20_i32 : i32 to vector<8x32xi32>
    %54 = arith.addi %52, %53 : vector<8x32xi32>
    %55 = vector.shape_cast %54 : vector<8x32xi32> to vector<8x32x1xi32>
    %56 = vector.broadcast %55 : vector<8x32x1xi32> to vector<8x32x32xi32>
    %57 = arith.cmpi eq, %5, %56 : vector<8x32x32xi32>
    %58 = arith.extui %57 : vector<8x32x32xi1> to vector<8x32x32xi32>
    %59 = arith.sitofp %58 : vector<8x32x32xi32> to vector<8x32x32xf32>
    %60 = arith.addf %51, %59 : vector<8x32x32xf32>
    %61 = vector.extract_strided_slice %4 {offsets = [0, 6], sizes = [8, 32], strides = [1, 1]} : vector<8x39xi32> to vector<8x32xi32>
    %c24_i32 = arith.constant 24 : i32
    %62 = vector.broadcast %c24_i32 : i32 to vector<8x32xi32>
    %63 = arith.addi %61, %62 : vector<8x32xi32>
    %64 = vector.shape_cast %63 : vector<8x32xi32> to vector<8x32x1xi32>
    %65 = vector.broadcast %64 : vector<8x32x1xi32> to vector<8x32x32xi32>
    %66 = arith.cmpi eq, %5, %65 : vector<8x32x32xi32>
    %67 = arith.extui %66 : vector<8x32x32xi1> to vector<8x32x32xi32>
    %68 = arith.sitofp %67 : vector<8x32x32xi32> to vector<8x32x32xf32>
    %69 = arith.addf %60, %68 : vector<8x32x32xf32>
    %70 = vector.extract_strided_slice %4 {offsets = [0, 7], sizes = [8, 32], strides = [1, 1]} : vector<8x39xi32> to vector<8x32xi32>
    %c28_i32 = arith.constant 28 : i32
    %71 = vector.broadcast %c28_i32 : i32 to vector<8x32xi32>
    %72 = arith.addi %70, %71 : vector<8x32xi32>
    %73 = vector.shape_cast %72 : vector<8x32xi32> to vector<8x32x1xi32>
    %74 = vector.broadcast %73 : vector<8x32x1xi32> to vector<8x32x32xi32>
    %75 = arith.cmpi eq, %5, %74 : vector<8x32x32xi32>
    %76 = arith.extui %75 : vector<8x32x32xi1> to vector<8x32x32xi32>
    %77 = arith.sitofp %76 : vector<8x32x32xi32> to vector<8x32x32xf32>
    %78 = arith.addf %69, %77 : vector<8x32x32xf32>
    %79 = arith.truncf %78 : vector<8x32x32xf32> to vector<8x32x32xbf16>
    %80 = vector.shape_cast %79 : vector<8x32x32xbf16> to vector<256x32xbf16>
    %c0_4 = arith.constant 0 : index
    %c0_5 = arith.constant 0 : index
    %81 = vector.load %arg4[%c0_4, %c0_5] : memref<32x64xbf16, #tpu.memory_space<vmem>>, vector<32x64xbf16>
    %cst_6 = arith.constant dense<0.000000e+00> : vector<256x64xf32>
    %82 = tpu.matmul %80, %81, %cst_6 {dimension_numbers = #tpu.dot_dimension_numbers<[1], [0], [0], [1], [0, 0, 1, 1], [], []>} : vector<256x32xbf16>, vector<32x64xbf16>, vector<256x64xf32> -> vector<256x64xf32>
    %c0_7 = arith.constant 0 : index
    %c0_8 = arith.constant 0 : index
    %83 = vector.load %arg9[%c0_7, %c0_8] : memref<4x128xf32, #tpu.memory_space<vmem>>, vector<1x64xf32>
    %84 = vector.broadcast %83 : vector<1x64xf32> to vector<256x64xf32>
    %85 = arith.addf %82, %84 : vector<256x64xf32>
    %cst_9 = arith.constant 0.000000e+00 : f32
    %86 = vector.broadcast %cst_9 : f32 to vector<256x64xf32>
    %87 = arith.maximumf %85, %86 : vector<256x64xf32>
    %88 = vector.shape_cast %87 : vector<256x64xf32> to vector<8x32x64xf32>
    %c0_10 = arith.constant 0 : index
    %c0_11 = arith.constant 0 : index
    %89 = vector.load %arg11[%c0_10, %c0_11] : memref<8x64xf32, #tpu.memory_space<vmem>>, vector<8x64xf32>
    %cst_12 = arith.constant dense<0xFF800000> : vector<8x64xf32>
    %90 = vector.multi_reduction <maximumf>, %88, %cst_12 [1] : vector<8x32x64xf32> to vector<8x64xf32>
    %91 = arith.maximumf %89, %90 : vector<8x64xf32>
    %c0_13 = arith.constant 0 : index
    %c0_14 = arith.constant 0 : index
    %92 = vector.load %arg11[%c0_13, %c0_14] : memref<8x64xf32, #tpu.memory_space<vmem>>, vector<8x64xf32>
    tpu.vector_store %arg11[%c0_13, %c0_14], %91 {strides = array<i32>} : memref<8x64xf32, #tpu.memory_space<vmem>>, vector<8x64xf32>,
    %c0_i32_15 = arith.constant 0 : i32
    %93 = arith.cmpi eq, %arg1, %c0_i32_15 : i32
    %94 = arith.extui %93 : i1 to i32
    %c0_i32_16 = arith.constant 0 : i32
    %95 = arith.cmpi ne, %94, %c0_i32_16 : i32
    scf.if %95 {
      %c0_17 = arith.constant 0 : index
      %c0_18 = arith.constant 0 : index
      %96 = vector.load %arg11[%c0_17, %c0_18] : memref<8x64xf32, #tpu.memory_space<vmem>>, vector<8x64xf32>
      %c0_19 = arith.constant 0 : index
      %c0_20 = arith.constant 0 : index
      %97 = vector.load %arg3[%c0_19, %c0_20] : memref<8x8xf32, #tpu.memory_space<vmem>>, vector<8x8xf32>
      %c0_21 = arith.constant 0 : index
      %c0_22 = arith.constant 0 : index
      %98 = vector.load %arg5[%c0_21, %c0_22] : memref<8x32xf32, #tpu.memory_space<vmem>>, vector<8x32xf32>
      %cst_23 = arith.constant dense<0.000000e+00> : vector<8x32xf32>
      %99 = tpu.matmul %97, %98, %cst_23 {dimension_numbers = #tpu.dot_dimension_numbers<[1], [0], [0], [1], [0, 0, 1, 1], [], []>} : vector<8x8xf32>, vector<8x32xf32>, vector<8x32xf32> -> vector<8x32xf32>
      %c1 = arith.constant 1 : index
      %c0_24 = arith.constant 0 : index
      %100 = vector.load %arg9[%c1, %c0_24] : memref<4x128xf32, #tpu.memory_space<vmem>>, vector<1x32xf32>
      %101 = vector.broadcast %100 : vector<1x32xf32> to vector<8x32xf32>
      %102 = arith.addf %99, %101 : vector<8x32xf32>
      %cst_25 = arith.constant 0.000000e+00 : f32
      %103 = vector.broadcast %cst_25 : f32 to vector<8x32xf32>
      %104 = arith.maximumf %102, %103 : vector<8x32xf32>
      %c0_26 = arith.constant 0 : index
      %c0_27 = arith.constant 0 : index
      %105 = vector.load %arg6[%c0_26, %c0_27] : memref<64x32xf32, #tpu.memory_space<vmem>>, vector<64x32xf32>
      %cst_28 = arith.constant dense<0.000000e+00> : vector<8x32xf32>
      %106 = tpu.matmul %96, %105, %cst_28 {dimension_numbers = #tpu.dot_dimension_numbers<[1], [0], [0], [1], [0, 0, 1, 1], [], []>} : vector<8x64xf32>, vector<64x32xf32>, vector<8x32xf32> -> vector<8x32xf32>
      %c0_29 = arith.constant 0 : index
      %c0_30 = arith.constant 0 : index
      %107 = vector.load %arg7[%c0_29, %c0_30] : memref<32x32xf32, #tpu.memory_space<vmem>>, vector<32x32xf32>
      %cst_31 = arith.constant dense<0.000000e+00> : vector<8x32xf32>
      %108 = tpu.matmul %104, %107, %cst_31 {dimension_numbers = #tpu.dot_dimension_numbers<[1], [0], [0], [1], [0, 0, 1, 1], [], []>} : vector<8x32xf32>, vector<32x32xf32>, vector<8x32xf32> -> vector<8x32xf32>
      %109 = arith.addf %106, %108 : vector<8x32xf32>
      %c2 = arith.constant 2 : index
      %c0_32 = arith.constant 0 : index
      %110 = vector.load %arg9[%c2, %c0_32] : memref<4x128xf32, #tpu.memory_space<vmem>>, vector<1x32xf32>
      %111 = vector.broadcast %110 : vector<1x32xf32> to vector<8x32xf32>
      %112 = arith.addf %109, %111 : vector<8x32xf32>
      %cst_33 = arith.constant 0.000000e+00 : f32
      %113 = vector.broadcast %cst_33 : f32 to vector<8x32xf32>
      %114 = arith.maximumf %112, %113 : vector<8x32xf32>
      %c0_34 = arith.constant 0 : index
      %c0_35 = arith.constant 0 : index
      %115 = vector.load %arg8[%c0_34, %c0_35] : memref<32x2xf32, #tpu.memory_space<vmem>>, vector<32x2xf32>
      %cst_36 = arith.constant dense<0.000000e+00> : vector<8x2xf32>
      %116 = tpu.matmul %114, %115, %cst_36 {dimension_numbers = #tpu.dot_dimension_numbers<[1], [0], [0], [1], [0, 0, 1, 1], [], []>} : vector<8x32xf32>, vector<32x2xf32>, vector<8x2xf32> -> vector<8x2xf32>
      %c3 = arith.constant 3 : index
      %c0_37 = arith.constant 0 : index
      %117 = vector.load %arg9[%c3, %c0_37] : memref<4x128xf32, #tpu.memory_space<vmem>>, vector<1x2xf32>
      %118 = vector.broadcast %117 : vector<1x2xf32> to vector<8x2xf32>
      %119 = arith.addf %116, %118 : vector<8x2xf32>
      %cst_38 = arith.constant dense<0xFF800000> : vector<8xf32>
      %120 = vector.multi_reduction <maximumf>, %119, %cst_38 [1] : vector<8x2xf32> to vector<8xf32>
      %121 = vector.shape_cast %120 : vector<8xf32> to vector<8x1xf32>
      %122 = vector.broadcast %121 : vector<8x1xf32> to vector<8x2xf32>
      %123 = arith.subf %119, %122 : vector<8x2xf32>
      %124 = math.exp %123 : vector<8x2xf32>
      %cst_39 = arith.constant dense<0.000000e+00> : vector<8xf32>
      %125 = vector.multi_reduction <add>, %124, %cst_39 [1] : vector<8x2xf32> to vector<8xf32>
      %126 = vector.shape_cast %125 : vector<8xf32> to vector<8x1xf32>
      %127 = math.log %126 : vector<8x1xf32>
      %128 = arith.addf %121, %127 : vector<8x1xf32>
      %129 = vector.broadcast %128 : vector<8x1xf32> to vector<8x2xf32>
      %130 = arith.subf %119, %129 : vector<8x2xf32>
      %cst_40 = arith.constant 0.000000e+00 : f32
      %131 = vector.broadcast %cst_40 : f32 to vector<8x92xf32>
      %132 = tpu.concatenate %114, %119, %130, %131 in 1 : vector<8x32xf32>, vector<8x2xf32>, vector<8x2xf32>, vector<8x92xf32> -> vector<8x128xf32>
      %c0_41 = arith.constant 0 : index
      %c0_42 = arith.constant 0 : index
      %133 = vector.load %arg10[%c0_41, %c0_42] : memref<8x128xf32, #tpu.memory_space<vmem>>, vector<8x128xf32>
      tpu.vector_store %arg10[%c0_41, %c0_42], %132 {strides = array<i32>} : memref<8x128xf32, #tpu.memory_space<vmem>>, vector<8x128xf32>,
    } else {
    }
    return
  }
  func.func @transform_0(%arg0: i32, %arg1: i32) -> (i32, i32, i32) {
    %c0_i32 = arith.constant 0 : i32
    %c0_i32_0 = arith.constant 0 : i32
    return %arg1, %arg0, %c0_i32 : i32, i32, i32
  }
  func.func @transform_1(%arg0: i32, %arg1: i32) -> (i32, i32) {
    %c0_i32 = arith.constant 0 : i32
    %c0_i32_0 = arith.constant 0 : i32
    return %arg0, %c0_i32 : i32, i32
  }
  func.func @transform_2(%arg0: i32, %arg1: i32) -> (i32, i32) {
    %c0_i32 = arith.constant 0 : i32
    %c0_i32_0 = arith.constant 0 : i32
    %c0_i32_1 = arith.constant 0 : i32
    return %c0_i32, %c0_i32_0 : i32, i32
  }
  func.func @transform_3(%arg0: i32, %arg1: i32) -> (i32, i32) {
    %c0_i32 = arith.constant 0 : i32
    %c0_i32_0 = arith.constant 0 : i32
    %c0_i32_1 = arith.constant 0 : i32
    return %c0_i32, %c0_i32_0 : i32, i32
  }
  func.func @transform_4(%arg0: i32, %arg1: i32) -> (i32, i32) {
    %c0_i32 = arith.constant 0 : i32
    %c0_i32_0 = arith.constant 0 : i32
    %c0_i32_1 = arith.constant 0 : i32
    return %c0_i32, %c0_i32_0 : i32, i32
  }
  func.func @transform_5(%arg0: i32, %arg1: i32) -> (i32, i32) {
    %c0_i32 = arith.constant 0 : i32
    %c0_i32_0 = arith.constant 0 : i32
    %c0_i32_1 = arith.constant 0 : i32
    return %c0_i32, %c0_i32_0 : i32, i32
  }
  func.func @transform_6(%arg0: i32, %arg1: i32) -> (i32, i32) {
    %c0_i32 = arith.constant 0 : i32
    %c0_i32_0 = arith.constant 0 : i32
    %c0_i32_1 = arith.constant 0 : i32
    return %c0_i32, %c0_i32_0 : i32, i32
  }
  func.func @transform_7(%arg0: i32, %arg1: i32) -> (i32, i32) {
    %c0_i32 = arith.constant 0 : i32
    %c0_i32_0 = arith.constant 0 : i32
    %c0_i32_1 = arith.constant 0 : i32
    return %c0_i32, %c0_i32_0 : i32, i32
  }
  func.func @transform_8(%arg0: i32, %arg1: i32) -> (i32, i32) {
    %c0_i32 = arith.constant 0 : i32
    %c0_i32_0 = arith.constant 0 : i32
    return %arg0, %c0_i32 : i32, i32
  }
}

</mosaic_0001>

<llo_original>
// kernel: _lambda_.1
$region0: #{_lambda_.1}
  #allocation0 [shape = 'u32[]', space=smem, size = 0x4, offset = 0x4, fixed_abs, tag = 'smem constant byte address 0x4 - core index']
  #allocation1 [shape = 'u32[144,128]{1,0:T(1,128)}', space=vmem, size = 0x12000, scoped, tag = 'internal scratch']
  #allocation2 [shape = 'f32[8,64]{1,0:T(8,128)}', space=vmem, size = 0x1000, scoped, tag = 'scratch operand']
  %s0 = inlined_call_operand.vmem [shape: s32[1,8,39], index: 0, kind: input, shape index: {}]
  %s1 = inlined_call_operand.vmem [shape: f32[8,8], index: 1, kind: input, shape index: {}]
  %s2 = inlined_call_operand.vmem [shape: bf16[32,64], index: 2, kind: input, shape index: {}]
  %s3 = inlined_call_operand.vmem [shape: f32[8,32], index: 3, kind: input, shape index: {}]
  %s4 = inlined_call_operand.vmem [shape: f32[64,32], index: 4, kind: input, shape index: {}]
  %s5 = inlined_call_operand.vmem [shape: f32[32,32], index: 5, kind: input, shape index: {}]
  %s6 = inlined_call_operand.vmem [shape: f32[32,2], index: 6, kind: input, shape index: {}]
  %s7 = inlined_call_operand.vmem [shape: f32[4,128], index: 7, kind: input, shape index: {}]
  %s8 = inlined_call_operand.vmem [shape: f32[8,128], index: 8, kind: output, shape index: {}]
  %s9 = sld [smem:[#allocation0]]
  $region50: #{_lambda_.1} parent=0
    _
  %s11 = ssub.s32 1, %s9
  %s12 = scalar_select 0, %s11, %s9
  // Predicated region
  $region2: #{_lambda_.1} parent=0 // pred_check
    _
  $region3: #{_lambda_.1} parent=0 // pred_check_branch
    %14 = sbr.rel (0) target = $region5
  $region4: #{_lambda_.1} parent=0 // pred_region
    _
  $region5: #{_lambda_.1} parent=0 // pred_fallthru
    _
  // Predicated region
  $region6: #{_lambda_.1} parent=0 // pred_check
    _
  $region7: #{_lambda_.1} parent=0 // pred_check_branch
    %16 = sbr.rel (0) target = $region9
  $region8: #{_lambda_.1} parent=0 // pred_region
    _
  $region9: #{_lambda_.1} parent=0 // pred_fallthru
    _
  // Predicated region
  $region10: #{_lambda_.1} parent=0 // pred_check
    _
  $region11: #{_lambda_.1} parent=0 // pred_check_branch
    %18 = sbr.rel (0) target = $region13
  $region12: #{_lambda_.1} parent=0 // pred_region
    _
  $region13: #{_lambda_.1} parent=0 // pred_fallthru
    _
  // Predicated region
  $region14: #{_lambda_.1} parent=0 // pred_check
    _
  $region15: #{_lambda_.1} parent=0 // pred_check_branch
    %20 = sbr.rel (0) target = $region17
  $region16: #{_lambda_.1} parent=0 // pred_region
    _
  $region17: #{_lambda_.1} parent=0 // pred_fallthru
    _
  // Predicated region
  $region18: #{_lambda_.1} parent=0 // pred_check
    _
  $region19: #{_lambda_.1} parent=0 // pred_check_branch
    %22 = sbr.rel (0) target = $region21
  $region20: #{_lambda_.1} parent=0 // pred_region
    _
  $region21: #{_lambda_.1} parent=0 // pred_fallthru
    _
  // Predicated region
  $region22: #{_lambda_.1} parent=0 // pred_check
    _
  $region23: #{_lambda_.1} parent=0 // pred_check_branch
    %24 = sbr.rel (0) target = $region25
  $region24: #{_lambda_.1} parent=0 // pred_region
    _
  $region25: #{_lambda_.1} parent=0 // pred_fallthru
    _
  // Predicated region
  $region26: #{_lambda_.1} parent=0 // pred_check
    _
  $region27: #{_lambda_.1} parent=0 // pred_check_branch
    %26 = sbr.rel (0) target = $region29
  $region28: #{_lambda_.1} parent=0 // pred_region
    _
  $region29: #{_lambda_.1} parent=0 // pred_fallthru
    _
  // Predicated region
  $region30: #{_lambda_.1} parent=0 // pred_check
    _
  $region31: #{_lambda_.1} parent=0 // pred_check_branch
    %28 = sbr.rel (0) target = $region33
  $region32: #{_lambda_.1} parent=0 // pred_region
    _
  $region33: #{_lambda_.1} parent=0 // pred_fallthru
    _
  %p30 = scmp.eq.s32.totalorder 0, 0
  // Predicated region
  $region34: #{_lambda_.1} parent=0 // pred_check
    %p31 = pneg %p30
  $region35: #{_lambda_.1} parent=0 // pred_check_branch
    %33 = sbr.rel (%p31) target = $region37
  $region36: #{_lambda_.1} parent=0 // pred_region
    %vm34 = vcmask 523264
    %35 = vst.msk [vmem:[#allocation2] sm:$0xff] %vm34, -inf
  $region37: #{_lambda_.1} parent=0 // pred_fallthru
    _
  %v36 = vld [vmem:[%s0] sm:$0xff]
  %v37 = vlaneseq
  %v38 = vand.u32 %v37, 127
  %v39 = vlaneseq
  %v40 = vshrl.u32 %v39, 7
  %v41 = vsub.s32 0, %v40
  %v42 = vrot.slane %v36, %v41
  %44 = vbcast.lane.b32.xlu0 %v42, 256
  %v45 = vpop.permute.xlu0 %44
  %s47 = sor.u32 256, 8
  %48 = vbcast.lane.b32.xlu0 %v42, %s47
  %v49 = vpop.permute.xlu0 %48
  %s51 = sor.u32 256, 16
  %52 = vbcast.lane.b32.xlu0 %v42, %s51
  %v53 = vpop.permute.xlu0 %52
  %s55 = sor.u32 256, 24
  %56 = vbcast.lane.b32.xlu0 %v42, %s55
  %v57 = vpop.permute.xlu0 %56
  %v58 = vlaneseq
  %v59 = vshrl.u32 %v58, 7
  %v60 = vsub.s32 1, %v59
  %v61 = vrot.slane %v36, %v60
  %63 = vbcast.lane.b32.xlu0 %v61, 256
  %v64 = vpop.permute.xlu0 %63
  %s66 = sor.u32 256, 8
  %67 = vbcast.lane.b32.xlu0 %v61, %s66
  %v68 = vpop.permute.xlu0 %67
  %s70 = sor.u32 256, 16
  %71 = vbcast.lane.b32.xlu0 %v61, %s70
  %v72 = vpop.permute.xlu0 %71
  %s74 = sor.u32 256, 24
  %75 = vbcast.lane.b32.xlu0 %v61, %s74
  %v76 = vpop.permute.xlu0 %75
  %v77 = vlaneseq
  %v78 = vshrl.u32 %v77, 7
  %v79 = vsub.s32 2, %v78
  %v80 = vrot.slane %v36, %v79
  %82 = vbcast.lane.b32.xlu0 %v80, 256
  %v83 = vpop.permute.xlu0 %82
  %s85 = sor.u32 256, 8
  %86 = vbcast.lane.b32.xlu0 %v80, %s85
  %v87 = vpop.permute.xlu0 %86
  %s89 = sor.u32 256, 16
  %90 = vbcast.lane.b32.xlu0 %v80, %s89
  %v91 = vpop.permute.xlu0 %90
  %s93 = sor.u32 256, 24
  %94 = vbcast.lane.b32.xlu0 %v80, %s93
  %v95 = vpop.permute.xlu0 %94
  %v96 = vlaneseq
  %v97 = vshrl.u32 %v96, 7
  %v98 = vsub.s32 3, %v97
  %v99 = vrot.slane %v36, %v98
  %101 = vbcast.lane.b32.xlu0 %v99, 256
  %v102 = vpop.permute.xlu0 %101
  %s104 = sor.u32 256, 8
  %105 = vbcast.lane.b32.xlu0 %v99, %s104
  %v106 = vpop.permute.xlu0 %105
  %s108 = sor.u32 256, 16
  %109 = vbcast.lane.b32.xlu0 %v99, %s108
  %v110 = vpop.permute.xlu0 %109
  %s112 = sor.u32 256, 24
  %113 = vbcast.lane.b32.xlu0 %v99, %s112
  %v114 = vpop.permute.xlu0 %113
  %v115 = vlaneseq
  %v116 = vshrl.u32 %v115, 7
  %v117 = vsub.s32 4, %v116
  %v118 = vrot.slane %v36, %v117
  %120 = vbcast.lane.b32.xlu0 %v118, 256
  %v121 = vpop.permute.xlu0 %120
  %s123 = sor.u32 256, 8
  %124 = vbcast.lane.b32.xlu0 %v118, %s123
  %v125 = vpop.permute.xlu0 %124
  %s127 = sor.u32 256, 16
  %128 = vbcast.lane.b32.xlu0 %v118, %s127
  %v129 = vpop.permute.xlu0 %128
  %s131 = sor.u32 256, 24
  %132 = vbcast.lane.b32.xlu0 %v118, %s131
  %v133 = vpop.permute.xlu0 %132
  %v134 = vlaneseq
  %v135 = vshrl.u32 %v134, 7
  %v136 = vsub.s32 5, %v135
  %v137 = vrot.slane %v36, %v136
  %139 = vbcast.lane.b32.xlu0 %v137, 256
  %v140 = vpop.permute.xlu0 %139
  %s142 = sor.u32 256, 8
  %143 = vbcast.lane.b32.xlu0 %v137, %s142
  %v144 = vpop.permute.xlu0 %143
  %s146 = sor.u32 256, 16
  %147 = vbcast.lane.b32.xlu0 %v137, %s146
  %v148 = vpop.permute.xlu0 %147
  %s150 = sor.u32 256, 24
  %151 = vbcast.lane.b32.xlu0 %v137, %s150
  %v152 = vpop.permute.xlu0 %151
  %v153 = vlaneseq
  %v154 = vshrl.u32 %v153, 7
  %v155 = vsub.s32 6, %v154
  %v156 = vrot.slane %v36, %v155
  %158 = vbcast.lane.b32.xlu0 %v156, 256
  %v159 = vpop.permute.xlu0 %158
  %s161 = sor.u32 256, 8
  %162 = vbcast.lane.b32.xlu0 %v156, %s161
  %v163 = vpop.permute.xlu0 %162
  %s165 = sor.u32 256, 16
  %166 = vbcast.lane.b32.xlu0 %v156, %s165
  %v167 = vpop.permute.xlu0 %166
  %s169 = sor.u32 256, 24
  %170 = vbcast.lane.b32.xlu0 %v156, %s169
  %v171 = vpop.permute.xlu0 %170
  %v172 = vlaneseq
  %v173 = vshrl.u32 %v172, 7
  %v174 = vsub.s32 7, %v173
  %v175 = vrot.slane %v36, %v174
  %177 = vbcast.lane.b32.xlu0 %v175, 256
  %v178 = vpop.permute.xlu0 %177
  %s180 = sor.u32 256, 8
  %181 = vbcast.lane.b32.xlu0 %v175, %s180
  %v182 = vpop.permute.xlu0 %181
  %s184 = sor.u32 256, 16
  %185 = vbcast.lane.b32.xlu0 %v175, %s184
  %v186 = vpop.permute.xlu0 %185
  %s188 = sor.u32 256, 24
  %189 = vbcast.lane.b32.xlu0 %v175, %s188
  %v190 = vpop.permute.xlu0 %189
  %vm191 = vcmp.eq.s32.totalorder %v38, %v45
  %vm192 = vcmp.eq.s32.totalorder %v38, %v49
  %vm193 = vcmp.eq.s32.totalorder %v38, %v53
  %vm194 = vcmp.eq.s32.totalorder %v38, %v57
  %vm195 = vcmp.eq.s32.totalorder %v38, %v64
  %vm196 = vcmp.eq.s32.totalorder %v38, %v68
  %vm197 = vcmp.eq.s32.totalorder %v38, %v72
  %vm198 = vcmp.eq.s32.totalorder %v38, %v76
  %vm199 = vcmp.eq.s32.totalorder %v38, %v83
  %vm200 = vcmp.eq.s32.totalorder %v38, %v87
  %vm201 = vcmp.eq.s32.totalorder %v38, %v91
  %vm202 = vcmp.eq.s32.totalorder %v38, %v95
  %vm203 = vcmp.eq.s32.totalorder %v38, %v102
  %vm204 = vcmp.eq.s32.totalorder %v38, %v106
  %vm205 = vcmp.eq.s32.totalorder %v38, %v110
  %vm206 = vcmp.eq.s32.totalorder %v38, %v114
  %vm207 = vcmp.eq.s32.totalorder %v38, %v121
  %vm208 = vcmp.eq.s32.totalorder %v38, %v125
  %vm209 = vcmp.eq.s32.totalorder %v38, %v129
  %vm210 = vcmp.eq.s32.totalorder %v38, %v133
  %vm211 = vcmp.eq.s32.totalorder %v38, %v140
  %vm212 = vcmp.eq.s32.totalorder %v38, %v144
  %vm213 = vcmp.eq.s32.totalorder %v38, %v148
  %vm214 = vcmp.eq.s32.totalorder %v38, %v152
  %vm215 = vcmp.eq.s32.totalorder %v38, %v159
  %vm216 = vcmp.eq.s32.totalorder %v38, %v163
  %vm217 = vcmp.eq.s32.totalorder %v38, %v167
  %vm218 = vcmp.eq.s32.totalorder %v38, %v171
  %vm219 = vcmp.eq.s32.totalorder %v38, %v178
  %vm220 = vcmp.eq.s32.totalorder %v38, %v182
  %vm221 = vcmp.eq.s32.totalorder %v38, %v186
  %vm222 = vcmp.eq.s32.totalorder %v38, %v190
  %v223 = vsel %vm191, 1, 0
  %v224 = vsel %vm192, 1, 0
  %v225 = vsel %vm193, 1, 0
  %v226 = vsel %vm194, 1, 0
  %v227 = vsel %vm195, 1, 0
  %v228 = vsel %vm196, 1, 0
  %v229 = vsel %vm197, 1, 0
  %v230 = vsel %vm198, 1, 0
  %v231 = vsel %vm199, 1, 0
  %v232 = vsel %vm200, 1, 0
  %v233 = vsel %vm201, 1, 0
  %v234 = vsel %vm202, 1, 0
  %v235 = vsel %vm203, 1, 0
  %v236 = vsel %vm204, 1, 0
  %v237 = vsel %vm205, 1, 0
  %v238 = vsel %vm206, 1, 0
  %v239 = vsel %vm207, 1, 0
  %v240 = vsel %vm208, 1, 0
  %v241 = vsel %vm209, 1, 0
  %v242 = vsel %vm210, 1, 0
  %v243 = vsel %vm211, 1, 0
  %v244 = vsel %vm212, 1, 0
  %v245 = vsel %vm213, 1, 0
  %v246 = vsel %vm214, 1, 0
  %v247 = vsel %vm215, 1, 0
  %v248 = vsel %vm216, 1, 0
  %v249 = vsel %vm217, 1, 0
  %v250 = vsel %vm218, 1, 0
  %v251 = vsel %vm219, 1, 0
  %v252 = vsel %vm220, 1, 0
  %v253 = vsel %vm221, 1, 0
  %v254 = vsel %vm222, 1, 0
  %v255 = vcvt.s32.f32 %v223
  %v256 = vcvt.s32.f32 %v224
  %v257 = vcvt.s32.f32 %v225
  %v258 = vcvt.s32.f32 %v226
  %v259 = vcvt.s32.f32 %v227
  %v260 = vcvt.s32.f32 %v228
  %v261 = vcvt.s32.f32 %v229
  %v262 = vcvt.s32.f32 %v230
  %v263 = vcvt.s32.f32 %v231
  %v264 = vcvt.s32.f32 %v232
  %v265 = vcvt.s32.f32 %v233
  %v266 = vcvt.s32.f32 %v234
  %v267 = vcvt.s32.f32 %v235
  %v268 = vcvt.s32.f32 %v236
  %v269 = vcvt.s32.f32 %v237
  %v270 = vcvt.s32.f32 %v238
  %v271 = vcvt.s32.f32 %v239
  %v272 = vcvt.s32.f32 %v240
  %v273 = vcvt.s32.f32 %v241
  %v274 = vcvt.s32.f32 %v242
  %v275 = vcvt.s32.f32 %v243
  %v276 = vcvt.s32.f32 %v244
  %v277 = vcvt.s32.f32 %v245
  %v278 = vcvt.s32.f32 %v246
  %v279 = vcvt.s32.f32 %v247
  %v280 = vcvt.s32.f32 %v248
  %v281 = vcvt.s32.f32 %v249
  %v282 = vcvt.s32.f32 %v250
  %v283 = vcvt.s32.f32 %v251
  %v284 = vcvt.s32.f32 %v252
  %v285 = vcvt.s32.f32 %v253
  %v286 = vcvt.s32.f32 %v254
  %v287 = vadd.f32 %v255, 0.0
  %v288 = vadd.f32 %v256, 0.0
  %v289 = vadd.f32 %v257, 0.0
  %v290 = vadd.f32 %v258, 0.0
  %v291 = vadd.f32 %v259, 0.0
  %v292 = vadd.f32 %v260, 0.0
  %v293 = vadd.f32 %v261, 0.0
  %v294 = vadd.f32 %v262, 0.0
  %v295 = vadd.f32 %v263, 0.0
  %v296 = vadd.f32 %v264, 0.0
  %v297 = vadd.f32 %v265, 0.0
  %v298 = vadd.f32 %v266, 0.0
  %v299 = vadd.f32 %v267, 0.0
  %v300 = vadd.f32 %v268, 0.0
  %v301 = vadd.f32 %v269, 0.0
  %v302 = vadd.f32 %v270, 0.0
  %v303 = vadd.f32 %v271, 0.0
  %v304 = vadd.f32 %v272, 0.0
  %v305 = vadd.f32 %v273, 0.0
  %v306 = vadd.f32 %v274, 0.0
  %v307 = vadd.f32 %v275, 0.0
  %v308 = vadd.f32 %v276, 0.0
  %v309 = vadd.f32 %v277, 0.0
  %v310 = vadd.f32 %v278, 0.0
  %v311 = vadd.f32 %v279, 0.0
  %v312 = vadd.f32 %v280, 0.0
  %v313 = vadd.f32 %v281, 0.0
  %v314 = vadd.f32 %v282, 0.0
  %v315 = vadd.f32 %v283, 0.0
  %v316 = vadd.f32 %v284, 0.0
  %v317 = vadd.f32 %v285, 0.0
  %v318 = vadd.f32 %v286, 0.0
  %v319 = vadd.s32 %v36, 4
  %v320 = vlaneseq
  %v321 = vshrl.u32 %v320, 7
  %v322 = vsub.s32 0, %v321
  %v323 = vrot.slane %v319, %v322
  %s325 = sor.u32 256, 1
  %326 = vbcast.lane.b32.xlu0 %v323, %s325
  %v327 = vpop.permute.xlu0 %326
  %s329 = sor.u32 256, 9
  %330 = vbcast.lane.b32.xlu0 %v323, %s329
  %v331 = vpop.permute.xlu0 %330
  %s333 = sor.u32 256, 17
  %334 = vbcast.lane.b32.xlu0 %v323, %s333
  %v335 = vpop.permute.xlu0 %334
  %s337 = sor.u32 256, 25
  %338 = vbcast.lane.b32.xlu0 %v323, %s337
  %v339 = vpop.permute.xlu0 %338
  %v340 = vlaneseq
  %v341 = vshrl.u32 %v340, 7
  %v342 = vsub.s32 1, %v341
  %v343 = vrot.slane %v319, %v342
  %s345 = sor.u32 256, 1
  %346 = vbcast.lane.b32.xlu0 %v343, %s345
  %v347 = vpop.permute.xlu0 %346
  %s349 = sor.u32 256, 9
  %350 = vbcast.lane.b32.xlu0 %v343, %s349
  %v351 = vpop.permute.xlu0 %350
  %s353 = sor.u32 256, 17
  %354 = vbcast.lane.b32.xlu0 %v343, %s353
  %v355 = vpop.permute.xlu0 %354
  %s357 = sor.u32 256, 25
  %358 = vbcast.lane.b32.xlu0 %v343, %s357
  %v359 = vpop.permute.xlu0 %358
  %v360 = vlaneseq
  %v361 = vshrl.u32 %v360, 7
  %v362 = vsub.s32 2, %v361
  %v363 = vrot.slane %v319, %v362
  %s365 = sor.u32 256, 1
  %366 = vbcast.lane.b32.xlu0 %v363, %s365
  %v367 = vpop.permute.xlu0 %366
  %s369 = sor.u32 256, 9
  %370 = vbcast.lane.b32.xlu0 %v363, %s369
  %v371 = vpop.permute.xlu0 %370
  %s373 = sor.u32 256, 17
  %374 = vbcast.lane.b32.xlu0 %v363, %s373
  %v375 = vpop.permute.xlu0 %374
  %s377 = sor.u32 256, 25
  %378 = vbcast.lane.b32.xlu0 %v363, %s377
  %v379 = vpop.permute.xlu0 %378
  %v380 = vlaneseq
  %v381 = vshrl.u32 %v380, 7
  %v382 = vsub.s32 3, %v381
  %v383 = vrot.slane %v319, %v382
  %s385 = sor.u32 256, 1
  %386 = vbcast.lane.b32.xlu0 %v383, %s385
  %v387 = vpop.permute.xlu0 %386
  %s389 = sor.u32 256, 9
  %390 = vbcast.lane.b32.xlu0 %v383, %s389
  %v391 = vpop.permute.xlu0 %390
  %s393 = sor.u32 256, 17
  %394 = vbcast.lane.b32.xlu0 %v383, %s393
  %v395 = vpop.permute.xlu0 %394
  %s397 = sor.u32 256, 25
  %398 = vbcast.lane.b32.xlu0 %v383, %s397
  %v399 = vpop.permute.xlu0 %398
  %v400 = vlaneseq
  %v401 = vshrl.u32 %v400, 7
  %v402 = vsub.s32 4, %v401
  %v403 = vrot.slane %v319, %v402
  %s405 = sor.u32 256, 1
  %406 = vbcast.lane.b32.xlu0 %v403, %s405
  %v407 = vpop.permute.xlu0 %406
  %s409 = sor.u32 256, 9
  %410 = vbcast.lane.b32.xlu0 %v403, %s409
  %v411 = vpop.permute.xlu0 %410
  %s413 = sor.u32 256, 17
  %414 = vbcast.lane.b32.xlu0 %v403, %s413
  %v415 = vpop.permute.xlu0 %414
  %s417 = sor.u32 256, 25
  %418 = vbcast.lane.b32.xlu0 %v403, %s417
  %v419 = vpop.permute.xlu0 %418
  %v420 = vlaneseq
  %v421 = vshrl.u32 %v420, 7
  %v422 = vsub.s32 5, %v421
  %v423 = vrot.slane %v319, %v422
  %s425 = sor.u32 256, 1
  %426 = vbcast.lane.b32.xlu0 %v423, %s425
  %v427 = vpop.permute.xlu0 %426
  %s429 = sor.u32 256, 9
  %430 = vbcast.lane.b32.xlu0 %v423, %s429
  %v431 = vpop.permute.xlu0 %430
  %s433 = sor.u32 256, 17
  %434 = vbcast.lane.b32.xlu0 %v423, %s433
  %v435 = vpop.permute.xlu0 %434
  %s437 = sor.u32 256, 25
  %438 = vbcast.lane.b32.xlu0 %v423, %s437
  %v439 = vpop.permute.xlu0 %438
  %v440 = vlaneseq
  %v441 = vshrl.u32 %v440, 7
  %v442 = vsub.s32 6, %v441
  %v443 = vrot.slane %v319, %v442
  %s445 = sor.u32 256, 1
  %446 = vbcast.lane.b32.xlu0 %v443, %s445
  %v447 = vpop.permute.xlu0 %446
  %s449 = sor.u32 256, 9
  %450 = vbcast.lane.b32.xlu0 %v443, %s449
  %v451 = vpop.permute.xlu0 %450
  %s453 = sor.u32 256, 17
  %454 = vbcast.lane.b32.xlu0 %v443, %s453
  %v455 = vpop.permute.xlu0 %454
  %s457 = sor.u32 256, 25
  %458 = vbcast.lane.b32.xlu0 %v443, %s457
  %v459 = vpop.permute.xlu0 %458
  %v460 = vlaneseq
  %v461 = vshrl.u32 %v460, 7
  %v462 = vsub.s32 7, %v461
  %v463 = vrot.slane %v319, %v462
  %s465 = sor.u32 256, 1
  %466 = vbcast.lane.b32.xlu0 %v463, %s465
  %v467 = vpop.permute.xlu0 %466
  %s469 = sor.u32 256, 9
  %470 = vbcast.lane.b32.xlu0 %v463, %s469
  %v471 = vpop.permute.xlu0 %470
  %s473 = sor.u32 256, 17
  %474 = vbcast.lane.b32.xlu0 %v463, %s473
  %v475 = vpop.permute.xlu0 %474
  %s477 = sor.u32 256, 25
  %478 = vbcast.lane.b32.xlu0 %v463, %s477
  %v479 = vpop.permute.xlu0 %478
  %vm480 = vcmp.eq.s32.totalorder %v38, %v327
  %vm481 = vcmp.eq.s32.totalorder %v38, %v331
  %vm482 = vcmp.eq.s32.totalorder %v38, %v335
  %vm483 = vcmp.eq.s32.totalorder %v38, %v339
  %vm484 = vcmp.eq.s32.totalorder %v38, %v347
  %vm485 = vcmp.eq.s32.totalorder %v38, %v351
  %vm486 = vcmp.eq.s32.totalorder %v38, %v355
  %vm487 = vcmp.eq.s32.totalorder %v38, %v359
  %vm488 = vcmp.eq.s32.totalorder %v38, %v367
  %vm489 = vcmp.eq.s32.totalorder %v38, %v371
  %vm490 = vcmp.eq.s32.totalorder %v38, %v375
  %vm491 = vcmp.eq.s32.totalorder %v38, %v379
  %vm492 = vcmp.eq.s32.totalorder %v38, %v387
  %vm493 = vcmp.eq.s32.totalorder %v38, %v391
  %vm494 = vcmp.eq.s32.totalorder %v38, %v395
  %vm495 = vcmp.eq.s32.totalorder %v38, %v399
  %vm496 = vcmp.eq.s32.totalorder %v38, %v407
  %vm497 = vcmp.eq.s32.totalorder %v38, %v411
  %vm498 = vcmp.eq.s32.totalorder %v38, %v415
  %vm499 = vcmp.eq.s32.totalorder %v38, %v419
  %vm500 = vcmp.eq.s32.totalorder %v38, %v427
  %vm501 = vcmp.eq.s32.totalorder %v38, %v431
  %vm502 = vcmp.eq.s32.totalorder %v38, %v435
  %vm503 = vcmp.eq.s32.totalorder %v38, %v439
  %vm504 = vcmp.eq.s32.totalorder %v38, %v447
  %vm505 = vcmp.eq.s32.totalorder %v38, %v451
  %vm506 = vcmp.eq.s32.totalorder %v38, %v455
  %vm507 = vcmp.eq.s32.totalorder %v38, %v459
  %vm508 = vcmp.eq.s32.totalorder %v38, %v467
  %vm509 = vcmp.eq.s32.totalorder %v38, %v471
  %vm510 = vcmp.eq.s32.totalorder %v38, %v475
  %vm511 = vcmp.eq.s32.totalorder %v38, %v479
  %v512 = vsel %vm480, 1, 0
  %v513 = vsel %vm481, 1, 0
  %v514 = vsel %vm482, 1, 0
  %v515 = vsel %vm483, 1, 0
  %v516 = vsel %vm484, 1, 0
  %v517 = vsel %vm485, 1, 0
  %v518 = vsel %vm486, 1, 0
  %v519 = vsel %vm487, 1, 0
  %v520 = vsel %vm488, 1, 0
  %v521 = vsel %vm489, 1, 0
  %v522 = vsel %vm490, 1, 0
  %v523 = vsel %vm491, 1, 0
  %v524 = vsel %vm492, 1, 0
  %v525 = vsel %vm493, 1, 0
  %v526 = vsel %vm494, 1, 0
  %v527 = vsel %vm495, 1, 0
  %v528 = vsel %vm496, 1, 0
  %v529 = vsel %vm497, 1, 0
  %v530 = vsel %vm498, 1, 0
  %v531 = vsel %vm499, 1, 0
  %v532 = vsel %vm500, 1, 0
  %v533 = vsel %vm501, 1, 0
  %v534 = vsel %vm502, 1, 0
  %v535 = vsel %vm503, 1, 0
  %v536 = vsel %vm504, 1, 0
  %v537 = vsel %vm505, 1, 0
  %v538 = vsel %vm506, 1, 0
  %v539 = vsel %vm507, 1, 0
  %v540 = vsel %vm508, 1, 0
  %v541 = vsel %vm509, 1, 0
  %v542 = vsel %vm510, 1, 0
  %v543 = vsel %vm511, 1, 0
  %v544 = vcvt.s32.f32 %v512
  %v545 = vcvt.s32.f32 %v513
  %v546 = vcvt.s32.f32 %v514
  %v547 = vcvt.s32.f32 %v515
  %v548 = vcvt.s32.f32 %v516
  %v549 = vcvt.s32.f32 %v517
  %v550 = vcvt.s32.f32 %v518
  %v551 = vcvt.s32.f32 %v519
  %v552 = vcvt.s32.f32 %v520
  %v553 = vcvt.s32.f32 %v521
  %v554 = vcvt.s32.f32 %v522
  %v555 = vcvt.s32.f32 %v523
  %v556 = vcvt.s32.f32 %v524
  %v557 = vcvt.s32.f32 %v525
  %v558 = vcvt.s32.f32 %v526
  %v559 = vcvt.s32.f32 %v527
  %v560 = vcvt.s32.f32 %v528
  %v561 = vcvt.s32.f32 %v529
  %v562 = vcvt.s32.f32 %v530
  %v563 = vcvt.s32.f32 %v531
  %v564 = vcvt.s32.f32 %v532
  %v565 = vcvt.s32.f32 %v533
  %v566 = vcvt.s32.f32 %v534
  %v567 = vcvt.s32.f32 %v535
  %v568 = vcvt.s32.f32 %v536
  %v569 = vcvt.s32.f32 %v537
  %v570 = vcvt.s32.f32 %v538
  %v571 = vcvt.s32.f32 %v539
  %v572 = vcvt.s32.f32 %v540
  %v573 = vcvt.s32.f32 %v541
  %v574 = vcvt.s32.f32 %v542
  %v575 = vcvt.s32.f32 %v543
  %v576 = vadd.f32 %v287, %v544
  %v577 = vadd.f32 %v288, %v545
  %v578 = vadd.f32 %v289, %v546
  %v579 = vadd.f32 %v290, %v547
  %v580 = vadd.f32 %v291, %v548
  %v581 = vadd.f32 %v292, %v549
  %v582 = vadd.f32 %v293, %v550
  %v583 = vadd.f32 %v294, %v551
  %v584 = vadd.f32 %v295, %v552
  %v585 = vadd.f32 %v296, %v553
  %v586 = vadd.f32 %v297, %v554
  %v587 = vadd.f32 %v298, %v555
  %v588 = vadd.f32 %v299, %v556
  %v589 = vadd.f32 %v300, %v557
  %v590 = vadd.f32 %v301, %v558
  %v591 = vadd.f32 %v302, %v559
  %v592 = vadd.f32 %v303, %v560
  %v593 = vadd.f32 %v304, %v561
  %v594 = vadd.f32 %v305, %v562
  %v595 = vadd.f32 %v306, %v563
  %v596 = vadd.f32 %v307, %v564
  %v597 = vadd.f32 %v308, %v565
  %v598 = vadd.f32 %v309, %v566
  %v599 = vadd.f32 %v310, %v567
  %v600 = vadd.f32 %v311, %v568
  %v601 = vadd.f32 %v312, %v569
  %v602 = vadd.f32 %v313, %v570
  %v603 = vadd.f32 %v314, %v571
  %v604 = vadd.f32 %v315, %v572
  %v605 = vadd.f32 %v316, %v573
  %v606 = vadd.f32 %v317, %v574
  %v607 = vadd.f32 %v318, %v575
  %v608 = vadd.s32 %v36, 8
  %v609 = vlaneseq
  %v610 = vshrl.u32 %v609, 7
  %v611 = vsub.s32 0, %v610
  %v612 = vrot.slane %v608, %v611
  %s614 = sor.u32 256, 2
  %615 = vbcast.lane.b32.xlu0 %v612, %s614
  %v616 = vpop.permute.xlu0 %615
  %s618 = sor.u32 256, 10
  %619 = vbcast.lane.b32.xlu0 %v612, %s618
  %v620 = vpop.permute.xlu0 %619
  %s622 = sor.u32 256, 18
  %623 = vbcast.lane.b32.xlu0 %v612, %s622
  %v624 = vpop.permute.xlu0 %623
  %s626 = sor.u32 256, 26
  %627 = vbcast.lane.b32.xlu0 %v612, %s626
  %v628 = vpop.permute.xlu0 %627
  %v629 = vlaneseq
  %v630 = vshrl.u32 %v629, 7
  %v631 = vsub.s32 1, %v630
  %v632 = vrot.slane %v608, %v631
  %s634 = sor.u32 256, 2
  %635 = vbcast.lane.b32.xlu0 %v632, %s634
  %v636 = vpop.permute.xlu0 %635
  %s638 = sor.u32 256, 10
  %639 = vbcast.lane.b32.xlu0 %v632, %s638
  %v640 = vpop.permute.xlu0 %639
  %s642 = sor.u32 256, 18
  %643 = vbcast.lane.b32.xlu0 %v632, %s642
  %v644 = vpop.permute.xlu0 %643
  %s646 = sor.u32 256, 26
  %647 = vbcast.lane.b32.xlu0 %v632, %s646
  %v648 = vpop.permute.xlu0 %647
  %v649 = vlaneseq
  %v650 = vshrl.u32 %v649, 7
  %v651 = vsub.s32 2, %v650
  %v652 = vrot.slane %v608, %v651
  %s654 = sor.u32 256, 2
  %655 = vbcast.lane.b32.xlu0 %v652, %s654
  %v656 = vpop.permute.xlu0 %655
  %s658 = sor.u32 256, 10
  %659 = vbcast.lane.b32.xlu0 %v652, %s658
  %v660 = vpop.permute.xlu0 %659
  %s662 = sor.u32 256, 18
  %663 = vbcast.lane.b32.xlu0 %v652, %s662
  %v664 = vpop.permute.xlu0 %663
  %s666 = sor.u32 256, 26
  %667 = vbcast.lane.b32.xlu0 %v652, %s666
  %v668 = vpop.permute.xlu0 %667
  %v669 = vlaneseq
  %v670 = vshrl.u32 %v669, 7
  %v671 = vsub.s32 3, %v670
  %v672 = vrot.slane %v608, %v671
  %s674 = sor.u32 256, 2
  %675 = vbcast.lane.b32.xlu0 %v672, %s674
  %v676 = vpop.permute.xlu0 %675
  %s678 = sor.u32 256, 10
  %679 = vbcast.lane.b32.xlu0 %v672, %s678
  %v680 = vpop.permute.xlu0 %679
  %s682 = sor.u32 256, 18
  %683 = vbcast.lane.b32.xlu0 %v672, %s682
  %v684 = vpop.permute.xlu0 %683
  %s686 = sor.u32 256, 26
  %687 = vbcast.lane.b32.xlu0 %v672, %s686
  %v688 = vpop.permute.xlu0 %687
  %v689 = vlaneseq
  %v690 = vshrl.u32 %v689, 7
  %v691 = vsub.s32 4, %v690
  %v692 = vrot.slane %v608, %v691
  %s694 = sor.u32 256, 2
  %695 = vbcast.lane.b32.xlu0 %v692, %s694
  %v696 = vpop.permute.xlu0 %695
  %s698 = sor.u32 256, 10
  %699 = vbcast.lane.b32.xlu0 %v692, %s698
  %v700 = vpop.permute.xlu0 %699
  %s702 = sor.u32 256, 18
  %703 = vbcast.lane.b32.xlu0 %v692, %s702
  %v704 = vpop.permute.xlu0 %703
  %s706 = sor.u32 256, 26
  %707 = vbcast.lane.b32.xlu0 %v692, %s706
  %v708 = vpop.permute.xlu0 %707
  %v709 = vlaneseq
  %v710 = vshrl.u32 %v709, 7
  %v711 = vsub.s32 5, %v710
  %v712 = vrot.slane %v608, %v711
  %s714 = sor.u32 256, 2
  %715 = vbcast.lane.b32.xlu0 %v712, %s714
  %v716 = vpop.permute.xlu0 %715
  %s718 = sor.u32 256, 10
  %719 = vbcast.lane.b32.xlu0 %v712, %s718
  %v720 = vpop.permute.xlu0 %719
  %s722 = sor.u32 256, 18
  %723 = vbcast.lane.b32.xlu0 %v712, %s722
  %v724 = vpop.permute.xlu0 %723
  %s726 = sor.u32 256, 26
  %727 = vbcast.lane.b32.xlu0 %v712, %s726
  %v728 = vpop.permute.xlu0 %727
  %v729 = vlaneseq
  %v730 = vshrl.u32 %v729, 7
  %v731 = vsub.s32 6, %v730
  %v732 = vrot.slane %v608, %v731
  %s734 = sor.u32 256, 2
  %735 = vbcast.lane.b32.xlu0 %v732, %s734
  %v736 = vpop.permute.xlu0 %735
  %s738 = sor.u32 256, 10
  %739 = vbcast.lane.b32.xlu0 %v732, %s738
  %v740 = vpop.permute.xlu0 %739
  %s742 = sor.u32 256, 18
  %743 = vbcast.lane.b32.xlu0 %v732, %s742
  %v744 = vpop.permute.xlu0 %743
  %s746 = sor.u32 256, 26
  %747 = vbcast.lane.b32.xlu0 %v732, %s746
  %v748 = vpop.permute.xlu0 %747
  %v749 = vlaneseq
  %v750 = vshrl.u32 %v749, 7
  %v751 = vsub.s32 7, %v750
  %v752 = vrot.slane %v608, %v751
  %s754 = sor.u32 256, 2
  %755 = vbcast.lane.b32.xlu0 %v752, %s754
  %v756 = vpop.permute.xlu0 %755
  %s758 = sor.u32 256, 10
  %759 = vbcast.lane.b32.xlu0 %v752, %s758
  %v760 = vpop.permute.xlu0 %759
  %s762 = sor.u32 256, 18
  %763 = vbcast.lane.b32.xlu0 %v752, %s762
  %v764 = vpop.permute.xlu0 %763
  %s766 = sor.u32 256, 26
  %767 = vbcast.lane.b32.xlu0 %v752, %s766
  %v768 = vpop.permute.xlu0 %767
  %vm769 = vcmp.eq.s32.totalorder %v38, %v616
  %vm770 = vcmp.eq.s32.totalorder %v38, %v620
  %vm771 = vcmp.eq.s32.totalorder %v38, %v624
  %vm772 = vcmp.eq.s32.totalorder %v38, %v628
  %vm773 = vcmp.eq.s32.totalorder %v38, %v636
  %vm774 = vcmp.eq.s32.totalorder %v38, %v640
  %vm775 = vcmp.eq.s32.totalorder %v38, %v644
  %vm776 = vcmp.eq.s32.totalorder %v38, %v648
  %vm777 = vcmp.eq.s32.totalorder %v38, %v656
  %vm778 = vcmp.eq.s32.totalorder %v38, %v660
  %vm779 = vcmp.eq.s32.totalorder %v38, %v664
  %vm780 = vcmp.eq.s32.totalorder %v38, %v668
  %vm781 = vcmp.eq.s32.totalorder %v38, %v676
  %vm782 = vcmp.eq.s32.totalorder %v38, %v680
  %vm783 = vcmp.eq.s32.totalorder %v38, %v684
  %vm784 = vcmp.eq.s32.totalorder %v38, %v688
  %vm785 = vcmp.eq.s32.totalorder %v38, %v696
  %vm786 = vcmp.eq.s32.totalorder %v38, %v700
  %vm787 = vcmp.eq.s32.totalorder %v38, %v704
  %vm788 = vcmp.eq.s32.totalorder %v38, %v708
  %vm789 = vcmp.eq.s32.totalorder %v38, %v716
  %vm790 = vcmp.eq.s32.totalorder %v38, %v720
  %vm791 = vcmp.eq.s32.totalorder %v38, %v724
  %vm792 = vcmp.eq.s32.totalorder %v38, %v728
  %vm793 = vcmp.eq.s32.totalorder %v38, %v736
  %vm794 = vcmp.eq.s32.totalorder %v38, %v740
  %vm795 = vcmp.eq.s32.totalorder %v38, %v744
  %vm796 = vcmp.eq.s32.totalorder %v38, %v748
  %vm797 = vcmp.eq.s32.totalorder %v38, %v756
  %vm798 = vcmp.eq.s32.totalorder %v38, %v760
  %vm799 = vcmp.eq.s32.totalorder %v38, %v764
  %vm800 = vcmp.eq.s32.totalorder %v38, %v768
  %v801 = vsel %vm769, 1, 0
  %v802 = vsel %vm770, 1, 0
  %v803 = vsel %vm771, 1, 0
  %v804 = vsel %vm772, 1, 0
  %v805 = vsel %vm773, 1, 0
  %v806 = vsel %vm774, 1, 0
  %v807 = vsel %vm775, 1, 0
  %v808 = vsel %vm776, 1, 0
  %v809 = vsel %vm777, 1, 0
  %v810 = vsel %vm778, 1, 0
  %v811 = vsel %vm779, 1, 0
  %v812 = vsel %vm780, 1, 0
  %v813 = vsel %vm781, 1, 0
  %v814 = vsel %vm782, 1, 0
  %v815 = vsel %vm783, 1, 0
  %v816 = vsel %vm784, 1, 0
  %v817 = vsel %vm785, 1, 0
  %v818 = vsel %vm786, 1, 0
  %v819 = vsel %vm787, 1, 0
  %v820 = vsel %vm788, 1, 0
  %v821 = vsel %vm789, 1, 0
  %v822 = vsel %vm790, 1, 0
  %v823 = vsel %vm791, 1, 0
  %v824 = vsel %vm792, 1, 0
  %v825 = vsel %vm793, 1, 0
  %v826 = vsel %vm794, 1, 0
  %v827 = vsel %vm795, 1, 0
  %v828 = vsel %vm796, 1, 0
  %v829 = vsel %vm797, 1, 0
  %v830 = vsel %vm798, 1, 0
  %v831 = vsel %vm799, 1, 0
  %v832 = vsel %vm800, 1, 0
  %v833 = vcvt.s32.f32 %v801
  %v834 = vcvt.s32.f32 %v802
  %v835 = vcvt.s32.f32 %v803
  %v836 = vcvt.s32.f32 %v804
  %v837 = vcvt.s32.f32 %v805
  %v838 = vcvt.s32.f32 %v806
  %v839 = vcvt.s32.f32 %v807
  %v840 = vcvt.s32.f32 %v808
  %v841 = vcvt.s32.f32 %v809
  %v842 = vcvt.s32.f32 %v810
  %v843 = vcvt.s32.f32 %v811
  %v844 = vcvt.s32.f32 %v812
  %v845 = vcvt.s32.f32 %v813
  %v846 = vcvt.s32.f32 %v814
  %v847 = vcvt.s32.f32 %v815
  %v848 = vcvt.s32.f32 %v816
  %v849 = vcvt.s32.f32 %v817
  %v850 = vcvt.s32.f32 %v818
  %v851 = vcvt.s32.f32 %v819
  %v852 = vcvt.s32.f32 %v820
  %v853 = vcvt.s32.f32 %v821
  %v854 = vcvt.s32.f32 %v822
  %v855 = vcvt.s32.f32 %v823
  %v856 = vcvt.s32.f32 %v824
  %v857 = vcvt.s32.f32 %v825
  %v858 = vcvt.s32.f32 %v826
  %v859 = vcvt.s32.f32 %v827
  %v860 = vcvt.s32.f32 %v828
  %v861 = vcvt.s32.f32 %v829
  %v862 = vcvt.s32.f32 %v830
  %v863 = vcvt.s32.f32 %v831
  %v864 = vcvt.s32.f32 %v832
  %v865 = vadd.f32 %v576, %v833
  %v866 = vadd.f32 %v577, %v834
  %v867 = vadd.f32 %v578, %v835
  %v868 = vadd.f32 %v579, %v836
  %v869 = vadd.f32 %v580, %v837
  %v870 = vadd.f32 %v581, %v838
  %v871 = vadd.f32 %v582, %v839
  %v872 = vadd.f32 %v583, %v840
  %v873 = vadd.f32 %v584, %v841
  %v874 = vadd.f32 %v585, %v842
  %v875 = vadd.f32 %v586, %v843
  %v876 = vadd.f32 %v587, %v844
  %v877 = vadd.f32 %v588, %v845
  %v878 = vadd.f32 %v589, %v846
  %v879 = vadd.f32 %v590, %v847
  %v880 = vadd.f32 %v591, %v848
  %v881 = vadd.f32 %v592, %v849
  %v882 = vadd.f32 %v593, %v850
  %v883 = vadd.f32 %v594, %v851
  %v884 = vadd.f32 %v595, %v852
  %v885 = vadd.f32 %v596, %v853
  %v886 = vadd.f32 %v597, %v854
  %v887 = vadd.f32 %v598, %v855
  %v888 = vadd.f32 %v599, %v856
  %v889 = vadd.f32 %v600, %v857
  %v890 = vadd.f32 %v601, %v858
  %v891 = vadd.f32 %v602, %v859
  %v892 = vadd.f32 %v603, %v860
  %v893 = vadd.f32 %v604, %v861
  %v894 = vadd.f32 %v605, %v862
  %v895 = vadd.f32 %v606, %v863
  %v896 = vadd.f32 %v607, %v864
  %v897 = vadd.s32 %v36, 12
  %v898 = vlaneseq
  %v899 = vshrl.u32 %v898, 7
  %v900 = vsub.s32 0, %v899
  %v901 = vrot.slane %v897, %v900
  %s903 = sor.u32 256, 3
  %904 = vbcast.lane.b32.xlu0 %v901, %s903
  %v905 = vpop.permute.xlu0 %904
  %s907 = sor.u32 256, 11
  %908 = vbcast.lane.b32.xlu0 %v901, %s907
  %v909 = vpop.permute.xlu0 %908
  %s911 = sor.u32 256, 19
  %912 = vbcast.lane.b32.xlu0 %v901, %s911
  %v913 = vpop.permute.xlu0 %912
  %s915 = sor.u32 256, 27
  %916 = vbcast.lane.b32.xlu0 %v901, %s915
  %v917 = vpop.permute.xlu0 %916
  %v918 = vlaneseq
  %v919 = vshrl.u32 %v918, 7
  %v920 = vsub.s32 1, %v919
  %v921 = vrot.slane %v897, %v920
  %s923 = sor.u32 256, 3
  %924 = vbcast.lane.b32.xlu0 %v921, %s923
  %v925 = vpop.permute.xlu0 %924
  %s927 = sor.u32 256, 11
  %928 = vbcast.lane.b32.xlu0 %v921, %s927
  %v929 = vpop.permute.xlu0 %928
  %s931 = sor.u32 256, 19
  %932 = vbcast.lane.b32.xlu0 %v921, %s931
  %v933 = vpop.permute.xlu0 %932
  %s935 = sor.u32 256, 27
  %936 = vbcast.lane.b32.xlu0 %v921, %s935
  %v937 = vpop.permute.xlu0 %936
  %v938 = vlaneseq
  %v939 = vshrl.u32 %v938, 7
  %v940 = vsub.s32 2, %v939
  %v941 = vrot.slane %v897, %v940
  %s943 = sor.u32 256, 3
  %944 = vbcast.lane.b32.xlu0 %v941, %s943
  %v945 = vpop.permute.xlu0 %944
  %s947 = sor.u32 256, 11
  %948 = vbcast.lane.b32.xlu0 %v941, %s947
  %v949 = vpop.permute.xlu0 %948
  %s951 = sor.u32 256, 19
  %952 = vbcast.lane.b32.xlu0 %v941, %s951
  %v953 = vpop.permute.xlu0 %952
  %s955 = sor.u32 256, 27
  %956 = vbcast.lane.b32.xlu0 %v941, %s955
  %v957 = vpop.permute.xlu0 %956
  %v958 = vlaneseq
  %v959 = vshrl.u32 %v958, 7
  %v960 = vsub.s32 3, %v959
  %v961 = vrot.slane %v897, %v960
  %s963 = sor.u32 256, 3
  %964 = vbcast.lane.b32.xlu0 %v961, %s963
  %v965 = vpop.permute.xlu0 %964
  %s967 = sor.u32 256, 11
  %968 = vbcast.lane.b32.xlu0 %v961, %s967
  %v969 = vpop.permute.xlu0 %968
  %s971 = sor.u32 256, 19
  %972 = vbcast.lane.b32.xlu0 %v961, %s971
  %v973 = vpop.permute.xlu0 %972
  %s975 = sor.u32 256, 27
  %976 = vbcast.lane.b32.xlu0 %v961, %s975
  %v977 = vpop.permute.xlu0 %976
  %v978 = vlaneseq
  %v979 = vshrl.u32 %v978, 7
  %v980 = vsub.s32 4, %v979
  %v981 = vrot.slane %v897, %v980
  %s983 = sor.u32 256, 3
  %984 = vbcast.lane.b32.xlu0 %v981, %s983
  %v985 = vpop.permute.xlu0 %984
  %s987 = sor.u32 256, 11
  %988 = vbcast.lane.b32.xlu0 %v981, %s987
  %v989 = vpop.permute.xlu0 %988
  %s991 = sor.u32 256, 19
  %992 = vbcast.lane.b32.xlu0 %v981, %s991
  %v993 = vpop.permute.xlu0 %992
  %s995 = sor.u32 256, 27
  %996 = vbcast.lane.b32.xlu0 %v981, %s995
  %v997 = vpop.permute.xlu0 %996
  %v998 = vlaneseq
  %v999 = vshrl.u32 %v998, 7
  %v1000 = vsub.s32 5, %v999
  %v1001 = vrot.slane %v897, %v1000
  %s1003 = sor.u32 256, 3
  %1004 = vbcast.lane.b32.xlu0 %v1001, %s1003
  %v1005 = vpop.permute.xlu0 %1004
  %s1007 = sor.u32 256, 11
  %1008 = vbcast.lane.b32.xlu0 %v1001, %s1007
  %v1009 = vpop.permute.xlu0 %1008
  %s1011 = sor.u32 256, 19
  %1012 = vbcast.lane.b32.xlu0 %v1001, %s1011
  %v1013 = vpop.permute.xlu0 %1012
  %s1015 = sor.u32 256, 27
  %1016 = vbcast.lane.b32.xlu0 %v1001, %s1015
  %v1017 = vpop.permute.xlu0 %1016
  %v1018 = vlaneseq
  %v1019 = vshrl.u32 %v1018, 7
  %v1020 = vsub.s32 6, %v1019
  %v1021 = vrot.slane %v897, %v1020
  %s1023 = sor.u32 256, 3
  %1024 = vbcast.lane.b32.xlu0 %v1021, %s1023
  %v1025 = vpop.permute.xlu0 %1024
  %s1027 = sor.u32 256, 11
  %1028 = vbcast.lane.b32.xlu0 %v1021, %s1027
  %v1029 = vpop.permute.xlu0 %1028
  %s1031 = sor.u32 256, 19
  %1032 = vbcast.lane.b32.xlu0 %v1021, %s1031
  %v1033 = vpop.permute.xlu0 %1032
  %s1035 = sor.u32 256, 27
  %1036 = vbcast.lane.b32.xlu0 %v1021, %s1035
  %v1037 = vpop.permute.xlu0 %1036
  %v1038 = vlaneseq
  %v1039 = vshrl.u32 %v1038, 7
  %v1040 = vsub.s32 7, %v1039
  %v1041 = vrot.slane %v897, %v1040
  %s1043 = sor.u32 256, 3
  %1044 = vbcast.lane.b32.xlu0 %v1041, %s1043
  %v1045 = vpop.permute.xlu0 %1044
  %s1047 = sor.u32 256, 11
  %1048 = vbcast.lane.b32.xlu0 %v1041, %s1047
  %v1049 = vpop.permute.xlu0 %1048
  %s1051 = sor.u32 256, 19
  %1052 = vbcast.lane.b32.xlu0 %v1041, %s1051
  %v1053 = vpop.permute.xlu0 %1052
  %s1055 = sor.u32 256, 27
  %1056 = vbcast.lane.b32.xlu0 %v1041, %s1055
  %v1057 = vpop.permute.xlu0 %1056
  %vm1058 = vcmp.eq.s32.totalorder %v38, %v905
  %vm1059 = vcmp.eq.s32.totalorder %v38, %v909
  %vm1060 = vcmp.eq.s32.totalorder %v38, %v913
  %vm1061 = vcmp.eq.s32.totalorder %v38, %v917
  %vm1062 = vcmp.eq.s32.totalorder %v38, %v925
  %vm1063 = vcmp.eq.s32.totalorder %v38, %v929
  %vm1064 = vcmp.eq.s32.totalorder %v38, %v933
  %vm1065 = vcmp.eq.s32.totalorder %v38, %v937
  %vm1066 = vcmp.eq.s32.totalorder %v38, %v945
  %vm1067 = vcmp.eq.s32.totalorder %v38, %v949
  %vm1068 = vcmp.eq.s32.totalorder %v38, %v953
  %vm1069 = vcmp.eq.s32.totalorder %v38, %v957
  %vm1070 = vcmp.eq.s32.totalorder %v38, %v965
  %vm1071 = vcmp.eq.s32.totalorder %v38, %v969
  %vm1072 = vcmp.eq.s32.totalorder %v38, %v973
  %vm1073 = vcmp.eq.s32.totalorder %v38, %v977
  %vm1074 = vcmp.eq.s32.totalorder %v38, %v985
  %vm1075 = vcmp.eq.s32.totalorder %v38, %v989
  %vm1076 = vcmp.eq.s32.totalorder %v38, %v993
  %vm1077 = vcmp.eq.s32.totalorder %v38, %v997
  %vm1078 = vcmp.eq.s32.totalorder %v38, %v1005
  %vm1079 = vcmp.eq.s32.totalorder %v38, %v1009
  %vm1080 = vcmp.eq.s32.totalorder %v38, %v1013
  %vm1081 = vcmp.eq.s32.totalorder %v38, %v1017
  %vm1082 = vcmp.eq.s32.totalorder %v38, %v1025
  %vm1083 = vcmp.eq.s32.totalorder %v38, %v1029
  %vm1084 = vcmp.eq.s32.totalorder %v38, %v1033
  %vm1085 = vcmp.eq.s32.totalorder %v38, %v1037
  %vm1086 = vcmp.eq.s32.totalorder %v38, %v1045
  %vm1087 = vcmp.eq.s32.totalorder %v38, %v1049
  %vm1088 = vcmp.eq.s32.totalorder %v38, %v1053
  %vm1089 = vcmp.eq.s32.totalorder %v38, %v1057
  %v1090 = vsel %vm1058, 1, 0
  %v1091 = vsel %vm1059, 1, 0
  %v1092 = vsel %vm1060, 1, 0
  %v1093 = vsel %vm1061, 1, 0
  %v1094 = vsel %vm1062, 1, 0
  %v1095 = vsel %vm1063, 1, 0
  %v1096 = vsel %vm1064, 1, 0
  %v1097 = vsel %vm1065, 1, 0
  %v1098 = vsel %vm1066, 1, 0
  %v1099 = vsel %vm1067, 1, 0
  %v1100 = vsel %vm1068, 1, 0
  %v1101 = vsel %vm1069, 1, 0
  %v1102 = vsel %vm1070, 1, 0
  %v1103 = vsel %vm1071, 1, 0
  %v1104 = vsel %vm1072, 1, 0
  %v1105 = vsel %vm1073, 1, 0
  %v1106 = vsel %vm1074, 1, 0
  %v1107 = vsel %vm1075, 1, 0
  %v1108 = vsel %vm1076, 1, 0
  %v1109 = vsel %vm1077, 1, 0
  %v1110 = vsel %vm1078, 1, 0
  %v1111 = vsel %vm1079, 1, 0
  %v1112 = vsel %vm1080, 1, 0
  %v1113 = vsel %vm1081, 1, 0
  %v1114 = vsel %vm1082, 1, 0
  %v1115 = vsel %vm1083, 1, 0
  %v1116 = vsel %vm1084, 1, 0
  %v1117 = vsel %vm1085, 1, 0
  %v1118 = vsel %vm1086, 1, 0
  %v1119 = vsel %vm1087, 1, 0
  %v1120 = vsel %vm1088, 1, 0
  %v1121 = vsel %vm1089, 1, 0
  %v1122 = vcvt.s32.f32 %v1090
  %v1123 = vcvt.s32.f32 %v1091
  %v1124 = vcvt.s32.f32 %v1092
  %v1125 = vcvt.s32.f32 %v1093
  %v1126 = vcvt.s32.f32 %v1094
  %v1127 = vcvt.s32.f32 %v1095
  %v1128 = vcvt.s32.f32 %v1096
  %v1129 = vcvt.s32.f32 %v1097
  %v1130 = vcvt.s32.f32 %v1098
  %v1131 = vcvt.s32.f32 %v1099
  %v1132 = vcvt.s32.f32 %v1100
  %v1133 = vcvt.s32.f32 %v1101
  %v1134 = vcvt.s32.f32 %v1102
  %v1135 = vcvt.s32.f32 %v1103
  %v1136 = vcvt.s32.f32 %v1104
  %v1137 = vcvt.s32.f32 %v1105
  %v1138 = vcvt.s32.f32 %v1106
  %v1139 = vcvt.s32.f32 %v1107
  %v1140 = vcvt.s32.f32 %v1108
  %v1141 = vcvt.s32.f32 %v1109
  %v1142 = vcvt.s32.f32 %v1110
  %v1143 = vcvt.s32.f32 %v1111
  %v1144 = vcvt.s32.f32 %v1112
  %v1145 = vcvt.s32.f32 %v1113
  %v1146 = vcvt.s32.f32 %v1114
  %v1147 = vcvt.s32.f32 %v1115
  %v1148 = vcvt.s32.f32 %v1116
  %v1149 = vcvt.s32.f32 %v1117
  %v1150 = vcvt.s32.f32 %v1118
  %v1151 = vcvt.s32.f32 %v1119
  %v1152 = vcvt.s32.f32 %v1120
  %v1153 = vcvt.s32.f32 %v1121
  %v1154 = vadd.f32 %v865, %v1122
  %v1155 = vadd.f32 %v866, %v1123
  %v1156 = vadd.f32 %v867, %v1124
  %v1157 = vadd.f32 %v868, %v1125
  %v1158 = vadd.f32 %v869, %v1126
  %v1159 = vadd.f32 %v870, %v1127
  %v1160 = vadd.f32 %v871, %v1128
  %v1161 = vadd.f32 %v872, %v1129
  %v1162 = vadd.f32 %v873, %v1130
  %v1163 = vadd.f32 %v874, %v1131
  %v1164 = vadd.f32 %v875, %v1132
  %v1165 = vadd.f32 %v876, %v1133
  %v1166 = vadd.f32 %v877, %v1134
  %v1167 = vadd.f32 %v878, %v1135
  %v1168 = vadd.f32 %v879, %v1136
  %v1169 = vadd.f32 %v880, %v1137
  %v1170 = vadd.f32 %v881, %v1138
  %v1171 = vadd.f32 %v882, %v1139
  %v1172 = vadd.f32 %v883, %v1140
  %v1173 = vadd.f32 %v884, %v1141
  %v1174 = vadd.f32 %v885, %v1142
  %v1175 = vadd.f32 %v886, %v1143
  %v1176 = vadd.f32 %v887, %v1144
  %v1177 = vadd.f32 %v888, %v1145
  %v1178 = vadd.f32 %v889, %v1146
  %v1179 = vadd.f32 %v890, %v1147
  %v1180 = vadd.f32 %v891, %v1148
  %v1181 = vadd.f32 %v892, %v1149
  %v1182 = vadd.f32 %v893, %v1150
  %v1183 = vadd.f32 %v894, %v1151
  %v1184 = vadd.f32 %v895, %v1152
  %v1185 = vadd.f32 %v896, %v1153
  %v1186 = vadd.s32 %v36, 16
  %v1187 = vlaneseq
  %v1188 = vshrl.u32 %v1187, 7
  %v1189 = vsub.s32 0, %v1188
  %v1190 = vrot.slane %v1186, %v1189
  %s1192 = sor.u32 256, 4
  %1193 = vbcast.lane.b32.xlu0 %v1190, %s1192
  %v1194 = vpop.permute.xlu0 %1193
  %s1196 = sor.u32 256, 12
  %1197 = vbcast.lane.b32.xlu0 %v1190, %s1196
  %v1198 = vpop.permute.xlu0 %1197
  %s1200 = sor.u32 256, 20
  %1201 = vbcast.lane.b32.xlu0 %v1190, %s1200
  %v1202 = vpop.permute.xlu0 %1201
  %s1204 = sor.u32 256, 28
  %1205 = vbcast.lane.b32.xlu0 %v1190, %s1204
  %v1206 = vpop.permute.xlu0 %1205
  %v1207 = vlaneseq
  %v1208 = vshrl.u32 %v1207, 7
  %v1209 = vsub.s32 1, %v1208
  %v1210 = vrot.slane %v1186, %v1209
  %s1212 = sor.u32 256, 4
  %1213 = vbcast.lane.b32.xlu0 %v1210, %s1212
  %v1214 = vpop.permute.xlu0 %1213
  %s1216 = sor.u32 256, 12
  %1217 = vbcast.lane.b32.xlu0 %v1210, %s1216
  %v1218 = vpop.permute.xlu0 %1217
  %s1220 = sor.u32 256, 20
  %1221 = vbcast.lane.b32.xlu0 %v1210, %s1220
  %v1222 = vpop.permute.xlu0 %1221
  %s1224 = sor.u32 256, 28
  %1225 = vbcast.lane.b32.xlu0 %v1210, %s1224
  %v1226 = vpop.permute.xlu0 %1225
  %v1227 = vlaneseq
  %v1228 = vshrl.u32 %v1227, 7
  %v1229 = vsub.s32 2, %v1228
  %v1230 = vrot.slane %v1186, %v1229
  %s1232 = sor.u32 256, 4
  %1233 = vbcast.lane.b32.xlu0 %v1230, %s1232
  %v1234 = vpop.permute.xlu0 %1233
  %s1236 = sor.u32 256, 12
  %1237 = vbcast.lane.b32.xlu0 %v1230, %s1236
  %v1238 = vpop.permute.xlu0 %1237
  %s1240 = sor.u32 256, 20
  %1241 = vbcast.lane.b32.xlu0 %v1230, %s1240
  %v1242 = vpop.permute.xlu0 %1241
  %s1244 = sor.u32 256, 28
  %1245 = vbcast.lane.b32.xlu0 %v1230, %s1244
  %v1246 = vpop.permute.xlu0 %1245
  %v1247 = vlaneseq
  %v1248 = vshrl.u32 %v1247, 7
  %v1249 = vsub.s32 3, %v1248
  %v1250 = vrot.slane %v1186, %v1249
  %s1252 = sor.u32 256, 4
  %1253 = vbcast.lane.b32.xlu0 %v1250, %s1252
  %v1254 = vpop.permute.xlu0 %1253
  %s1256 = sor.u32 256, 12
  %1257 = vbcast.lane.b32.xlu0 %v1250, %s1256
  %v1258 = vpop.permute.xlu0 %1257
  %s1260 = sor.u32 256, 20
  %1261 = vbcast.lane.b32.xlu0 %v1250, %s1260
  %v1262 = vpop.permute.xlu0 %1261
  %s1264 = sor.u32 256, 28
  %1265 = vbcast.lane.b32.xlu0 %v1250, %s1264
  %v1266 = vpop.permute.xlu0 %1265
  %v1267 = vlaneseq
  %v1268 = vshrl.u32 %v1267, 7
  %v1269 = vsub.s32 4, %v1268
  %v1270 = vrot.slane %v1186, %v1269
  %s1272 = sor.u32 256, 4
  %1273 = vbcast.lane.b32.xlu0 %v1270, %s1272
  %v1274 = vpop.permute.xlu0 %1273
  %s1276 = sor.u32 256, 12
  %1277 = vbcast.lane.b32.xlu0 %v1270, %s1276
  %v1278 = vpop.permute.xlu0 %1277
  %s1280 = sor.u32 256, 20
  %1281 = vbcast.lane.b32.xlu0 %v1270, %s1280
  %v1282 = vpop.permute.xlu0 %1281
  %s1284 = sor.u32 256, 28
  %1285 = vbcast.lane.b32.xlu0 %v1270, %s1284
  %v1286 = vpop.permute.xlu0 %1285
  %v1287 = vlaneseq
  %v1288 = vshrl.u32 %v1287, 7
  %v1289 = vsub.s32 5, %v1288
  %v1290 = vrot.slane %v1186, %v1289
  %s1292 = sor.u32 256, 4
  %1293 = vbcast.lane.b32.xlu0 %v1290, %s1292
  %v1294 = vpop.permute.xlu0 %1293
  %s1296 = sor.u32 256, 12
  %1297 = vbcast.lane.b32.xlu0 %v1290, %s1296
  %v1298 = vpop.permute.xlu0 %1297
  %s1300 = sor.u32 256, 20
  %1301 = vbcast.lane.b32.xlu0 %v1290, %s1300
  %v1302 = vpop.permute.xlu0 %1301
  %s1304 = sor.u32 256, 28
  %1305 = vbcast.lane.b32.xlu0 %v1290, %s1304
  %v1306 = vpop.permute.xlu0 %1305
  %v1307 = vlaneseq
  %v1308 = vshrl.u32 %v1307, 7
  %v1309 = vsub.s32 6, %v1308
  %v1310 = vrot.slane %v1186, %v1309
  %s1312 = sor.u32 256, 4
  %1313 = vbcast.lane.b32.xlu0 %v1310, %s1312
  %v1314 = vpop.permute.xlu0 %1313
  %s1316 = sor.u32 256, 12
  %1317 = vbcast.lane.b32.xlu0 %v1310, %s1316
  %v1318 = vpop.permute.xlu0 %1317
  %s1320 = sor.u32 256, 20
  %1321 = vbcast.lane.b32.xlu0 %v1310, %s1320
  %v1322 = vpop.permute.xlu0 %1321
  %s1324 = sor.u32 256, 28
  %1325 = vbcast.lane.b32.xlu0 %v1310, %s1324
  %v1326 = vpop.permute.xlu0 %1325
  %v1327 = vlaneseq
  %v1328 = vshrl.u32 %v1327, 7
  %v1329 = vsub.s32 7, %v1328
  %v1330 = vrot.slane %v1186, %v1329
  %s1332 = sor.u32 256, 4
  %1333 = vbcast.lane.b32.xlu0 %v1330, %s1332
  %v1334 = vpop.permute.xlu0 %1333
  %s1336 = sor.u32 256, 12
  %1337 = vbcast.lane.b32.xlu0 %v1330, %s1336
  %v1338 = vpop.permute.xlu0 %1337
  %s1340 = sor.u32 256, 20
  %1341 = vbcast.lane.b32.xlu0 %v1330, %s1340
  %v1342 = vpop.permute.xlu0 %1341
  %s1344 = sor.u32 256, 28
  %1345 = vbcast.lane.b32.xlu0 %v1330, %s1344
  %v1346 = vpop.permute.xlu0 %1345
  %vm1347 = vcmp.eq.s32.totalorder %v38, %v1194
  %vm1348 = vcmp.eq.s32.totalorder %v38, %v1198
  %vm1349 = vcmp.eq.s32.totalorder %v38, %v1202
  %vm1350 = vcmp.eq.s32.totalorder %v38, %v1206
  %vm1351 = vcmp.eq.s32.totalorder %v38, %v1214
  %vm1352 = vcmp.eq.s32.totalorder %v38, %v1218
  %vm1353 = vcmp.eq.s32.totalorder %v38, %v1222
  %vm1354 = vcmp.eq.s32.totalorder %v38, %v1226
  %vm1355 = vcmp.eq.s32.totalorder %v38, %v1234
  %vm1356 = vcmp.eq.s32.totalorder %v38, %v1238
  %vm1357 = vcmp.eq.s32.totalorder %v38, %v1242
  %vm1358 = vcmp.eq.s32.totalorder %v38, %v1246
  %vm1359 = vcmp.eq.s32.totalorder %v38, %v1254
  %vm1360 = vcmp.eq.s32.totalorder %v38, %v1258
  %vm1361 = vcmp.eq.s32.totalorder %v38, %v1262
  %vm1362 = vcmp.eq.s32.totalorder %v38, %v1266
  %vm1363 = vcmp.eq.s32.totalorder %v38, %v1274
  %vm1364 = vcmp.eq.s32.totalorder %v38, %v1278
  %vm1365 = vcmp.eq.s32.totalorder %v38, %v1282
  %vm1366 = vcmp.eq.s32.totalorder %v38, %v1286
  %vm1367 = vcmp.eq.s32.totalorder %v38, %v1294
  %vm1368 = vcmp.eq.s32.totalorder %v38, %v1298
  %vm1369 = vcmp.eq.s32.totalorder %v38, %v1302
  %vm1370 = vcmp.eq.s32.totalorder %v38, %v1306
  %vm1371 = vcmp.eq.s32.totalorder %v38, %v1314
  %vm1372 = vcmp.eq.s32.totalorder %v38, %v1318
  %vm1373 = vcmp.eq.s32.totalorder %v38, %v1322
  %vm1374 = vcmp.eq.s32.totalorder %v38, %v1326
  %vm1375 = vcmp.eq.s32.totalorder %v38, %v1334
  %vm1376 = vcmp.eq.s32.totalorder %v38, %v1338
  %vm1377 = vcmp.eq.s32.totalorder %v38, %v1342
  %vm1378 = vcmp.eq.s32.totalorder %v38, %v1346
  %v1379 = vsel %vm1347, 1, 0
  %v1380 = vsel %vm1348, 1, 0
  %v1381 = vsel %vm1349, 1, 0
  %v1382 = vsel %vm1350, 1, 0
  %v1383 = vsel %vm1351, 1, 0
  %v1384 = vsel %vm1352, 1, 0
  %v1385 = vsel %vm1353, 1, 0
  %v1386 = vsel %vm1354, 1, 0
  %v1387 = vsel %vm1355, 1, 0
  %v1388 = vsel %vm1356, 1, 0
  %v1389 = vsel %vm1357, 1, 0
  %v1390 = vsel %vm1358, 1, 0
  %v1391 = vsel %vm1359, 1, 0
  %v1392 = vsel %vm1360, 1, 0
  %v1393 = vsel %vm1361, 1, 0
  %v1394 = vsel %vm1362, 1, 0
  %v1395 = vsel %vm1363, 1, 0
  %v1396 = vsel %vm1364, 1, 0
  %v1397 = vsel %vm1365, 1, 0
  %v1398 = vsel %vm1366, 1, 0
  %v1399 = vsel %vm1367, 1, 0
  %v1400 = vsel %vm1368, 1, 0
  %v1401 = vsel %vm1369, 1, 0
  %v1402 = vsel %vm1370, 1, 0
  %v1403 = vsel %vm1371, 1, 0
  %v1404 = vsel %vm1372, 1, 0
  %v1405 = vsel %vm1373, 1, 0
  %v1406 = vsel %vm1374, 1, 0
  %v1407 = vsel %vm1375, 1, 0
  %v1408 = vsel %vm1376, 1, 0
  %v1409 = vsel %vm1377, 1, 0
  %v1410 = vsel %vm1378, 1, 0
  %v1411 = vcvt.s32.f32 %v1379
  %v1412 = vcvt.s32.f32 %v1380
  %v1413 = vcvt.s32.f32 %v1381
  %v1414 = vcvt.s32.f32 %v1382
  %v1415 = vcvt.s32.f32 %v1383
  %v1416 = vcvt.s32.f32 %v1384
  %v1417 = vcvt.s32.f32 %v1385
  %v1418 = vcvt.s32.f32 %v1386
  %v1419 = vcvt.s32.f32 %v1387
  %v1420 = vcvt.s32.f32 %v1388
  %v1421 = vcvt.s32.f32 %v1389
  %v1422 = vcvt.s32.f32 %v1390
  %v1423 = vcvt.s32.f32 %v1391
  %v1424 = vcvt.s32.f32 %v1392
  %v1425 = vcvt.s32.f32 %v1393
  %v1426 = vcvt.s32.f32 %v1394
  %v1427 = vcvt.s32.f32 %v1395
  %v1428 = vcvt.s32.f32 %v1396
  %v1429 = vcvt.s32.f32 %v1397
  %v1430 = vcvt.s32.f32 %v1398
  %v1431 = vcvt.s32.f32 %v1399
  %v1432 = vcvt.s32.f32 %v1400
  %v1433 = vcvt.s32.f32 %v1401
  %v1434 = vcvt.s32.f32 %v1402
  %v1435 = vcvt.s32.f32 %v1403
  %v1436 = vcvt.s32.f32 %v1404
  %v1437 = vcvt.s32.f32 %v1405
  %v1438 = vcvt.s32.f32 %v1406
  %v1439 = vcvt.s32.f32 %v1407
  %v1440 = vcvt.s32.f32 %v1408
  %v1441 = vcvt.s32.f32 %v1409
  %v1442 = vcvt.s32.f32 %v1410
  %v1443 = vadd.f32 %v1154, %v1411
  %v1444 = vadd.f32 %v1155, %v1412
  %v1445 = vadd.f32 %v1156, %v1413
  %v1446 = vadd.f32 %v1157, %v1414
  %v1447 = vadd.f32 %v1158, %v1415
  %v1448 = vadd.f32 %v1159, %v1416
  %v1449 = vadd.f32 %v1160, %v1417
  %v1450 = vadd.f32 %v1161, %v1418
  %v1451 = vadd.f32 %v1162, %v1419
  %v1452 = vadd.f32 %v1163, %v1420
  %v1453 = vadd.f32 %v1164, %v1421
  %v1454 = vadd.f32 %v1165, %v1422
  %v1455 = vadd.f32 %v1166, %v1423
  %v1456 = vadd.f32 %v1167, %v1424
  %v1457 = vadd.f32 %v1168, %v1425
  %v1458 = vadd.f32 %v1169, %v1426
  %v1459 = vadd.f32 %v1170, %v1427
  %v1460 = vadd.f32 %v1171, %v1428
  %v1461 = vadd.f32 %v1172, %v1429
  %v1462 = vadd.f32 %v1173, %v1430
  %v1463 = vadd.f32 %v1174, %v1431
  %v1464 = vadd.f32 %v1175, %v1432
  %v1465 = vadd.f32 %v1176, %v1433
  %v1466 = vadd.f32 %v1177, %v1434
  %v1467 = vadd.f32 %v1178, %v1435
  %v1468 = vadd.f32 %v1179, %v1436
  %v1469 = vadd.f32 %v1180, %v1437
  %v1470 = vadd.f32 %v1181, %v1438
  %v1471 = vadd.f32 %v1182, %v1439
  %v1472 = vadd.f32 %v1183, %v1440
  %v1473 = vadd.f32 %v1184, %v1441
  %v1474 = vadd.f32 %v1185, %v1442
  %v1475 = vadd.s32 %v36, 20
  %v1476 = vlaneseq
  %v1477 = vshrl.u32 %v1476, 7
  %v1478 = vsub.s32 0, %v1477
  %v1479 = vrot.slane %v1475, %v1478
  %s1481 = sor.u32 256, 5
  %1482 = vbcast.lane.b32.xlu0 %v1479, %s1481
  %v1483 = vpop.permute.xlu0 %1482
  %s1485 = sor.u32 256, 13
  %1486 = vbcast.lane.b32.xlu0 %v1479, %s1485
  %v1487 = vpop.permute.xlu0 %1486
  %s1489 = sor.u32 256, 21
  %1490 = vbcast.lane.b32.xlu0 %v1479, %s1489
  %v1491 = vpop.permute.xlu0 %1490
  %s1493 = sor.u32 256, 29
  %1494 = vbcast.lane.b32.xlu0 %v1479, %s1493
  %v1495 = vpop.permute.xlu0 %1494
  %v1496 = vlaneseq
  %v1497 = vshrl.u32 %v1496, 7
  %v1498 = vsub.s32 1, %v1497
  %v1499 = vrot.slane %v1475, %v1498
  %s1501 = sor.u32 256, 5
  %1502 = vbcast.lane.b32.xlu0 %v1499, %s1501
  %v1503 = vpop.permute.xlu0 %1502
  %s1505 = sor.u32 256, 13
  %1506 = vbcast.lane.b32.xlu0 %v1499, %s1505
  %v1507 = vpop.permute.xlu0 %1506
  %s1509 = sor.u32 256, 21
  %1510 = vbcast.lane.b32.xlu0 %v1499, %s1509
  %v1511 = vpop.permute.xlu0 %1510
  %s1513 = sor.u32 256, 29
  %1514 = vbcast.lane.b32.xlu0 %v1499, %s1513
  %v1515 = vpop.permute.xlu0 %1514
  %v1516 = vlaneseq
  %v1517 = vshrl.u32 %v1516, 7
  %v1518 = vsub.s32 2, %v1517
  %v1519 = vrot.slane %v1475, %v1518
  %s1521 = sor.u32 256, 5
  %1522 = vbcast.lane.b32.xlu0 %v1519, %s1521
  %v1523 = vpop.permute.xlu0 %1522
  %s1525 = sor.u32 256, 13
  %1526 = vbcast.lane.b32.xlu0 %v1519, %s1525
  %v1527 = vpop.permute.xlu0 %1526
  %s1529 = sor.u32 256, 21
  %1530 = vbcast.lane.b32.xlu0 %v1519, %s1529
  %v1531 = vpop.permute.xlu0 %1530
  %s1533 = sor.u32 256, 29
  %1534 = vbcast.lane.b32.xlu0 %v1519, %s1533
  %v1535 = vpop.permute.xlu0 %1534
  %v1536 = vlaneseq
  %v1537 = vshrl.u32 %v1536, 7
  %v1538 = vsub.s32 3, %v1537
  %v1539 = vrot.slane %v1475, %v1538
  %s1541 = sor.u32 256, 5
  %1542 = vbcast.lane.b32.xlu0 %v1539, %s1541
  %v1543 = vpop.permute.xlu0 %1542
  %s1545 = sor.u32 256, 13
  %1546 = vbcast.lane.b32.xlu0 %v1539, %s1545
  %v1547 = vpop.permute.xlu0 %1546
  %s1549 = sor.u32 256, 21
  %1550 = vbcast.lane.b32.xlu0 %v1539, %s1549
  %v1551 = vpop.permute.xlu0 %1550
  %s1553 = sor.u32 256, 29
  %1554 = vbcast.lane.b32.xlu0 %v1539, %s1553
  %v1555 = vpop.permute.xlu0 %1554
  %v1556 = vlaneseq
  %v1557 = vshrl.u32 %v1556, 7
  %v1558 = vsub.s32 4, %v1557
  %v1559 = vrot.slane %v1475, %v1558
  %s1561 = sor.u32 256, 5
  %1562 = vbcast.lane.b32.xlu0 %v1559, %s1561
  %v1563 = vpop.permute.xlu0 %1562
  %s1565 = sor.u32 256, 13
  %1566 = vbcast.lane.b32.xlu0 %v1559, %s1565
  %v1567 = vpop.permute.xlu0 %1566
  %s1569 = sor.u32 256, 21
  %1570 = vbcast.lane.b32.xlu0 %v1559, %s1569
  %v1571 = vpop.permute.xlu0 %1570
  %s1573 = sor.u32 256, 29
  %1574 = vbcast.lane.b32.xlu0 %v1559, %s1573
  %v1575 = vpop.permute.xlu0 %1574
  %v1576 = vlaneseq
  %v1577 = vshrl.u32 %v1576, 7
  %v1578 = vsub.s32 5, %v1577
  %v1579 = vrot.slane %v1475, %v1578
  %s1581 = sor.u32 256, 5
  %1582 = vbcast.lane.b32.xlu0 %v1579, %s1581
  %v1583 = vpop.permute.xlu0 %1582
  %s1585 = sor.u32 256, 13
  %1586 = vbcast.lane.b32.xlu0 %v1579, %s1585
  %v1587 = vpop.permute.xlu0 %1586
  %s1589 = sor.u32 256, 21
  %1590 = vbcast.lane.b32.xlu0 %v1579, %s1589
  %v1591 = vpop.permute.xlu0 %1590
  %s1593 = sor.u32 256, 29
  %1594 = vbcast.lane.b32.xlu0 %v1579, %s1593
  %v1595 = vpop.permute.xlu0 %1594
  %v1596 = vlaneseq
  %v1597 = vshrl.u32 %v1596, 7
  %v1598 = vsub.s32 6, %v1597
  %v1599 = vrot.slane %v1475, %v1598
  %s1601 = sor.u32 256, 5
  %1602 = vbcast.lane.b32.xlu0 %v1599, %s1601
  %v1603 = vpop.permute.xlu0 %1602
  %s1605 = sor.u32 256, 13
  %1606 = vbcast.lane.b32.xlu0 %v1599, %s1605
  %v1607 = vpop.permute.xlu0 %1606
  %s1609 = sor.u32 256, 21
  %1610 = vbcast.lane.b32.xlu0 %v1599, %s1609
  %v1611 = vpop.permute.xlu0 %1610
  %s1613 = sor.u32 256, 29
  %1614 = vbcast.lane.b32.xlu0 %v1599, %s1613
  %v1615 = vpop.permute.xlu0 %1614
  %v1616 = vlaneseq
  %v1617 = vshrl.u32 %v1616, 7
  %v1618 = vsub.s32 7, %v1617
  %v1619 = vrot.slane %v1475, %v1618
  %s1621 = sor.u32 256, 5
  %1622 = vbcast.lane.b32.xlu0 %v1619, %s1621
  %v1623 = vpop.permute.xlu0 %1622
  %s1625 = sor.u32 256, 13
  %1626 = vbcast.lane.b32.xlu0 %v1619, %s1625
  %v1627 = vpop.permute.xlu0 %1626
  %s1629 = sor.u32 256, 21
  %1630 = vbcast.lane.b32.xlu0 %v1619, %s1629
  %v1631 = vpop.permute.xlu0 %1630
  %s1633 = sor.u32 256, 29
  %1634 = vbcast.lane.b32.xlu0 %v1619, %s1633
  %v1635 = vpop.permute.xlu0 %1634
  %vm1636 = vcmp.eq.s32.totalorder %v38, %v1483
  %vm1637 = vcmp.eq.s32.totalorder %v38, %v1487
  %vm1638 = vcmp.eq.s32.totalorder %v38, %v1491
  %vm1639 = vcmp.eq.s32.totalorder %v38, %v1495
  %vm1640 = vcmp.eq.s32.totalorder %v38, %v1503
  %vm1641 = vcmp.eq.s32.totalorder %v38, %v1507
  %vm1642 = vcmp.eq.s32.totalorder %v38, %v1511
  %vm1643 = vcmp.eq.s32.totalorder %v38, %v1515
  %vm1644 = vcmp.eq.s32.totalorder %v38, %v1523
  %vm1645 = vcmp.eq.s32.totalorder %v38, %v1527
  %vm1646 = vcmp.eq.s32.totalorder %v38, %v1531
  %vm1647 = vcmp.eq.s32.totalorder %v38, %v1535
  %vm1648 = vcmp.eq.s32.totalorder %v38, %v1543
  %vm1649 = vcmp.eq.s32.totalorder %v38, %v1547
  %vm1650 = vcmp.eq.s32.totalorder %v38, %v1551
  %vm1651 = vcmp.eq.s32.totalorder %v38, %v1555
  %vm1652 = vcmp.eq.s32.totalorder %v38, %v1563
  %vm1653 = vcmp.eq.s32.totalorder %v38, %v1567
  %vm1654 = vcmp.eq.s32.totalorder %v38, %v1571
  %vm1655 = vcmp.eq.s32.totalorder %v38, %v1575
  %vm1656 = vcmp.eq.s32.totalorder %v38, %v1583
  %vm1657 = vcmp.eq.s32.totalorder %v38, %v1587
  %vm1658 = vcmp.eq.s32.totalorder %v38, %v1591
  %vm1659 = vcmp.eq.s32.totalorder %v38, %v1595
  %vm1660 = vcmp.eq.s32.totalorder %v38, %v1603
  %vm1661 = vcmp.eq.s32.totalorder %v38, %v1607
  %vm1662 = vcmp.eq.s32.totalorder %v38, %v1611
  %vm1663 = vcmp.eq.s32.totalorder %v38, %v1615
  %vm1664 = vcmp.eq.s32.totalorder %v38, %v1623
  %vm1665 = vcmp.eq.s32.totalorder %v38, %v1627
  %vm1666 = vcmp.eq.s32.totalorder %v38, %v1631
  %vm1667 = vcmp.eq.s32.totalorder %v38, %v1635
  %v1668 = vsel %vm1636, 1, 0
  %v1669 = vsel %vm1637, 1, 0
  %v1670 = vsel %vm1638, 1, 0
  %v1671 = vsel %vm1639, 1, 0
  %v1672 = vsel %vm1640, 1, 0
  %v1673 = vsel %vm1641, 1, 0
  %v1674 = vsel %vm1642, 1, 0
  %v1675 = vsel %vm1643, 1, 0
  %v1676 = vsel %vm1644, 1, 0
  %v1677 = vsel %vm1645, 1, 0
  %v1678 = vsel %vm1646, 1, 0
  %v1679 = vsel %vm1647, 1, 0
  %v1680 = vsel %vm1648, 1, 0
  %v1681 = vsel %vm1649, 1, 0
  %v1682 = vsel %vm1650, 1, 0
  %v1683 = vsel %vm1651, 1, 0
  %v1684 = vsel %vm1652, 1, 0
  %v1685 = vsel %vm1653, 1, 0
  %v1686 = vsel %vm1654, 1, 0
  %v1687 = vsel %vm1655, 1, 0
  %v1688 = vsel %vm1656, 1, 0
  %v1689 = vsel %vm1657, 1, 0
  %v1690 = vsel %vm1658, 1, 0
  %v1691 = vsel %vm1659, 1, 0
  %v1692 = vsel %vm1660, 1, 0
  %v1693 = vsel %vm1661, 1, 0
  %v1694 = vsel %vm1662, 1, 0
  %v1695 = vsel %vm1663, 1, 0
  %v1696 = vsel %vm1664, 1, 0
  %v1697 = vsel %vm1665, 1, 0
  %v1698 = vsel %vm1666, 1, 0
  %v1699 = vsel %vm1667, 1, 0
  %v1700 = vcvt.s32.f32 %v1668
  %v1701 = vcvt.s32.f32 %v1669
  %v1702 = vcvt.s32.f32 %v1670
  %v1703 = vcvt.s32.f32 %v1671
  %v1704 = vcvt.s32.f32 %v1672
  %v1705 = vcvt.s32.f32 %v1673
  %v1706 = vcvt.s32.f32 %v1674
  %v1707 = vcvt.s32.f32 %v1675
  %v1708 = vcvt.s32.f32 %v1676
  %v1709 = vcvt.s32.f32 %v1677
  %v1710 = vcvt.s32.f32 %v1678
  %v1711 = vcvt.s32.f32 %v1679
  %v1712 = vcvt.s32.f32 %v1680
  %v1713 = vcvt.s32.f32 %v1681
  %v1714 = vcvt.s32.f32 %v1682
  %v1715 = vcvt.s32.f32 %v1683
  %v1716 = vcvt.s32.f32 %v1684
  %v1717 = vcvt.s32.f32 %v1685
  %v1718 = vcvt.s32.f32 %v1686
  %v1719 = vcvt.s32.f32 %v1687
  %v1720 = vcvt.s32.f32 %v1688
  %v1721 = vcvt.s32.f32 %v1689
  %v1722 = vcvt.s32.f32 %v1690
  %v1723 = vcvt.s32.f32 %v1691
  %v1724 = vcvt.s32.f32 %v1692
  %v1725 = vcvt.s32.f32 %v1693
  %v1726 = vcvt.s32.f32 %v1694
  %v1727 = vcvt.s32.f32 %v1695
  %v1728 = vcvt.s32.f32 %v1696
  %v1729 = vcvt.s32.f32 %v1697
  %v1730 = vcvt.s32.f32 %v1698
  %v1731 = vcvt.s32.f32 %v1699
  %v1732 = vadd.f32 %v1443, %v1700
  %v1733 = vadd.f32 %v1444, %v1701
  %v1734 = vadd.f32 %v1445, %v1702
  %v1735 = vadd.f32 %v1446, %v1703
  %v1736 = vadd.f32 %v1447, %v1704
  %v1737 = vadd.f32 %v1448, %v1705
  %v1738 = vadd.f32 %v1449, %v1706
  %v1739 = vadd.f32 %v1450, %v1707
  %v1740 = vadd.f32 %v1451, %v1708
  %v1741 = vadd.f32 %v1452, %v1709
  %v1742 = vadd.f32 %v1453, %v1710
  %v1743 = vadd.f32 %v1454, %v1711
  %v1744 = vadd.f32 %v1455, %v1712
  %v1745 = vadd.f32 %v1456, %v1713
  %v1746 = vadd.f32 %v1457, %v1714
  %v1747 = vadd.f32 %v1458, %v1715
  %v1748 = vadd.f32 %v1459, %v1716
  %v1749 = vadd.f32 %v1460, %v1717
  %v1750 = vadd.f32 %v1461, %v1718
  %v1751 = vadd.f32 %v1462, %v1719
  %v1752 = vadd.f32 %v1463, %v1720
  %v1753 = vadd.f32 %v1464, %v1721
  %v1754 = vadd.f32 %v1465, %v1722
  %v1755 = vadd.f32 %v1466, %v1723
  %v1756 = vadd.f32 %v1467, %v1724
  %v1757 = vadd.f32 %v1468, %v1725
  %v1758 = vadd.f32 %v1469, %v1726
  %v1759 = vadd.f32 %v1470, %v1727
  %v1760 = vadd.f32 %v1471, %v1728
  %v1761 = vadd.f32 %v1472, %v1729
  %v1762 = vadd.f32 %v1473, %v1730
  %v1763 = vadd.f32 %v1474, %v1731
  %v1764 = vadd.s32 %v36, 24
  %v1765 = vlaneseq
  %v1766 = vshrl.u32 %v1765, 7
  %v1767 = vsub.s32 0, %v1766
  %v1768 = vrot.slane %v1764, %v1767
  %s1770 = sor.u32 256, 6
  %1771 = vbcast.lane.b32.xlu0 %v1768, %s1770
  %v1772 = vpop.permute.xlu0 %1771
  %s1774 = sor.u32 256, 14
  %1775 = vbcast.lane.b32.xlu0 %v1768, %s1774
  %v1776 = vpop.permute.xlu0 %1775
  %s1778 = sor.u32 256, 22
  %1779 = vbcast.lane.b32.xlu0 %v1768, %s1778
  %v1780 = vpop.permute.xlu0 %1779
  %s1782 = sor.u32 256, 30
  %1783 = vbcast.lane.b32.xlu0 %v1768, %s1782
  %v1784 = vpop.permute.xlu0 %1783
  %v1785 = vlaneseq
  %v1786 = vshrl.u32 %v1785, 7
  %v1787 = vsub.s32 1, %v1786
  %v1788 = vrot.slane %v1764, %v1787
  %s1790 = sor.u32 256, 6
  %1791 = vbcast.lane.b32.xlu0 %v1788, %s1790
  %v1792 = vpop.permute.xlu0 %1791
  %s1794 = sor.u32 256, 14
  %1795 = vbcast.lane.b32.xlu0 %v1788, %s1794
  %v1796 = vpop.permute.xlu0 %1795
  %s1798 = sor.u32 256, 22
  %1799 = vbcast.lane.b32.xlu0 %v1788, %s1798
  %v1800 = vpop.permute.xlu0 %1799
  %s1802 = sor.u32 256, 30
  %1803 = vbcast.lane.b32.xlu0 %v1788, %s1802
  %v1804 = vpop.permute.xlu0 %1803
  %v1805 = vlaneseq
  %v1806 = vshrl.u32 %v1805, 7
  %v1807 = vsub.s32 2, %v1806
  %v1808 = vrot.slane %v1764, %v1807
  %s1810 = sor.u32 256, 6
  %1811 = vbcast.lane.b32.xlu0 %v1808, %s1810
  %v1812 = vpop.permute.xlu0 %1811
  %s1814 = sor.u32 256, 14
  %1815 = vbcast.lane.b32.xlu0 %v1808, %s1814
  %v1816 = vpop.permute.xlu0 %1815
  %s1818 = sor.u32 256, 22
  %1819 = vbcast.lane.b32.xlu0 %v1808, %s1818
  %v1820 = vpop.permute.xlu0 %1819
  %s1822 = sor.u32 256, 30
  %1823 = vbcast.lane.b32.xlu0 %v1808, %s1822
  %v1824 = vpop.permute.xlu0 %1823
  %v1825 = vlaneseq
  %v1826 = vshrl.u32 %v1825, 7
  %v1827 = vsub.s32 3, %v1826
  %v1828 = vrot.slane %v1764, %v1827
  %s1830 = sor.u32 256, 6
  %1831 = vbcast.lane.b32.xlu0 %v1828, %s1830
  %v1832 = vpop.permute.xlu0 %1831
  %s1834 = sor.u32 256, 14
  %1835 = vbcast.lane.b32.xlu0 %v1828, %s1834
  %v1836 = vpop.permute.xlu0 %1835
  %s1838 = sor.u32 256, 22
  %1839 = vbcast.lane.b32.xlu0 %v1828, %s1838
  %v1840 = vpop.permute.xlu0 %1839
  %s1842 = sor.u32 256, 30
  %1843 = vbcast.lane.b32.xlu0 %v1828, %s1842
  %v1844 = vpop.permute.xlu0 %1843
  %v1845 = vlaneseq
  %v1846 = vshrl.u32 %v1845, 7
  %v1847 = vsub.s32 4, %v1846
  %v1848 = vrot.slane %v1764, %v1847
  %s1850 = sor.u32 256, 6
  %1851 = vbcast.lane.b32.xlu0 %v1848, %s1850
  %v1852 = vpop.permute.xlu0 %1851
  %s1854 = sor.u32 256, 14
  %1855 = vbcast.lane.b32.xlu0 %v1848, %s1854
  %v1856 = vpop.permute.xlu0 %1855
  %s1858 = sor.u32 256, 22
  %1859 = vbcast.lane.b32.xlu0 %v1848, %s1858
  %v1860 = vpop.permute.xlu0 %1859
  %s1862 = sor.u32 256, 30
  %1863 = vbcast.lane.b32.xlu0 %v1848, %s1862
  %v1864 = vpop.permute.xlu0 %1863
  %v1865 = vlaneseq
  %v1866 = vshrl.u32 %v1865, 7
  %v1867 = vsub.s32 5, %v1866
  %v1868 = vrot.slane %v1764, %v1867
  %s1870 = sor.u32 256, 6
  %1871 = vbcast.lane.b32.xlu0 %v1868, %s1870
  %v1872 = vpop.permute.xlu0 %1871
  %s1874 = sor.u32 256, 14
  %1875 = vbcast.lane.b32.xlu0 %v1868, %s1874
  %v1876 = vpop.permute.xlu0 %1875
  %s1878 = sor.u32 256, 22
  %1879 = vbcast.lane.b32.xlu0 %v1868, %s1878
  %v1880 = vpop.permute.xlu0 %1879
  %s1882 = sor.u32 256, 30
  %1883 = vbcast.lane.b32.xlu0 %v1868, %s1882
  %v1884 = vpop.permute.xlu0 %1883
  %v1885 = vlaneseq
  %v1886 = vshrl.u32 %v1885, 7
  %v1887 = vsub.s32 6, %v1886
  %v1888 = vrot.slane %v1764, %v1887
  %s1890 = sor.u32 256, 6
  %1891 = vbcast.lane.b32.xlu0 %v1888, %s1890
  %v1892 = vpop.permute.xlu0 %1891
  %s1894 = sor.u32 256, 14
  %1895 = vbcast.lane.b32.xlu0 %v1888, %s1894
  %v1896 = vpop.permute.xlu0 %1895
  %s1898 = sor.u32 256, 22
  %1899 = vbcast.lane.b32.xlu0 %v1888, %s1898
  %v1900 = vpop.permute.xlu0 %1899
  %s1902 = sor.u32 256, 30
  %1903 = vbcast.lane.b32.xlu0 %v1888, %s1902
  %v1904 = vpop.permute.xlu0 %1903
  %v1905 = vlaneseq
  %v1906 = vshrl.u32 %v1905, 7
  %v1907 = vsub.s32 7, %v1906
  %v1908 = vrot.slane %v1764, %v1907
  %s1910 = sor.u32 256, 6
  %1911 = vbcast.lane.b32.xlu0 %v1908, %s1910
  %v1912 = vpop.permute.xlu0 %1911
  %s1914 = sor.u32 256, 14
  %1915 = vbcast.lane.b32.xlu0 %v1908, %s1914
  %v1916 = vpop.permute.xlu0 %1915
  %s1918 = sor.u32 256, 22
  %1919 = vbcast.lane.b32.xlu0 %v1908, %s1918
  %v1920 = vpop.permute.xlu0 %1919
  %s1922 = sor.u32 256, 30
  %1923 = vbcast.lane.b32.xlu0 %v1908, %s1922
  %v1924 = vpop.permute.xlu0 %1923
  %vm1925 = vcmp.eq.s32.totalorder %v38, %v1772
  %vm1926 = vcmp.eq.s32.totalorder %v38, %v1776
  %vm1927 = vcmp.eq.s32.totalorder %v38, %v1780
  %vm1928 = vcmp.eq.s32.totalorder %v38, %v1784
  %vm1929 = vcmp.eq.s32.totalorder %v38, %v1792
  %vm1930 = vcmp.eq.s32.totalorder %v38, %v1796
  %vm1931 = vcmp.eq.s32.totalorder %v38, %v1800
  %vm1932 = vcmp.eq.s32.totalorder %v38, %v1804
  %vm1933 = vcmp.eq.s32.totalorder %v38, %v1812
  %vm1934 = vcmp.eq.s32.totalorder %v38, %v1816
  %vm1935 = vcmp.eq.s32.totalorder %v38, %v1820
  %vm1936 = vcmp.eq.s32.totalorder %v38, %v1824
  %vm1937 = vcmp.eq.s32.totalorder %v38, %v1832
  %vm1938 = vcmp.eq.s32.totalorder %v38, %v1836
  %vm1939 = vcmp.eq.s32.totalorder %v38, %v1840
  %vm1940 = vcmp.eq.s32.totalorder %v38, %v1844
  %vm1941 = vcmp.eq.s32.totalorder %v38, %v1852
  %vm1942 = vcmp.eq.s32.totalorder %v38, %v1856
  %vm1943 = vcmp.eq.s32.totalorder %v38, %v1860
  %vm1944 = vcmp.eq.s32.totalorder %v38, %v1864
  %vm1945 = vcmp.eq.s32.totalorder %v38, %v1872
  %vm1946 = vcmp.eq.s32.totalorder %v38, %v1876
  %vm1947 = vcmp.eq.s32.totalorder %v38, %v1880
  %vm1948 = vcmp.eq.s32.totalorder %v38, %v1884
  %vm1949 = vcmp.eq.s32.totalorder %v38, %v1892
  %vm1950 = vcmp.eq.s32.totalorder %v38, %v1896
  %vm1951 = vcmp.eq.s32.totalorder %v38, %v1900
  %vm1952 = vcmp.eq.s32.totalorder %v38, %v1904
  %vm1953 = vcmp.eq.s32.totalorder %v38, %v1912
  %vm1954 = vcmp.eq.s32.totalorder %v38, %v1916
  %vm1955 = vcmp.eq.s32.totalorder %v38, %v1920
  %vm1956 = vcmp.eq.s32.totalorder %v38, %v1924
  %v1957 = vsel %vm1925, 1, 0
  %v1958 = vsel %vm1926, 1, 0
  %v1959 = vsel %vm1927, 1, 0
  %v1960 = vsel %vm1928, 1, 0
  %v1961 = vsel %vm1929, 1, 0
  %v1962 = vsel %vm1930, 1, 0
  %v1963 = vsel %vm1931, 1, 0
  %v1964 = vsel %vm1932, 1, 0
  %v1965 = vsel %vm1933, 1, 0
  %v1966 = vsel %vm1934, 1, 0
  %v1967 = vsel %vm1935, 1, 0
  %v1968 = vsel %vm1936, 1, 0
  %v1969 = vsel %vm1937, 1, 0
  %v1970 = vsel %vm1938, 1, 0
  %v1971 = vsel %vm1939, 1, 0
  %v1972 = vsel %vm1940, 1, 0
  %v1973 = vsel %vm1941, 1, 0
  %v1974 = vsel %vm1942, 1, 0
  %v1975 = vsel %vm1943, 1, 0
  %v1976 = vsel %vm1944, 1, 0
  %v1977 = vsel %vm1945, 1, 0
  %v1978 = vsel %vm1946, 1, 0
  %v1979 = vsel %vm1947, 1, 0
  %v1980 = vsel %vm1948, 1, 0
  %v1981 = vsel %vm1949, 1, 0
  %v1982 = vsel %vm1950, 1, 0
  %v1983 = vsel %vm1951, 1, 0
  %v1984 = vsel %vm1952, 1, 0
  %v1985 = vsel %vm1953, 1, 0
  %v1986 = vsel %vm1954, 1, 0
  %v1987 = vsel %vm1955, 1, 0
  %v1988 = vsel %vm1956, 1, 0
  %v1989 = vcvt.s32.f32 %v1957
  %v1990 = vcvt.s32.f32 %v1958
  %v1991 = vcvt.s32.f32 %v1959
  %v1992 = vcvt.s32.f32 %v1960
  %v1993 = vcvt.s32.f32 %v1961
  %v1994 = vcvt.s32.f32 %v1962
  %v1995 = vcvt.s32.f32 %v1963
  %v1996 = vcvt.s32.f32 %v1964
  %v1997 = vcvt.s32.f32 %v1965
  %v1998 = vcvt.s32.f32 %v1966
  %v1999 = vcvt.s32.f32 %v1967
  %v2000 = vcvt.s32.f32 %v1968
  %v2001 = vcvt.s32.f32 %v1969
  %v2002 = vcvt.s32.f32 %v1970
  %v2003 = vcvt.s32.f32 %v1971
  %v2004 = vcvt.s32.f32 %v1972
  %v2005 = vcvt.s32.f32 %v1973
  %v2006 = vcvt.s32.f32 %v1974
  %v2007 = vcvt.s32.f32 %v1975
  %v2008 = vcvt.s32.f32 %v1976
  %v2009 = vcvt.s32.f32 %v1977
  %v2010 = vcvt.s32.f32 %v1978
  %v2011 = vcvt.s32.f32 %v1979
  %v2012 = vcvt.s32.f32 %v1980
  %v2013 = vcvt.s32.f32 %v1981
  %v2014 = vcvt.s32.f32 %v1982
  %v2015 = vcvt.s32.f32 %v1983
  %v2016 = vcvt.s32.f32 %v1984
  %v2017 = vcvt.s32.f32 %v1985
  %v2018 = vcvt.s32.f32 %v1986
  %v2019 = vcvt.s32.f32 %v1987
  %v2020 = vcvt.s32.f32 %v1988
  %v2021 = vadd.f32 %v1732, %v1989
  %v2022 = vadd.f32 %v1733, %v1990
  %v2023 = vadd.f32 %v1734, %v1991
  %v2024 = vadd.f32 %v1735, %v1992
  %v2025 = vadd.f32 %v1736, %v1993
  %v2026 = vadd.f32 %v1737, %v1994
  %v2027 = vadd.f32 %v1738, %v1995
  %v2028 = vadd.f32 %v1739, %v1996
  %v2029 = vadd.f32 %v1740, %v1997
  %v2030 = vadd.f32 %v1741, %v1998
  %v2031 = vadd.f32 %v1742, %v1999
  %v2032 = vadd.f32 %v1743, %v2000
  %v2033 = vadd.f32 %v1744, %v2001
  %v2034 = vadd.f32 %v1745, %v2002
  %v2035 = vadd.f32 %v1746, %v2003
  %v2036 = vadd.f32 %v1747, %v2004
  %v2037 = vadd.f32 %v1748, %v2005
  %v2038 = vadd.f32 %v1749, %v2006
  %v2039 = vadd.f32 %v1750, %v2007
  %v2040 = vadd.f32 %v1751, %v2008
  %v2041 = vadd.f32 %v1752, %v2009
  %v2042 = vadd.f32 %v1753, %v2010
  %v2043 = vadd.f32 %v1754, %v2011
  %v2044 = vadd.f32 %v1755, %v2012
  %v2045 = vadd.f32 %v1756, %v2013
  %v2046 = vadd.f32 %v1757, %v2014
  %v2047 = vadd.f32 %v1758, %v2015
  %v2048 = vadd.f32 %v1759, %v2016
  %v2049 = vadd.f32 %v1760, %v2017
  %v2050 = vadd.f32 %v1761, %v2018
  %v2051 = vadd.f32 %v1762, %v2019
  %v2052 = vadd.f32 %v1763, %v2020
  %v2053 = vadd.s32 %v36, 28
  %v2054 = vlaneseq
  %v2055 = vshrl.u32 %v2054, 7
  %v2056 = vsub.s32 0, %v2055
  %v2057 = vrot.slane %v2053, %v2056
  %s2059 = sor.u32 256, 7
  %2060 = vbcast.lane.b32.xlu0 %v2057, %s2059
  %v2061 = vpop.permute.xlu0 %2060
  %s2063 = sor.u32 256, 15
  %2064 = vbcast.lane.b32.xlu0 %v2057, %s2063
  %v2065 = vpop.permute.xlu0 %2064
  %s2067 = sor.u32 256, 23
  %2068 = vbcast.lane.b32.xlu0 %v2057, %s2067
  %v2069 = vpop.permute.xlu0 %2068
  %s2071 = sor.u32 256, 31
  %2072 = vbcast.lane.b32.xlu0 %v2057, %s2071
  %v2073 = vpop.permute.xlu0 %2072
  %v2074 = vlaneseq
  %v2075 = vshrl.u32 %v2074, 7
  %v2076 = vsub.s32 1, %v2075
  %v2077 = vrot.slane %v2053, %v2076
  %s2079 = sor.u32 256, 7
  %2080 = vbcast.lane.b32.xlu0 %v2077, %s2079
  %v2081 = vpop.permute.xlu0 %2080
  %s2083 = sor.u32 256, 15
  %2084 = vbcast.lane.b32.xlu0 %v2077, %s2083
  %v2085 = vpop.permute.xlu0 %2084
  %s2087 = sor.u32 256, 23
  %2088 = vbcast.lane.b32.xlu0 %v2077, %s2087
  %v2089 = vpop.permute.xlu0 %2088
  %s2091 = sor.u32 256, 31
  %2092 = vbcast.lane.b32.xlu0 %v2077, %s2091
  %v2093 = vpop.permute.xlu0 %2092
  %v2094 = vlaneseq
  %v2095 = vshrl.u32 %v2094, 7
  %v2096 = vsub.s32 2, %v2095
  %v2097 = vrot.slane %v2053, %v2096
  %s2099 = sor.u32 256, 7
  %2100 = vbcast.lane.b32.xlu0 %v2097, %s2099
  %v2101 = vpop.permute.xlu0 %2100
  %s2103 = sor.u32 256, 15
  %2104 = vbcast.lane.b32.xlu0 %v2097, %s2103
  %v2105 = vpop.permute.xlu0 %2104
  %s2107 = sor.u32 256, 23
  %2108 = vbcast.lane.b32.xlu0 %v2097, %s2107
  %v2109 = vpop.permute.xlu0 %2108
  %s2111 = sor.u32 256, 31
  %2112 = vbcast.lane.b32.xlu0 %v2097, %s2111
  %v2113 = vpop.permute.xlu0 %2112
  %v2114 = vlaneseq
  %v2115 = vshrl.u32 %v2114, 7
  %v2116 = vsub.s32 3, %v2115
  %v2117 = vrot.slane %v2053, %v2116
  %s2119 = sor.u32 256, 7
  %2120 = vbcast.lane.b32.xlu0 %v2117, %s2119
  %v2121 = vpop.permute.xlu0 %2120
  %s2123 = sor.u32 256, 15
  %2124 = vbcast.lane.b32.xlu0 %v2117, %s2123
  %v2125 = vpop.permute.xlu0 %2124
  %s2127 = sor.u32 256, 23
  %2128 = vbcast.lane.b32.xlu0 %v2117, %s2127
  %v2129 = vpop.permute.xlu0 %2128
  %s2131 = sor.u32 256, 31
  %2132 = vbcast.lane.b32.xlu0 %v2117, %s2131
  %v2133 = vpop.permute.xlu0 %2132
  %v2134 = vlaneseq
  %v2135 = vshrl.u32 %v2134, 7
  %v2136 = vsub.s32 4, %v2135
  %v2137 = vrot.slane %v2053, %v2136
  %s2139 = sor.u32 256, 7
  %2140 = vbcast.lane.b32.xlu0 %v2137, %s2139
  %v2141 = vpop.permute.xlu0 %2140
  %s2143 = sor.u32 256, 15
  %2144 = vbcast.lane.b32.xlu0 %v2137, %s2143
  %v2145 = vpop.permute.xlu0 %2144
  %s2147 = sor.u32 256, 23
  %2148 = vbcast.lane.b32.xlu0 %v2137, %s2147
  %v2149 = vpop.permute.xlu0 %2148
  %s2151 = sor.u32 256, 31
  %2152 = vbcast.lane.b32.xlu0 %v2137, %s2151
  %v2153 = vpop.permute.xlu0 %2152
  %v2154 = vlaneseq
  %v2155 = vshrl.u32 %v2154, 7
  %v2156 = vsub.s32 5, %v2155
  %v2157 = vrot.slane %v2053, %v2156
  %s2159 = sor.u32 256, 7
  %2160 = vbcast.lane.b32.xlu0 %v2157, %s2159
  %v2161 = vpop.permute.xlu0 %2160
  %s2163 = sor.u32 256, 15
  %2164 = vbcast.lane.b32.xlu0 %v2157, %s2163
  %v2165 = vpop.permute.xlu0 %2164
  %s2167 = sor.u32 256, 23
  %2168 = vbcast.lane.b32.xlu0 %v2157, %s2167
  %v2169 = vpop.permute.xlu0 %2168
  %s2171 = sor.u32 256, 31
  %2172 = vbcast.lane.b32.xlu0 %v2157, %s2171
  %v2173 = vpop.permute.xlu0 %2172
  %v2174 = vlaneseq
  %v2175 = vshrl.u32 %v2174, 7
  %v2176 = vsub.s32 6, %v2175
  %v2177 = vrot.slane %v2053, %v2176
  %s2179 = sor.u32 256, 7
  %2180 = vbcast.lane.b32.xlu0 %v2177, %s2179
  %v2181 = vpop.permute.xlu0 %2180
  %s2183 = sor.u32 256, 15
  %2184 = vbcast.lane.b32.xlu0 %v2177, %s2183
  %v2185 = vpop.permute.xlu0 %2184
  %s2187 = sor.u32 256, 23
  %2188 = vbcast.lane.b32.xlu0 %v2177, %s2187
  %v2189 = vpop.permute.xlu0 %2188
  %s2191 = sor.u32 256, 31
  %2192 = vbcast.lane.b32.xlu0 %v2177, %s2191
  %v2193 = vpop.permute.xlu0 %2192
  %v2194 = vlaneseq
  %v2195 = vshrl.u32 %v2194, 7
  %v2196 = vsub.s32 7, %v2195
  %v2197 = vrot.slane %v2053, %v2196
  %s2199 = sor.u32 256, 7
  %2200 = vbcast.lane.b32.xlu0 %v2197, %s2199
  %v2201 = vpop.permute.xlu0 %2200
  %s2203 = sor.u32 256, 15
  %2204 = vbcast.lane.b32.xlu0 %v2197, %s2203
  %v2205 = vpop.permute.xlu0 %2204
  %s2207 = sor.u32 256, 23
  %2208 = vbcast.lane.b32.xlu0 %v2197, %s2207
  %v2209 = vpop.permute.xlu0 %2208
  %s2211 = sor.u32 256, 31
  %2212 = vbcast.lane.b32.xlu0 %v2197, %s2211
  %v2213 = vpop.permute.xlu0 %2212
  %vm2214 = vcmp.eq.s32.totalorder %v38, %v2061
  %vm2215 = vcmp.eq.s32.totalorder %v38, %v2065
  %vm2216 = vcmp.eq.s32.totalorder %v38, %v2069
  %vm2217 = vcmp.eq.s32.totalorder %v38, %v2073
  %vm2218 = vcmp.eq.s32.totalorder %v38, %v2081
  %vm2219 = vcmp.eq.s32.totalorder %v38, %v2085
  %vm2220 = vcmp.eq.s32.totalorder %v38, %v2089
  %vm2221 = vcmp.eq.s32.totalorder %v38, %v2093
  %vm2222 = vcmp.eq.s32.totalorder %v38, %v2101
  %vm2223 = vcmp.eq.s32.totalorder %v38, %v2105
  %vm2224 = vcmp.eq.s32.totalorder %v38, %v2109
  %vm2225 = vcmp.eq.s32.totalorder %v38, %v2113
  %vm2226 = vcmp.eq.s32.totalorder %v38, %v2121
  %vm2227 = vcmp.eq.s32.totalorder %v38, %v2125
  %vm2228 = vcmp.eq.s32.totalorder %v38, %v2129
  %vm2229 = vcmp.eq.s32.totalorder %v38, %v2133
  %vm2230 = vcmp.eq.s32.totalorder %v38, %v2141
  %vm2231 = vcmp.eq.s32.totalorder %v38, %v2145
  %vm2232 = vcmp.eq.s32.totalorder %v38, %v2149
  %vm2233 = vcmp.eq.s32.totalorder %v38, %v2153
  %vm2234 = vcmp.eq.s32.totalorder %v38, %v2161
  %vm2235 = vcmp.eq.s32.totalorder %v38, %v2165
  %vm2236 = vcmp.eq.s32.totalorder %v38, %v2169
  %vm2237 = vcmp.eq.s32.totalorder %v38, %v2173
  %vm2238 = vcmp.eq.s32.totalorder %v38, %v2181
  %vm2239 = vcmp.eq.s32.totalorder %v38, %v2185
  %vm2240 = vcmp.eq.s32.totalorder %v38, %v2189
  %vm2241 = vcmp.eq.s32.totalorder %v38, %v2193
  %vm2242 = vcmp.eq.s32.totalorder %v38, %v2201
  %vm2243 = vcmp.eq.s32.totalorder %v38, %v2205
  %vm2244 = vcmp.eq.s32.totalorder %v38, %v2209
  %vm2245 = vcmp.eq.s32.totalorder %v38, %v2213
  %v2246 = vsel %vm2214, 1, 0
  %v2247 = vsel %vm2215, 1, 0
  %v2248 = vsel %vm2216, 1, 0
  %v2249 = vsel %vm2217, 1, 0
  %v2250 = vsel %vm2218, 1, 0
  %v2251 = vsel %vm2219, 1, 0
  %v2252 = vsel %vm2220, 1, 0
  %v2253 = vsel %vm2221, 1, 0
  %v2254 = vsel %vm2222, 1, 0
  %v2255 = vsel %vm2223, 1, 0
  %v2256 = vsel %vm2224, 1, 0
  %v2257 = vsel %vm2225, 1, 0
  %v2258 = vsel %vm2226, 1, 0
  %v2259 = vsel %vm2227, 1, 0
  %v2260 = vsel %vm2228, 1, 0
  %v2261 = vsel %vm2229, 1, 0
  %v2262 = vsel %vm2230, 1, 0
  %v2263 = vsel %vm2231, 1, 0
  %v2264 = vsel %vm2232, 1, 0
  %v2265 = vsel %vm2233, 1, 0
  %v2266 = vsel %vm2234, 1, 0
  %v2267 = vsel %vm2235, 1, 0
  %v2268 = vsel %vm2236, 1, 0
  %v2269 = vsel %vm2237, 1, 0
  %v2270 = vsel %vm2238, 1, 0
  %v2271 = vsel %vm2239, 1, 0
  %v2272 = vsel %vm2240, 1, 0
  %v2273 = vsel %vm2241, 1, 0
  %v2274 = vsel %vm2242, 1, 0
  %v2275 = vsel %vm2243, 1, 0
  %v2276 = vsel %vm2244, 1, 0
  %v2277 = vsel %vm2245, 1, 0
  %v2278 = vcvt.s32.f32 %v2246
  %v2279 = vcvt.s32.f32 %v2247
  %v2280 = vcvt.s32.f32 %v2248
  %v2281 = vcvt.s32.f32 %v2249
  %v2282 = vcvt.s32.f32 %v2250
  %v2283 = vcvt.s32.f32 %v2251
  %v2284 = vcvt.s32.f32 %v2252
  %v2285 = vcvt.s32.f32 %v2253
  %v2286 = vcvt.s32.f32 %v2254
  %v2287 = vcvt.s32.f32 %v2255
  %v2288 = vcvt.s32.f32 %v2256
  %v2289 = vcvt.s32.f32 %v2257
  %v2290 = vcvt.s32.f32 %v2258
  %v2291 = vcvt.s32.f32 %v2259
  %v2292 = vcvt.s32.f32 %v2260
  %v2293 = vcvt.s32.f32 %v2261
  %v2294 = vcvt.s32.f32 %v2262
  %v2295 = vcvt.s32.f32 %v2263
  %v2296 = vcvt.s32.f32 %v2264
  %v2297 = vcvt.s32.f32 %v2265
  %v2298 = vcvt.s32.f32 %v2266
  %v2299 = vcvt.s32.f32 %v2267
  %v2300 = vcvt.s32.f32 %v2268
  %v2301 = vcvt.s32.f32 %v2269
  %v2302 = vcvt.s32.f32 %v2270
  %v2303 = vcvt.s32.f32 %v2271
  %v2304 = vcvt.s32.f32 %v2272
  %v2305 = vcvt.s32.f32 %v2273
  %v2306 = vcvt.s32.f32 %v2274
  %v2307 = vcvt.s32.f32 %v2275
  %v2308 = vcvt.s32.f32 %v2276
  %v2309 = vcvt.s32.f32 %v2277
  %v2310 = vadd.f32 %v2021, %v2278
  %v2311 = vadd.f32 %v2022, %v2279
  %v2312 = vadd.f32 %v2023, %v2280
  %v2313 = vadd.f32 %v2024, %v2281
  %v2314 = vadd.f32 %v2025, %v2282
  %v2315 = vadd.f32 %v2026, %v2283
  %v2316 = vadd.f32 %v2027, %v2284
  %v2317 = vadd.f32 %v2028, %v2285
  %v2318 = vadd.f32 %v2029, %v2286
  %v2319 = vadd.f32 %v2030, %v2287
  %v2320 = vadd.f32 %v2031, %v2288
  %v2321 = vadd.f32 %v2032, %v2289
  %v2322 = vadd.f32 %v2033, %v2290
  %v2323 = vadd.f32 %v2034, %v2291
  %v2324 = vadd.f32 %v2035, %v2292
  %v2325 = vadd.f32 %v2036, %v2293
  %v2326 = vadd.f32 %v2037, %v2294
  %v2327 = vadd.f32 %v2038, %v2295
  %v2328 = vadd.f32 %v2039, %v2296
  %v2329 = vadd.f32 %v2040, %v2297
  %v2330 = vadd.f32 %v2041, %v2298
  %v2331 = vadd.f32 %v2042, %v2299
  %v2332 = vadd.f32 %v2043, %v2300
  %v2333 = vadd.f32 %v2044, %v2301
  %v2334 = vadd.f32 %v2045, %v2302
  %v2335 = vadd.f32 %v2046, %v2303
  %v2336 = vadd.f32 %v2047, %v2304
  %v2337 = vadd.f32 %v2048, %v2305
  %v2338 = vadd.f32 %v2049, %v2306
  %v2339 = vadd.f32 %v2050, %v2307
  %v2340 = vadd.f32 %v2051, %v2308
  %v2341 = vadd.f32 %v2052, %v2309
  %v2342 = vpack.c.bf16 %v2311, %v2310
  %v2343 = vpack.c.bf16 %v2313, %v2312
  %v2344 = vpack.c.bf16 %v2315, %v2314
  %v2345 = vpack.c.bf16 %v2317, %v2316
  %v2346 = vpack.c.bf16 %v2319, %v2318
  %v2347 = vpack.c.bf16 %v2321, %v2320
  %v2348 = vpack.c.bf16 %v2323, %v2322
  %v2349 = vpack.c.bf16 %v2325, %v2324
  %v2350 = vpack.c.bf16 %v2327, %v2326
  %v2351 = vpack.c.bf16 %v2329, %v2328
  %v2352 = vpack.c.bf16 %v2331, %v2330
  %v2353 = vpack.c.bf16 %v2333, %v2332
  %v2354 = vpack.c.bf16 %v2335, %v2334
  %v2355 = vpack.c.bf16 %v2337, %v2336
  %v2356 = vpack.c.bf16 %v2339, %v2338
  %v2357 = vpack.c.bf16 %v2341, %v2340
  %v2358 = vld [vmem:[%s2] sm:$0xf]
  %v2359 = vld [vmem:[%s2 + $0x4] sm:$0xf]
  %v2360 = vld [vmem:[%s2 + $0x8] sm:$0xf]
  %v2361 = vld [vmem:[%s2 + $0xc] sm:$0xf]
  %v2362 = vld [vmem:[%s7] sm:$0x1]
  %v2363 = vlaneseq
  %v2364 = vshrl.u32 %v2363, 7
  %v2365 = vsub.s32 0, %v2364
  %v2366 = vrot.slane %v2362, %v2365
  %v2371 = vunpack.c.l.b16 %v2358
  %v2372 = vunpack.c.l.b16 %v2359
  %v2373 = vunpack.c.l.b16 %v2360
  %v2374 = vunpack.c.l.b16 %v2361
  %v2375 = vpack.c.b16 %v2372, %v2371
  %v2376 = vpack.c.b16 %v2374, %v2373
  %vm2379 = vcmask 261120
  %v2381 = vsel %vm2379, %v2342, 0
  %v2384 = vsel %vm2379, %v2343, 0
  %v2387 = vsel %vm2379, %v2344, 0
  %v2390 = vsel %vm2379, %v2345, 0
  %v2393 = vsel %vm2379, %v2346, 0
  %v2396 = vsel %vm2379, %v2347, 0
  %v2399 = vsel %vm2379, %v2348, 0
  %v2402 = vsel %vm2379, %v2349, 0
  %v2405 = vsel %vm2379, %v2350, 0
  %v2408 = vsel %vm2379, %v2351, 0
  %v2411 = vsel %vm2379, %v2352, 0
  %v2414 = vsel %vm2379, %v2353, 0
  %v2417 = vsel %vm2379, %v2354, 0
  %v2420 = vsel %vm2379, %v2355, 0
  %v2423 = vsel %vm2379, %v2356, 0
  %v2426 = vsel %vm2379, %v2357, 0
  %2428 = vmatprep.subr.bf16.mxu0 0
  %2429 = vmatpush1.bf16.msra.mxu0 %v2375
  %2430 = vmatprep.subr.bf16.mxu0 0
  %2431 = vmatpush1.bf16.msra.mxu0 %v2376
  %2432 = vmatprep.subr.bf16.mxu0 0
  %2433 = vmatpush1.bf16.msra.mxu0 0
  %2434 = vmatprep.subr.bf16.mxu0 0
  %2435 = vmatpush1.bf16.msra.mxu0 0
  %2436 = vmatprep.subr.bf16.mxu0 0
  %2437 = vmatpush1.bf16.msra.mxu0 0
  %2438 = vmatprep.subr.bf16.mxu0 0
  %2439 = vmatpush1.bf16.msra.mxu0 0
  %2440 = vmatprep.subr.bf16.mxu0 0
  %2441 = vmatpush1.bf16.msra.mxu0 0
  %2442 = vmatprep.subr.bf16.mxu0 0
  %2443 = vmatpush1.bf16.msra.mxu0 0
  %2444 = vmatprep.subr.bf16.mxu0 0
  %2445 = vmatpush1.bf16.msra.mxu0 0
  %2446 = vmatprep.subr.bf16.mxu0 0
  %2447 = vmatpush1.bf16.msra.mxu0 0
  %2448 = vmatprep.subr.bf16.mxu0 0
  %2449 = vmatpush1.bf16.msra.mxu0 0
  %2450 = vmatprep.subr.bf16.mxu0 0
  %2451 = vmatpush1.bf16.msra.mxu0 0
  %2452 = vmatprep.subr.bf16.mxu0 0
  %2453 = vmatpush1.bf16.msra.mxu0 0
  %2454 = vmatprep.subr.bf16.mxu0 0
  %2455 = vmatpush1.bf16.msra.mxu0 0
  %2456 = vmatprep.subr.bf16.mxu0 0
  %2457 = vmatpush1.bf16.msra.mxu0 0
  %2458 = vmatprep.subr.bf16.mxu0 0
  %2459 = vmatpush1.bf16.msra.mxu0 0
  %2460 = vmatprep.mubr.bf16.mxu0 0
  %2461 = vmatmul.mubr.bf16.gmra.mrb[0].mxu0 %v2381
  %v2462 = vpop.f32.mrb[0].mxu0
  %v2463 = vadd.f32 %v2366, %v2462
  %v2464 = vpop.f32.mrb[0].mxu0
  %v2465 = vpop.f32.mrb[0].mxu0
  %v2466 = vadd.f32 %v2366, %v2465
  %v2467 = vpop.f32.mrb[0].mxu0
  %2468 = vmatprep.mubr.bf16.mxu0 0
  %2469 = vmatmul.mubr.bf16.gmra.mrb[0].mxu0 %v2384
  %v2470 = vpop.f32.mrb[0].mxu0
  %v2471 = vadd.f32 %v2366, %v2470
  %v2472 = vpop.f32.mrb[0].mxu0
  %v2473 = vpop.f32.mrb[0].mxu0
  %v2474 = vadd.f32 %v2366, %v2473
  %v2475 = vpop.f32.mrb[0].mxu0
  %2476 = vmatprep.mubr.bf16.mxu0 0
  %2477 = vmatmul.mubr.bf16.gmra.mrb[0].mxu0 %v2387
  %v2478 = vpop.f32.mrb[0].mxu0
  %v2479 = vadd.f32 %v2366, %v2478
  %v2480 = vpop.f32.mrb[0].mxu0
  %v2481 = vpop.f32.mrb[0].mxu0
  %v2482 = vadd.f32 %v2366, %v2481
  %v2483 = vpop.f32.mrb[0].mxu0
  %2484 = vmatprep.mubr.bf16.mxu0 0
  %2485 = vmatmul.mubr.bf16.gmra.mrb[0].mxu0 %v2390
  %v2486 = vpop.f32.mrb[0].mxu0
  %v2487 = vadd.f32 %v2366, %v2486
  %v2488 = vpop.f32.mrb[0].mxu0
  %v2489 = vpop.f32.mrb[0].mxu0
  %v2490 = vadd.f32 %v2366, %v2489
  %v2491 = vpop.f32.mrb[0].mxu0
  %2492 = vmatprep.mubr.bf16.mxu0 0
  %2493 = vmatmul.mubr.bf16.gmra.mrb[0].mxu0 %v2393
  %v2494 = vpop.f32.mrb[0].mxu0
  %v2495 = vadd.f32 %v2366, %v2494
  %v2496 = vpop.f32.mrb[0].mxu0
  %v2497 = vpop.f32.mrb[0].mxu0
  %v2498 = vadd.f32 %v2366, %v2497
  %v2499 = vpop.f32.mrb[0].mxu0
  %2500 = vmatprep.mubr.bf16.mxu0 0
  %2501 = vmatmul.mubr.bf16.gmra.mrb[0].mxu0 %v2396
  %v2502 = vpop.f32.mrb[0].mxu0
  %v2503 = vadd.f32 %v2366, %v2502
  %v2504 = vpop.f32.mrb[0].mxu0
  %v2505 = vpop.f32.mrb[0].mxu0
  %v2506 = vadd.f32 %v2366, %v2505
  %v2507 = vpop.f32.mrb[0].mxu0
  %2508 = vmatprep.mubr.bf16.mxu0 0
  %2509 = vmatmul.mubr.bf16.gmra.mrb[0].mxu0 %v2399
  %v2510 = vpop.f32.mrb[0].mxu0
  %v2511 = vadd.f32 %v2366, %v2510
  %v2512 = vpop.f32.mrb[0].mxu0
  %v2513 = vpop.f32.mrb[0].mxu0
  %v2514 = vadd.f32 %v2366, %v2513
  %v2515 = vpop.f32.mrb[0].mxu0
  %2516 = vmatprep.mubr.bf16.mxu0 0
  %2517 = vmatmul.mubr.bf16.gmra.mrb[0].mxu0 %v2402
  %v2518 = vpop.f32.mrb[0].mxu0
  %v2519 = vadd.f32 %v2366, %v2518
  %v2520 = vpop.f32.mrb[0].mxu0
  %v2521 = vpop.f32.mrb[0].mxu0
  %v2522 = vadd.f32 %v2366, %v2521
  %v2523 = vpop.f32.mrb[0].mxu0
  %2524 = vmatprep.mubr.bf16.mxu0 0
  %2525 = vmatmul.mubr.bf16.gmra.mrb[0].mxu0 %v2405
  %v2526 = vpop.f32.mrb[0].mxu0
  %v2527 = vadd.f32 %v2366, %v2526
  %v2528 = vpop.f32.mrb[0].mxu0
  %v2529 = vpop.f32.mrb[0].mxu0
  %v2530 = vadd.f32 %v2366, %v2529
  %v2531 = vpop.f32.mrb[0].mxu0
  %2532 = vmatprep.mubr.bf16.mxu0 0
  %2533 = vmatmul.mubr.bf16.gmra.mrb[0].mxu0 %v2408
  %v2534 = vpop.f32.mrb[0].mxu0
  %v2535 = vadd.f32 %v2366, %v2534
  %v2536 = vpop.f32.mrb[0].mxu0
  %v2537 = vpop.f32.mrb[0].mxu0
  %v2538 = vadd.f32 %v2366, %v2537
  %v2539 = vpop.f32.mrb[0].mxu0
  %2540 = vmatprep.mubr.bf16.mxu0 0
  %2541 = vmatmul.mubr.bf16.gmra.mrb[0].mxu0 %v2411
  %v2542 = vpop.f32.mrb[0].mxu0
  %v2543 = vadd.f32 %v2366, %v2542
  %v2544 = vpop.f32.mrb[0].mxu0
  %v2545 = vpop.f32.mrb[0].mxu0
  %v2546 = vadd.f32 %v2366, %v2545
  %v2547 = vpop.f32.mrb[0].mxu0
  %2548 = vmatprep.mubr.bf16.mxu0 0
  %2549 = vmatmul.mubr.bf16.gmra.mrb[0].mxu0 %v2414
  %v2550 = vpop.f32.mrb[0].mxu0
  %v2551 = vadd.f32 %v2366, %v2550
  %v2552 = vpop.f32.mrb[0].mxu0
  %v2553 = vpop.f32.mrb[0].mxu0
  %v2554 = vadd.f32 %v2366, %v2553
  %v2555 = vpop.f32.mrb[0].mxu0
  %2556 = vmatprep.mubr.bf16.mxu0 0
  %2557 = vmatmul.mubr.bf16.gmra.mrb[0].mxu0 %v2417
  %v2558 = vpop.f32.mrb[0].mxu0
  %v2559 = vadd.f32 %v2366, %v2558
  %v2560 = vpop.f32.mrb[0].mxu0
  %v2561 = vpop.f32.mrb[0].mxu0
  %v2562 = vadd.f32 %v2366, %v2561
  %v2563 = vpop.f32.mrb[0].mxu0
  %2564 = vmatprep.mubr.bf16.mxu0 0
  %2565 = vmatmul.mubr.bf16.gmra.mrb[0].mxu0 %v2420
  %v2566 = vpop.f32.mrb[0].mxu0
  %v2567 = vadd.f32 %v2366, %v2566
  %v2568 = vpop.f32.mrb[0].mxu0
  %v2569 = vpop.f32.mrb[0].mxu0
  %v2570 = vadd.f32 %v2366, %v2569
  %v2571 = vpop.f32.mrb[0].mxu0
  %2572 = vmatprep.mubr.bf16.mxu0 0
  %2573 = vmatmul.mubr.bf16.gmra.mrb[0].mxu0 %v2423
  %v2574 = vpop.f32.mrb[0].mxu0
  %v2575 = vadd.f32 %v2366, %v2574
  %v2576 = vpop.f32.mrb[0].mxu0
  %v2577 = vpop.f32.mrb[0].mxu0
  %v2578 = vadd.f32 %v2366, %v2577
  %v2579 = vpop.f32.mrb[0].mxu0
  %2580 = vmatprep.mubr.bf16.mxu0 0
  %2581 = vmatmul.mubr.bf16.gmra.mrb[0].mxu0 %v2426
  %v2582 = vpop.f32.mrb[0].mxu0
  %v2583 = vadd.f32 %v2366, %v2582
  %v2584 = vpop.f32.mrb[0].mxu0
  %v2585 = vpop.f32.mrb[0].mxu0
  %v2586 = vadd.f32 %v2366, %v2585
  %v2587 = vpop.f32.mrb[0].mxu0
  %2588 = vdwg.mxu0
  %v2589 = vmax.f32 %v2463, 0.0
  %v2590 = vmax.f32 %v2466, 0.0
  %v2591 = vmax.f32 %v2471, 0.0
  %v2592 = vmax.f32 %v2474, 0.0
  %v2593 = vmax.f32 %v2479, 0.0
  %v2594 = vmax.f32 %v2482, 0.0
  %v2595 = vmax.f32 %v2487, 0.0
  %v2596 = vmax.f32 %v2490, 0.0
  %v2597 = vmax.f32 %v2495, 0.0
  %v2598 = vmax.f32 %v2498, 0.0
  %v2599 = vmax.f32 %v2503, 0.0
  %v2600 = vmax.f32 %v2506, 0.0
  %v2601 = vmax.f32 %v2511, 0.0
  %v2602 = vmax.f32 %v2514, 0.0
  %v2603 = vmax.f32 %v2519, 0.0
  %v2604 = vmax.f32 %v2522, 0.0
  %v2605 = vmax.f32 %v2527, 0.0
  %v2606 = vmax.f32 %v2530, 0.0
  %v2607 = vmax.f32 %v2535, 0.0
  %v2608 = vmax.f32 %v2538, 0.0
  %v2609 = vmax.f32 %v2543, 0.0
  %v2610 = vmax.f32 %v2546, 0.0
  %v2611 = vmax.f32 %v2551, 0.0
  %v2612 = vmax.f32 %v2554, 0.0
  %v2613 = vmax.f32 %v2559, 0.0
  %v2614 = vmax.f32 %v2562, 0.0
  %v2615 = vmax.f32 %v2567, 0.0
  %v2616 = vmax.f32 %v2570, 0.0
  %v2617 = vmax.f32 %v2575, 0.0
  %v2618 = vmax.f32 %v2578, 0.0
  %v2619 = vmax.f32 %v2583, 0.0
  %v2620 = vmax.f32 %v2586, 0.0
  %v2621 = vld [vmem:[#allocation2] sm:$0xff]
  %vm2622 = vcmask 523264
  %v2623 = vsel %vm2622, %v2589, -inf
  %v2624 = vsel %vm2622, %v2590, -inf
  %v2625 = vmax.f32 %v2623, %v2624
  %v2626 = vsel %vm2622, %v2591, -inf
  %v2627 = vmax.f32 %v2625, %v2626
  %v2628 = vsel %vm2622, %v2592, -inf
  %v2629 = vmax.f32 %v2627, %v2628
  %v2630 = vrot.slane %v2629, 4
  %v2631 = vmax.f32 %v2629, %v2630
  %v2632 = vrot.slane %v2631, 2
  %v2633 = vmax.f32 %v2631, %v2632
  %v2634 = vrot.slane %v2633, 1
  %v2635 = vmax.f32 %v2633, %v2634
  %v2636 = vsel %vm2622, %v2593, -inf
  %v2637 = vsel %vm2622, %v2594, -inf
  %v2638 = vmax.f32 %v2636, %v2637
  %v2639 = vsel %vm2622, %v2595, -inf
  %v2640 = vmax.f32 %v2638, %v2639
  %v2641 = vsel %vm2622, %v2596, -inf
  %v2642 = vmax.f32 %v2640, %v2641
  %v2643 = vrot.slane %v2642, 4
  %v2644 = vmax.f32 %v2642, %v2643
  %v2645 = vrot.slane %v2644, 2
  %v2646 = vmax.f32 %v2644, %v2645
  %v2647 = vrot.slane %v2646, 1
  %v2648 = vmax.f32 %v2646, %v2647
  %v2649 = vsel %vm2622, %v2597, -inf
  %v2650 = vsel %vm2622, %v2598, -inf
  %v2651 = vmax.f32 %v2649, %v2650
  %v2652 = vsel %vm2622, %v2599, -inf
  %v2653 = vmax.f32 %v2651, %v2652
  %v2654 = vsel %vm2622, %v2600, -inf
  %v2655 = vmax.f32 %v2653, %v2654
  %v2656 = vrot.slane %v2655, 4
  %v2657 = vmax.f32 %v2655, %v2656
  %v2658 = vrot.slane %v2657, 2
  %v2659 = vmax.f32 %v2657, %v2658
  %v2660 = vrot.slane %v2659, 1
  %v2661 = vmax.f32 %v2659, %v2660
  %v2662 = vsel %vm2622, %v2601, -inf
  %v2663 = vsel %vm2622, %v2602, -inf
  %v2664 = vmax.f32 %v2662, %v2663
  %v2665 = vsel %vm2622, %v2603, -inf
  %v2666 = vmax.f32 %v2664, %v2665
  %v2667 = vsel %vm2622, %v2604, -inf
  %v2668 = vmax.f32 %v2666, %v2667
  %v2669 = vrot.slane %v2668, 4
  %v2670 = vmax.f32 %v2668, %v2669
  %v2671 = vrot.slane %v2670, 2
  %v2672 = vmax.f32 %v2670, %v2671
  %v2673 = vrot.slane %v2672, 1
  %v2674 = vmax.f32 %v2672, %v2673
  %v2675 = vsel %vm2622, %v2605, -inf
  %v2676 = vsel %vm2622, %v2606, -inf
  %v2677 = vmax.f32 %v2675, %v2676
  %v2678 = vsel %vm2622, %v2607, -inf
  %v2679 = vmax.f32 %v2677, %v2678
  %v2680 = vsel %vm2622, %v2608, -inf
  %v2681 = vmax.f32 %v2679, %v2680
  %v2682 = vrot.slane %v2681, 4
  %v2683 = vmax.f32 %v2681, %v2682
  %v2684 = vrot.slane %v2683, 2
  %v2685 = vmax.f32 %v2683, %v2684
  %v2686 = vrot.slane %v2685, 1
  %v2687 = vmax.f32 %v2685, %v2686
  %v2688 = vsel %vm2622, %v2609, -inf
  %v2689 = vsel %vm2622, %v2610, -inf
  %v2690 = vmax.f32 %v2688, %v2689
  %v2691 = vsel %vm2622, %v2611, -inf
  %v2692 = vmax.f32 %v2690, %v2691
  %v2693 = vsel %vm2622, %v2612, -inf
  %v2694 = vmax.f32 %v2692, %v2693
  %v2695 = vrot.slane %v2694, 4
  %v2696 = vmax.f32 %v2694, %v2695
  %v2697 = vrot.slane %v2696, 2
  %v2698 = vmax.f32 %v2696, %v2697
  %v2699 = vrot.slane %v2698, 1
  %v2700 = vmax.f32 %v2698, %v2699
  %v2701 = vsel %vm2622, %v2613, -inf
  %v2702 = vsel %vm2622, %v2614, -inf
  %v2703 = vmax.f32 %v2701, %v2702
  %v2704 = vsel %vm2622, %v2615, -inf
  %v2705 = vmax.f32 %v2703, %v2704
  %v2706 = vsel %vm2622, %v2616, -inf
  %v2707 = vmax.f32 %v2705, %v2706
  %v2708 = vrot.slane %v2707, 4
  %v2709 = vmax.f32 %v2707, %v2708
  %v2710 = vrot.slane %v2709, 2
  %v2711 = vmax.f32 %v2709, %v2710
  %v2712 = vrot.slane %v2711, 1
  %v2713 = vmax.f32 %v2711, %v2712
  %v2714 = vsel %vm2622, %v2617, -inf
  %v2715 = vsel %vm2622, %v2618, -inf
  %v2716 = vmax.f32 %v2714, %v2715
  %v2717 = vsel %vm2622, %v2619, -inf
  %v2718 = vmax.f32 %v2716, %v2717
  %v2719 = vsel %vm2622, %v2620, -inf
  %v2720 = vmax.f32 %v2718, %v2719
  %v2721 = vrot.slane %v2720, 4
  %v2722 = vmax.f32 %v2720, %v2721
  %v2723 = vrot.slane %v2722, 2
  %v2724 = vmax.f32 %v2722, %v2723
  %v2725 = vrot.slane %v2724, 1
  %v2726 = vmax.f32 %v2724, %v2725
  %vm2735 = vcmask 1041409
  %v2736 = vsel %vm2735, %v2648, %v2635
  %vm2737 = vcmask 1042434
  %v2738 = vsel %vm2737, %v2661, %v2736
  %vm2739 = vcmask 1043459
  %v2740 = vsel %vm2739, %v2674, %v2738
  %vm2741 = vcmask 1044484
  %v2742 = vsel %vm2741, %v2687, %v2740
  %vm2743 = vcmask 1045509
  %v2744 = vsel %vm2743, %v2700, %v2742
  %vm2745 = vcmask 1046534
  %v2746 = vsel %vm2745, %v2713, %v2744
  %vm2747 = vcmask 1047559
  %v2748 = vsel %vm2747, %v2726, %v2746
  %v2750 = vmax.f32 %v2621, %v2748
  %2751 = vst.msk [vmem:[#allocation2] sm:$0xff] %vm2622, %v2750
  // Predicated region
  $region38: #{_lambda_.1} parent=0 // pred_check
    %p2752 = pneg %p30
  $region39: #{_lambda_.1} parent=0 // pred_check_branch
    %2754 = sbr.rel (%p2752) target = $region41
  $region40: #{_lambda_.1} parent=0 // pred_region
    %v2755 = vld [vmem:[#allocation2] sm:$0xff]
    %v2756 = vld [vmem:[%s1] sm:$0xff]
    %v2757 = vld [vmem:[%s3] sm:$0xff]
    %v2758 = vld [vmem:[%s7 + $0x1] sm:$0x1]
    %v2759 = vlaneseq
    %v2760 = vshrl.u32 %v2759, 7
    %v2761 = vsub.s32 0, %v2760
    %v2762 = vrot.slane %v2758, %v2761
    %vm2763 = vcmask 64512
    %v2765 = vsel %vm2763, %v2756, 0
    %2767 = vmatprep.subr.mxu0 0.0
    %2768 = vmatpush1.msra.mxu0 %v2757
    %2769 = vmatprep.subr.mxu0 0.0
    %2770 = vmatpush1.msra.mxu0 0.0
    %2771 = vmatprep.subr.mxu0 0.0
    %2772 = vmatpush1.msra.mxu0 0.0
    %2773 = vmatprep.subr.mxu0 0.0
    %2774 = vmatpush1.msra.mxu0 0.0
    %2775 = vmatprep.subr.mxu0 0.0
    %2776 = vmatpush1.msra.mxu0 0.0
    %2777 = vmatprep.subr.mxu0 0.0
    %2778 = vmatpush1.msra.mxu0 0.0
    %2779 = vmatprep.subr.mxu0 0.0
    %2780 = vmatpush1.msra.mxu0 0.0
    %2781 = vmatprep.subr.mxu0 0.0
    %2782 = vmatpush1.msra.mxu0 0.0
    %2783 = vmatprep.subr.mxu0 0.0
    %2784 = vmatpush1.msra.mxu0 0.0
    %2785 = vmatprep.subr.mxu0 0.0
    %2786 = vmatpush1.msra.mxu0 0.0
    %2787 = vmatprep.subr.mxu0 0.0
    %2788 = vmatpush1.msra.mxu0 0.0
    %2789 = vmatprep.subr.mxu0 0.0
    %2790 = vmatpush1.msra.mxu0 0.0
    %2791 = vmatprep.subr.mxu0 0.0
    %2792 = vmatpush1.msra.mxu0 0.0
    %2793 = vmatprep.subr.mxu0 0.0
    %2794 = vmatpush1.msra.mxu0 0.0
    %2795 = vmatprep.subr.mxu0 0.0
    %2796 = vmatpush1.msra.mxu0 0.0
    %2797 = vmatprep.subr.mxu0 0.0
    %2798 = vmatpush1.msra.mxu0 0.0
    %2799 = vmatprep.subr.mxu0 0.0
    %2800 = vmatpush1.msra.mxu0 0.0
    %2801 = vmatprep.subr.mxu0 0.0
    %2802 = vmatpush1.msra.mxu0 0.0
    %2803 = vmatprep.subr.mxu0 0.0
    %2804 = vmatpush1.msra.mxu0 0.0
    %2805 = vmatprep.subr.mxu0 0.0
    %2806 = vmatpush1.msra.mxu0 0.0
    %2807 = vmatprep.subr.mxu0 0.0
    %2808 = vmatpush1.msra.mxu0 0.0
    %2809 = vmatprep.subr.mxu0 0.0
    %2810 = vmatpush1.msra.mxu0 0.0
    %2811 = vmatprep.subr.mxu0 0.0
    %2812 = vmatpush1.msra.mxu0 0.0
    %2813 = vmatprep.subr.mxu0 0.0
    %2814 = vmatpush1.msra.mxu0 0.0
    %2815 = vmatprep.subr.mxu0 0.0
    %2816 = vmatpush1.msra.mxu0 0.0
    %2817 = vmatprep.subr.mxu0 0.0
    %2818 = vmatpush1.msra.mxu0 0.0
    %2819 = vmatprep.subr.mxu0 0.0
    %2820 = vmatpush1.msra.mxu0 0.0
    %2821 = vmatprep.subr.mxu0 0.0
    %2822 = vmatpush1.msra.mxu0 0.0
    %2823 = vmatprep.subr.mxu0 0.0
    %2824 = vmatpush1.msra.mxu0 0.0
    %2825 = vmatprep.subr.mxu0 0.0
    %2826 = vmatpush1.msra.mxu0 0.0
    %2827 = vmatprep.subr.mxu0 0.0
    %2828 = vmatpush1.msra.mxu0 0.0
    %2829 = vmatprep.subr.mxu0 0.0
    %2830 = vmatpush1.msra.mxu0 0.0
    %2831 = vmatprep.mubr.f32.mxu0 0.0
    %2832 = vmatmul.mubr.f32.gmra.mrb[0].mxu0 %v2765
    %v2833 = vpop.f32.mrb[0].mxu0
    %v2834 = vadd.f32 %v2762, %v2833
    %v2835 = vpop.f32.mrb[0].mxu0
    %2836 = vdwg.mxu0
    %v2837 = vmax.f32 %v2834, 0.0
    %v2838 = vld [vmem:[%s4] sm:$0xff]
    %v2839 = vld [vmem:[%s4 + $0x8] sm:$0xff]
    %v2840 = vld [vmem:[%s4 + $0x10] sm:$0xff]
    %v2841 = vld [vmem:[%s4 + $0x18] sm:$0xff]
    %v2842 = vld [vmem:[%s4 + $0x20] sm:$0xff]
    %v2843 = vld [vmem:[%s4 + $0x28] sm:$0xff]
    %v2844 = vld [vmem:[%s4 + $0x30] sm:$0xff]
    %v2845 = vld [vmem:[%s4 + $0x38] sm:$0xff]
    %v2846 = vld [vmem:[%s5] sm:$0xff]
    %v2847 = vld [vmem:[%s5 + $0x8] sm:$0xff]
    %v2848 = vld [vmem:[%s5 + $0x10] sm:$0xff]
    %v2849 = vld [vmem:[%s5 + $0x18] sm:$0xff]
    %v2851 = vsel %vm2379, %v2837, 0
    %2853 = vmatprep.subr.mxu0 0.0
    %2854 = vmatpush1.msra.mxu0 %v2846
    %2855 = vmatprep.subr.mxu0 0.0
    %2856 = vmatpush1.msra.mxu0 %v2847
    %2857 = vmatprep.subr.mxu0 0.0
    %2858 = vmatpush1.msra.mxu0 %v2848
    %2859 = vmatprep.subr.mxu0 0.0
    %2860 = vmatpush1.msra.mxu0 %v2849
    %2861 = vmatprep.subr.mxu0 0.0
    %2862 = vmatpush1.msra.mxu0 0.0
    %2863 = vmatprep.subr.mxu0 0.0
    %2864 = vmatpush1.msra.mxu0 0.0
    %2865 = vmatprep.subr.mxu0 0.0
    %2866 = vmatpush1.msra.mxu0 0.0
    %2867 = vmatprep.subr.mxu0 0.0
    %2868 = vmatpush1.msra.mxu0 0.0
    %2869 = vmatprep.subr.mxu0 0.0
    %2870 = vmatpush1.msra.mxu0 0.0
    %2871 = vmatprep.subr.mxu0 0.0
    %2872 = vmatpush1.msra.mxu0 0.0
    %2873 = vmatprep.subr.mxu0 0.0
    %2874 = vmatpush1.msra.mxu0 0.0
    %2875 = vmatprep.subr.mxu0 0.0
    %2876 = vmatpush1.msra.mxu0 0.0
    %2877 = vmatprep.subr.mxu0 0.0
    %2878 = vmatpush1.msra.mxu0 0.0
    %2879 = vmatprep.subr.mxu0 0.0
    %2880 = vmatpush1.msra.mxu0 0.0
    %2881 = vmatprep.subr.mxu0 0.0
    %2882 = vmatpush1.msra.mxu0 0.0
    %2883 = vmatprep.subr.mxu0 0.0
    %2884 = vmatpush1.msra.mxu0 0.0
    %2885 = vmatprep.subr.mxu0 0.0
    %2886 = vmatpush1.msra.mxu0 0.0
    %2887 = vmatprep.subr.mxu0 0.0
    %2888 = vmatpush1.msra.mxu0 0.0
    %2889 = vmatprep.subr.mxu0 0.0
    %2890 = vmatpush1.msra.mxu0 0.0
    %2891 = vmatprep.subr.mxu0 0.0
    %2892 = vmatpush1.msra.mxu0 0.0
    %2893 = vmatprep.subr.mxu0 0.0
    %2894 = vmatpush1.msra.mxu0 0.0
    %2895 = vmatprep.subr.mxu0 0.0
    %2896 = vmatpush1.msra.mxu0 0.0
    %2897 = vmatprep.subr.mxu0 0.0
    %2898 = vmatpush1.msra.mxu0 0.0
    %2899 = vmatprep.subr.mxu0 0.0
    %2900 = vmatpush1.msra.mxu0 0.0
    %2901 = vmatprep.subr.mxu0 0.0
    %2902 = vmatpush1.msra.mxu0 0.0
    %2903 = vmatprep.subr.mxu0 0.0
    %2904 = vmatpush1.msra.mxu0 0.0
    %2905 = vmatprep.subr.mxu0 0.0
    %2906 = vmatpush1.msra.mxu0 0.0
    %2907 = vmatprep.subr.mxu0 0.0
    %2908 = vmatpush1.msra.mxu0 0.0
    %2909 = vmatprep.subr.mxu0 0.0
    %2910 = vmatpush1.msra.mxu0 0.0
    %2911 = vmatprep.subr.mxu0 0.0
    %2912 = vmatpush1.msra.mxu0 0.0
    %2913 = vmatprep.subr.mxu0 0.0
    %2914 = vmatpush1.msra.mxu0 0.0
    %2915 = vmatprep.subr.mxu0 0.0
    %2916 = vmatpush1.msra.mxu0 0.0
    %2917 = vmatprep.mubr.f32.mxu0 0.0
    %2918 = vmatmul.mubr.f32.gmra.mrb[0].mxu0 %v2851
    %v2919 = vpop.f32.mrb[0].mxu0
    %v2920 = vadd.f32 0.0, %v2919
    %v2921 = vpop.f32.mrb[0].mxu0
    %2922 = vdwg.mxu0
    %v2924 = vsel %vm2622, %v2755, 0
    %2926 = vmatprep.subr.mxu0 0.0
    %2927 = vmatpush1.msra.mxu0 %v2838
    %2928 = vmatprep.subr.mxu0 0.0
    %2929 = vmatpush1.msra.mxu0 %v2839
    %2930 = vmatprep.subr.mxu0 0.0
    %2931 = vmatpush1.msra.mxu0 %v2840
    %2932 = vmatprep.subr.mxu0 0.0
    %2933 = vmatpush1.msra.mxu0 %v2841
    %2934 = vmatprep.subr.mxu0 0.0
    %2935 = vmatpush1.msra.mxu0 %v2842
    %2936 = vmatprep.subr.mxu0 0.0
    %2937 = vmatpush1.msra.mxu0 %v2843
    %2938 = vmatprep.subr.mxu0 0.0
    %2939 = vmatpush1.msra.mxu0 %v2844
    %2940 = vmatprep.subr.mxu0 0.0
    %2941 = vmatpush1.msra.mxu0 %v2845
    %2942 = vmatprep.subr.mxu0 0.0
    %2943 = vmatpush1.msra.mxu0 0.0
    %2944 = vmatprep.subr.mxu0 0.0
    %2945 = vmatpush1.msra.mxu0 0.0
    %2946 = vmatprep.subr.mxu0 0.0
    %2947 = vmatpush1.msra.mxu0 0.0
    %2948 = vmatprep.subr.mxu0 0.0
    %2949 = vmatpush1.msra.mxu0 0.0
    %2950 = vmatprep.subr.mxu0 0.0
    %2951 = vmatpush1.msra.mxu0 0.0
    %2952 = vmatprep.subr.mxu0 0.0
    %2953 = vmatpush1.msra.mxu0 0.0
    %2954 = vmatprep.subr.mxu0 0.0
    %2955 = vmatpush1.msra.mxu0 0.0
    %2956 = vmatprep.subr.mxu0 0.0
    %2957 = vmatpush1.msra.mxu0 0.0
    %2958 = vmatprep.subr.mxu0 0.0
    %2959 = vmatpush1.msra.mxu0 0.0
    %2960 = vmatprep.subr.mxu0 0.0
    %2961 = vmatpush1.msra.mxu0 0.0
    %2962 = vmatprep.subr.mxu0 0.0
    %2963 = vmatpush1.msra.mxu0 0.0
    %2964 = vmatprep.subr.mxu0 0.0
    %2965 = vmatpush1.msra.mxu0 0.0
    %2966 = vmatprep.subr.mxu0 0.0
    %2967 = vmatpush1.msra.mxu0 0.0
    %2968 = vmatprep.subr.mxu0 0.0
    %2969 = vmatpush1.msra.mxu0 0.0
    %2970 = vmatprep.subr.mxu0 0.0
    %2971 = vmatpush1.msra.mxu0 0.0
    %2972 = vmatprep.subr.mxu0 0.0
    %2973 = vmatpush1.msra.mxu0 0.0
    %2974 = vmatprep.subr.mxu0 0.0
    %2975 = vmatpush1.msra.mxu0 0.0
    %2976 = vmatprep.subr.mxu0 0.0
    %2977 = vmatpush1.msra.mxu0 0.0
    %2978 = vmatprep.subr.mxu0 0.0
    %2979 = vmatpush1.msra.mxu0 0.0
    %2980 = vmatprep.subr.mxu0 0.0
    %2981 = vmatpush1.msra.mxu0 0.0
    %2982 = vmatprep.subr.mxu0 0.0
    %2983 = vmatpush1.msra.mxu0 0.0
    %2984 = vmatprep.subr.mxu0 0.0
    %2985 = vmatpush1.msra.mxu0 0.0
    %2986 = vmatprep.subr.mxu0 0.0
    %2987 = vmatpush1.msra.mxu0 0.0
    %2988 = vmatprep.subr.mxu0 0.0
    %2989 = vmatpush1.msra.mxu0 0.0
    %2990 = vmatprep.mubr.f32.mxu0 0.0
    %2991 = vmatmul.mubr.f32.gmra.mrb[0].mxu0 %v2924
    %v2992 = vpop.f32.mrb[0].mxu0
    %v2993 = vadd.f32 %v2920, %v2992
    %v2994 = vpop.f32.mrb[0].mxu0
    %2995 = vdwg.mxu0
    %v2996 = vld [vmem:[%s7 + $0x2] sm:$0x1]
    %v2997 = vlaneseq
    %v2998 = vshrl.u32 %v2997, 7
    %v2999 = vsub.s32 0, %v2998
    %v3000 = vrot.slane %v2996, %v2999
    %v3001 = vadd.f32 %v2993, %v3000
    %v3002 = vmax.f32 %v3001, 0.0
    %v3003 = vld [vmem:[%s6] sm:$0xff]
    %v3004 = vld [vmem:[%s6 + $0x8] sm:$0xff]
    %v3005 = vld [vmem:[%s6 + $0x10] sm:$0xff]
    %v3006 = vld [vmem:[%s6 + $0x18] sm:$0xff]
    %v3007 = vld [vmem:[%s7 + $0x3] sm:$0x1]
    %v3008 = vlaneseq
    %v3009 = vshrl.u32 %v3008, 7
    %v3010 = vsub.s32 0, %v3009
    %v3011 = vrot.slane %v3007, %v3010
    %v3013 = vsel %vm2379, %v3002, 0
    %3015 = vmatprep.subr.mxu0 0.0
    %3016 = vmatpush1.msra.mxu0 %v3003
    %3017 = vmatprep.subr.mxu0 0.0
    %3018 = vmatpush1.msra.mxu0 %v3004
    %3019 = vmatprep.subr.mxu0 0.0
    %3020 = vmatpush1.msra.mxu0 %v3005
    %3021 = vmatprep.subr.mxu0 0.0
    %3022 = vmatpush1.msra.mxu0 %v3006
    %3023 = vmatprep.subr.mxu0 0.0
    %3024 = vmatpush1.msra.mxu0 0.0
    %3025 = vmatprep.subr.mxu0 0.0
    %3026 = vmatpush1.msra.mxu0 0.0
    %3027 = vmatprep.subr.mxu0 0.0
    %3028 = vmatpush1.msra.mxu0 0.0
    %3029 = vmatprep.subr.mxu0 0.0
    %3030 = vmatpush1.msra.mxu0 0.0
    %3031 = vmatprep.subr.mxu0 0.0
    %3032 = vmatpush1.msra.mxu0 0.0
    %3033 = vmatprep.subr.mxu0 0.0
    %3034 = vmatpush1.msra.mxu0 0.0
    %3035 = vmatprep.subr.mxu0 0.0
    %3036 = vmatpush1.msra.mxu0 0.0
    %3037 = vmatprep.subr.mxu0 0.0
    %3038 = vmatpush1.msra.mxu0 0.0
    %3039 = vmatprep.subr.mxu0 0.0
    %3040 = vmatpush1.msra.mxu0 0.0
    %3041 = vmatprep.subr.mxu0 0.0
    %3042 = vmatpush1.msra.mxu0 0.0
    %3043 = vmatprep.subr.mxu0 0.0
    %3044 = vmatpush1.msra.mxu0 0.0
    %3045 = vmatprep.subr.mxu0 0.0
    %3046 = vmatpush1.msra.mxu0 0.0
    %3047 = vmatprep.subr.mxu0 0.0
    %3048 = vmatpush1.msra.mxu0 0.0
    %3049 = vmatprep.subr.mxu0 0.0
    %3050 = vmatpush1.msra.mxu0 0.0
    %3051 = vmatprep.subr.mxu0 0.0
    %3052 = vmatpush1.msra.mxu0 0.0
    %3053 = vmatprep.subr.mxu0 0.0
    %3054 = vmatpush1.msra.mxu0 0.0
    %3055 = vmatprep.subr.mxu0 0.0
    %3056 = vmatpush1.msra.mxu0 0.0
    %3057 = vmatprep.subr.mxu0 0.0
    %3058 = vmatpush1.msra.mxu0 0.0
    %3059 = vmatprep.subr.mxu0 0.0
    %3060 = vmatpush1.msra.mxu0 0.0
    %3061 = vmatprep.subr.mxu0 0.0
    %3062 = vmatpush1.msra.mxu0 0.0
    %3063 = vmatprep.subr.mxu0 0.0
    %3064 = vmatpush1.msra.mxu0 0.0
    %3065 = vmatprep.subr.mxu0 0.0
    %3066 = vmatpush1.msra.mxu0 0.0
    %3067 = vmatprep.subr.mxu0 0.0
    %3068 = vmatpush1.msra.mxu0 0.0
    %3069 = vmatprep.subr.mxu0 0.0
    %3070 = vmatpush1.msra.mxu0 0.0
    %3071 = vmatprep.subr.mxu0 0.0
    %3072 = vmatpush1.msra.mxu0 0.0
    %3073 = vmatprep.subr.mxu0 0.0
    %3074 = vmatpush1.msra.mxu0 0.0
    %3075 = vmatprep.subr.mxu0 0.0
    %3076 = vmatpush1.msra.mxu0 0.0
    %3077 = vmatprep.subr.mxu0 0.0
    %3078 = vmatpush1.msra.mxu0 0.0
    %3079 = vmatprep.mubr.f32.mxu0 0.0
    %3080 = vmatmul.mubr.f32.gmra.mrb[0].mxu0 %v3013
    %v3081 = vpop.f32.mrb[0].mxu0
    %v3082 = vadd.f32 %v3011, %v3081
    %v3083 = vpop.f32.mrb[0].mxu0
    %3084 = vdwg.mxu0
    %vm3085 = vcmask 15360
    %v3086 = vsel %vm3085, %v3082, -inf
    %3087 = vmax.xlane.f32.xlu0 %v3086
    %v3088 = vpop.xlane.xlu0 %3087
    %v3089 = vsub.f32 %v3082, %v3088
    %v3090 = vmul.f32 %v3089, 1.442695
    %v3091 = vpow.pop %v3090
    %v3092 = vsel %vm3085, %v3091, 0.0
    %3093 = vadd.xlane.f32.xlu0 %v3092
    %v3094 = vpop.xlane.xlu0 %3093
    %v3095 = vlog2.pop %v3094
    %v3096 = vmul.f32 %v3095, 0.6931472
    %v3097 = vadd.f32 %v3088, %v3096
    %v3098 = vsub.f32 %v3082, %v3097
    %3100 = vrot.lane.b32.xlu0 %v3082, 32
    %v3101 = vpop.permute.xlu0 %3100
    %3104 = vrot.lane.b32.xlu0 %v3098, 34
    %v3105 = vpop.permute.xlu0 %3104
    %v3107 = vsel %vm2379, %v3002, %v3101
    %vm3108 = vcmask 277504
    %v3109 = vsel %vm3108, %v3107, %v3105
    %vm3110 = vcmask 293888
    %v3111 = vsel %vm3110, %v3109, 0.0
    %3112 = vst [vmem:[%s8] sm:$0xff] %v3111
  $region41: #{_lambda_.1} parent=0 // pred_fallthru
    _
  // Predicated region
  $region42: #{_lambda_.1} parent=0 // pred_check
    _
  $region43: #{_lambda_.1} parent=0 // pred_check_branch
    %3114 = sbr.rel (0) target = $region45
  $region44: #{_lambda_.1} parent=0 // pred_region
    _
  $region45: #{_lambda_.1} parent=0 // pred_fallthru
    _
  // Predicated region
  $region46: #{_lambda_.1} parent=0 // pred_check
    _
  $region47: #{_lambda_.1} parent=0 // pred_check_branch
    %3116 = sbr.rel (0) target = $region49
  $region48: #{_lambda_.1} parent=0 // pred_region
    _
  $region49: #{_lambda_.1} parent=0 // pred_fallthru
    _

</llo_original>
